<compile_context>
chip_gen: v7x
topology: tpu7x:2x2x1
jax: 0.10.0
libtpu: 0.0.40
codegen_flags: <defaults>
</compile_context>

<pallas_src>
import functools

import jax
import jax.numpy as jnp
import numpy as np
from jax.experimental import pallas as pl
from jax.experimental.pallas import tpu as pltpu

LANES = 128


def _round_up(n, m):
    return ((n + m - 1) // m) * m


def _fc_activation(x, kind):
    if kind == "relu":
        return jnp.maximum(x, 0.0)
    if kind == "leakyrelu":
        return jnp.where(x >= 0.0, x, 0.01 * x)
    if kind == "sigmoid":
        return jax.nn.sigmoid(x)
    if kind == "tanh":
        return jnp.tanh(x)
    raise ValueError(f"unsupported activation {kind}")


def _rows(arr, start, size, stride):
    """Rows start, start+stride, ... (size of them) of a 2-D value."""
    if stride == 1:
        return arr[start:start + size, :]
    limit = start + (size - 1) * stride + 1
    return jax.lax.slice(arr, (start, 0), (limit, arr.shape[1]), (stride, 1))


# ---------------------------------------------------------------------------
# Fused kernel: one grid step == one batch tile of B_TILE images.
# refs = (x, w1, b1, w2, b2, [fc_w_i, fc_b_i]*n_fc, out, feat_scratch)
# Layouts (all f32):
#   x    : (B_TILE, H, W)                 image width in lanes
#   w1   : (k1*W, out1*c1)                conv1 Toeplitz-over-width weight
#   b1   : (1, out1*c1)
#   w2   : (k2*out1*c1, n2p)              conv2 Toeplitz-over-width weight
#   b2   : (1, n2p)                       n2p = round_up(out2*c2, 128)
#   fc_w[0] : (out2, n2p, H1P)            FC1 with torch NCHW flatten baked in
#   fc_w[i>0] : (PinP, PoutP), fc_b[i] : (1, PoutP)
#   out  : (B_TILE, PoutP_last)
#   feat : (B_TILE, out2, n2p)            conv2 activations (VMEM scratch)
# ---------------------------------------------------------------------------
def _cnn_kernel(*refs, k1, st1, k2, st2, out1, out2, n_fc, act):
    x_ref = refs[0]
    w1_ref, b1_ref, w2_ref, b2_ref = refs[1:5]
    fc_refs = refs[5:5 + 2 * n_fc]
    out_ref = refs[5 + 2 * n_fc]
    feat_ref = refs[6 + 2 * n_fc]

    b_tile = x_ref.shape[0]
    b1v = b1_ref[...]                       # (1, out1*c1)   hoisted (no re-broadcast)
    b2v = b2_ref[...]                       # (1, n2p)

    # ---- conv1 + ReLU, conv2 + ReLU: one MXU GEMM each per image -------------
    def conv_body(b, carry):
        x_img = x_ref[b]                                                  # (H, W)
        lhs1 = jnp.concatenate([_rows(x_img, di, out1, st1)
                                for di in range(k1)], axis=1)             # (out1, k1*W)
        h1 = jnp.dot(lhs1, w1_ref[...],
                     preferred_element_type=jnp.float32) + b1v
        h1 = jnp.maximum(h1, 0.0)                                         # (out1, out1*c1)

        lhs2 = jnp.concatenate([_rows(h1, di, out2, st2)
                                for di in range(k2)], axis=1)             # (out2, k2*out1*c1)
        h2 = jnp.dot(lhs2, w2_ref[...],
                     preferred_element_type=jnp.float32) + b2v
        feat_ref[b] = jnp.maximum(h2, 0.0)                                # (out2, n2p)
        return carry

    jax.lax.fori_loop(0, b_tile, conv_body, 0)

    # ---- FC1: out2 accumulated (B_TILE, n2p) @ (n2p, H1P) GEMMs ---------------
    wf1_ref, bf1_ref = fc_refs[0], fc_refs[1]
    a = jnp.zeros((b_tile, bf1_ref.shape[-1]), jnp.float32) + bf1_ref[...]
    for ho in range(out2):
        a = a + jnp.dot(feat_ref[:, ho, :], wf1_ref[ho],
                        preferred_element_type=jnp.float32)
    if n_fc > 1:
        a = _fc_activation(a, act)

    # ---- remaining FC layers, batched over the tile (last one: no activation) -
    for i in range(1, n_fc):
        w_ref, b_ref = fc_refs[2 * i], fc_refs[2 * i + 1]
        a = jnp.dot(a, w_ref[...], preferred_element_type=jnp.float32) + b_ref[...]
        if i < n_fc - 1:
            a = _fc_activation(a, act)

    out_ref[...] = a                                                      # (B_TILE, PoutP)


# ---------------------------------------------------------------------------
# Builder: init (torch-style), one-time packing to kernel layouts, forward.
# ---------------------------------------------------------------------------
def build_cnn(image_size, c1, k1, st1, c2, k2, st2, hidden_sizes,
              activation="relu"):
    W = image_size
    out1 = (image_size - k1) // st1 + 1          # pool_1 = None
    out2 = (out1 - k2) // st2 + 1                # pool_2 = None
    n2p = _round_up(out2 * c2, LANES)
    flat_dim = c2 * out2 * out2
    fc_dims = [flat_dim] + list(hidden_sizes) + [1]
    n_fc = len(fc_dims) - 1
    fc_pad = [_round_up(d, LANES) for d in fc_dims]

    # ---- PyTorch-style parameter init (uniform +-1/sqrt(fan_in)) -------------
    def init_params(key):
        def u(k, shape, fan_in):
            b = 1.0 / jnp.sqrt(jnp.float32(fan_in))
            return jax.random.uniform(k, shape, jnp.float32, -b, b)

        keys = jax.random.split(key, 4 + 2 * n_fc)
        ki = iter(keys)
        p = {}
        p["conv1_w"] = u(next(ki), (c1, 1, k1, k1), 1 * k1 * k1)
        p["conv1_b"] = u(next(ki), (c1,), 1 * k1 * k1)
        p["conv2_w"] = u(next(ki), (c2, c1, k2, k2), c1 * k2 * k2)
        p["conv2_b"] = u(next(ki), (c2,), c1 * k2 * k2)
        p["fc"] = []
        for d_in, d_out in zip(fc_dims[:-1], fc_dims[1:]):
            p["fc"].append((u(next(ki), (d_out, d_in), d_in),   # torch (out, in)
                            u(next(ki), (d_out,), d_in)))
        return p

    # ---- one-time packing into Toeplitz / lane-padded kernel layouts ---------
    def pack_params(p):
        c1w = np.asarray(p["conv1_w"], np.float32)              # (c1,1,k1,k1)
        c1b = np.asarray(p["conv1_b"], np.float32)
        w1p = np.zeros((k1 * W, out1 * c1), np.float32)
        for di in range(k1):
            for w in range(out1):
                for dj in range(k1):
                    w1p[di * W + w * st1 + dj, w * c1:(w + 1) * c1] = c1w[:, 0, di, dj]
        b1p = np.tile(c1b, out1)[None, :]

        c2w = np.asarray(p["conv2_w"], np.float32)              # (c2,c1,k2,k2)
        c2b = np.asarray(p["conv2_b"], np.float32)
        K1 = out1 * c1
        w2p = np.zeros((k2 * K1, n2p), np.float32)
        for di in range(k2):
            for wo in range(out2):
                for dj in range(k2):
                    wpos = wo * st2 + dj
                    w2p[di * K1 + wpos * c1: di * K1 + (wpos + 1) * c1,
                        wo * c2:(wo + 1) * c2] = c2w[:, :, di, dj].T
        b2p = np.zeros((1, n2p), np.float32)
        b2p[0, :out2 * c2] = np.tile(c2b, out2)

        packed = [jnp.asarray(w1p), jnp.asarray(b1p),
                  jnp.asarray(w2p), jnp.asarray(b2p)]

        # FC1: torch flattens NCHW (flat index = co*out2*out2 + ho*out2 + wo);
        # re-order to the kernel's native (ho rows, wo*c2+co lanes) layout.
        w0, b0 = p["fc"][0]
        h1dim = fc_dims[1]
        w0r = np.asarray(w0, np.float32).reshape(h1dim, c2, out2, out2)
        w0r = np.transpose(w0r, (2, 3, 1, 0)).reshape(out2, out2 * c2, h1dim)
        wf1 = np.zeros((out2, n2p, fc_pad[1]), np.float32)
        wf1[:, :out2 * c2, :h1dim] = w0r
        bf1 = np.zeros((1, fc_pad[1]), np.float32)
        bf1[0, :h1dim] = np.asarray(b0, np.float32)
        packed += [jnp.asarray(wf1), jnp.asarray(bf1)]

        for i in range(1, n_fc):
            w, b = p["fc"][i]
            wp = np.zeros((fc_pad[i], fc_pad[i + 1]), np.float32)
            wp[:fc_dims[i], :fc_dims[i + 1]] = np.asarray(w, np.float32).T
            bp = np.zeros((1, fc_pad[i + 1]), np.float32)
            bp[0, :fc_dims[i + 1]] = np.asarray(b, np.float32)
            packed += [jnp.asarray(wp), jnp.asarray(bp)]
        return tuple(packed)

    kernel = functools.partial(
        _cnn_kernel, k1=k1, st1=st1, k2=k2, st2=st2,
        out1=out1, out2=out2, n_fc=n_fc, act=activation)

    def forward(packed, x_nchw, b_tile=8):
        """x_nchw: (B, 1, image_size, image_size) f32 -> (B, 1) f32."""
        batch = x_nchw.shape[0]
        b_tile = _round_up(b_tile, 8)
        padded = _round_up(batch, b_tile)
        x = x_nchw.reshape(batch, image_size, image_size).astype(jnp.float32)
        if padded != batch:
            x = jnp.pad(x, ((0, padded - batch), (0, 0), (0, 0)))

        in_specs = [pl.BlockSpec((b_tile, image_size, image_size),
                                 lambda g: (g, 0, 0))]
        in_specs += [pl.BlockSpec(a.shape, lambda g, _nd=a.ndim: (0,) * _nd)
                     for a in packed]

        out_pad = fc_pad[-1]
        grid_spec = pltpu.PrefetchScalarGridSpec(
            num_scalar_prefetch=0,
            grid=(padded // b_tile,),
            in_specs=in_specs,
            out_specs=pl.BlockSpec((b_tile, out_pad), lambda g: (g, 0)),
            scratch_shapes=[
                pltpu.VMEM((b_tile, out2, n2p), jnp.float32),   # conv2 activations
            ],
        )
        out = pl.pallas_call(
            kernel,
            out_shape=jax.ShapeDtypeStruct((padded, out_pad), jnp.float32),
            grid_spec=grid_spec,
            compiler_params=pltpu.CompilerParams(
                dimension_semantics=("parallel",)),
        )(x, *packed)
        return out[:batch, :1]

    return init_params, pack_params, forward


# ---------------------------------------------------------------------------
# Pure-JAX reference (same math as the PyTorch module) for validation.
# ---------------------------------------------------------------------------
def reference_forward(p, x, st1, st2, activation="relu"):
    hi = jax.lax.Precision.HIGHEST
    y = jax.lax.conv_general_dilated(
        x, p["conv1_w"], (st1, st1), "VALID",
        dimension_numbers=("NCHW", "OIHW", "NCHW"), precision=hi)
    y = jnp.maximum(y + p["conv1_b"][None, :, None, None], 0.0)
    y = jax.lax.conv_general_dilated(
        y, p["conv2_w"], (st2, st2), "VALID",
        dimension_numbers=("NCHW", "OIHW", "NCHW"), precision=hi)
    y = jnp.maximum(y + p["conv2_b"][None, :, None, None], 0.0)
    y = y.reshape(x.shape[0], -1)
    for i, (w, b) in enumerate(p["fc"]):
        y = jnp.dot(y, w.T, precision=hi) + b
        if i < len(p["fc"]) - 1:
            y = _fc_activation(y, activation)
    return y


if __name__ == "__main__":
    image_size = 16
    c1, k1, st1 = 8, 3, 1
    c2, k2, st2 = 16, 3, 1
    hidden_sizes = [image_size * 8, image_size * 8, image_size * 2]  # [128, 128, 32]
    batch, b_tile = 16, 8                    # 2 grid blocks -> feeds both v7x cores

    init_params, pack_params, forward = build_cnn(
        image_size, c1, k1, st1, c2, k2, st2, hidden_sizes, activation="relu")

    key = jax.random.PRNGKey(0)
    pkey, xkey = jax.random.split(key)
    raw = init_params(pkey)
    packed = pack_params(raw)                      # one-time weight packing
    x = jax.random.normal(xkey, (batch, 1, image_size, image_size), jnp.float32)

    fwd = jax.jit(functools.partial(forward, b_tile=b_tile))
    out = jax.block_until_ready(fwd(packed, x))
    assert out.shape == (batch, 1) and out.dtype == jnp.float32

    ref = reference_forward(raw, x, st1, st2, "relu")
    assert jnp.allclose(out, ref, rtol=5e-3, atol=5e-3), (out, ref)

    print("KERNEL_OK")
</pallas_src>

<mosaic_0001>
module attributes {stable_mosaic.version = 11 : i64} {
  func.func @_cnn_kernel(%arg0: i32, %arg1: memref<8x16x16xf32, #tpu.memory_space<vmem>>, %arg2: memref<48x112xf32, #tpu.memory_space<vmem>>, %arg3: memref<1x112xf32, #tpu.memory_space<vmem>>, %arg4: memref<336x256xf32, #tpu.memory_space<vmem>>, %arg5: memref<1x256xf32, #tpu.memory_space<vmem>>, %arg6: memref<12x256x128xf32, #tpu.memory_space<vmem>>, %arg7: memref<1x128xf32, #tpu.memory_space<vmem>>, %arg8: memref<128x128xf32, #tpu.memory_space<vmem>>, %arg9: memref<1x128xf32, #tpu.memory_space<vmem>>, %arg10: memref<128x128xf32, #tpu.memory_space<vmem>>, %arg11: memref<1x128xf32, #tpu.memory_space<vmem>>, %arg12: memref<128x128xf32, #tpu.memory_space<vmem>>, %arg13: memref<1x128xf32, #tpu.memory_space<vmem>>, %arg14: memref<8x128xf32, #tpu.memory_space<vmem>>, %arg15: memref<8x12x256xf32, #tpu.memory_space<vmem>>) attributes {dimension_semantics = [#tpu.dimension_semantics<parallel>], iteration_bounds = array<i64: 2>, scalar_prefetch = 0 : i64, scratch_operands = 1 : i64, tpu.core_type = #tpu.core_type<tc>, window_params = [{transform_indices = @transform_0, window_bounds = array<i64: 8, 16, 16>}, {pipeline_mode = #tpu.pipeline_mode<synchronous>, transform_indices = @transform_1, window_bounds = array<i64: 48, 112>}, {pipeline_mode = #tpu.pipeline_mode<synchronous>, transform_indices = @transform_2, window_bounds = array<i64: 1, 112>}, {pipeline_mode = #tpu.pipeline_mode<synchronous>, transform_indices = @transform_3, window_bounds = array<i64: 336, 256>}, {pipeline_mode = #tpu.pipeline_mode<synchronous>, transform_indices = @transform_4, window_bounds = array<i64: 1, 256>}, {pipeline_mode = #tpu.pipeline_mode<synchronous>, transform_indices = @transform_5, window_bounds = array<i64: 12, 256, 128>}, {pipeline_mode = #tpu.pipeline_mode<synchronous>, transform_indices = @transform_6, window_bounds = array<i64: 1, 128>}, {pipeline_mode = #tpu.pipeline_mode<synchronous>, transform_indices = @transform_7, window_bounds = array<i64: 128, 128>}, {pipeline_mode = #tpu.pipeline_mode<synchronous>, transform_indices = @transform_8, window_bounds = array<i64: 1, 128>}, {pipeline_mode = #tpu.pipeline_mode<synchronous>, transform_indices = @transform_9, window_bounds = array<i64: 128, 128>}, {pipeline_mode = #tpu.pipeline_mode<synchronous>, transform_indices = @transform_10, window_bounds = array<i64: 1, 128>}, {pipeline_mode = #tpu.pipeline_mode<synchronous>, transform_indices = @transform_11, window_bounds = array<i64: 128, 128>}, {pipeline_mode = #tpu.pipeline_mode<synchronous>, transform_indices = @transform_12, window_bounds = array<i64: 1, 128>}, {transform_indices = @transform_13, window_bounds = array<i64: 8, 128>}]} {
    %c0 = arith.constant 0 : index
    %c0_0 = arith.constant 0 : index
    %0 = vector.load %arg3[%c0, %c0_0] : memref<1x112xf32, #tpu.memory_space<vmem>>, vector<1x112xf32>
    %c0_1 = arith.constant 0 : index
    %c0_2 = arith.constant 0 : index
    %1 = vector.load %arg5[%c0_1, %c0_2] : memref<1x256xf32, #tpu.memory_space<vmem>>, vector<1x256xf32>
    %c0_i32 = arith.constant 0 : i32
    %c8_i32 = arith.constant 8 : i32
    %2 = arith.addi %c0_i32, %c8_i32 : i32
    %c1_i32 = arith.constant 1 : i32
    scf.for %arg16 = %c0_i32 to %2 step %c1_i32  : i32 {
      %101 = arith.index_cast %arg16 : i32 to index
      %c0_99 = arith.constant 0 : index
      %c0_100 = arith.constant 0 : index
      %102 = vector.load %arg1[%101, %c0_99, %c0_100] : memref<8x16x16xf32, #tpu.memory_space<vmem>>, vector<1x16x16xf32>
      %103 = vector.shape_cast %102 : vector<1x16x16xf32> to vector<16x16xf32>
      %104 = vector.extract_strided_slice %103 {offsets = [0, 0], sizes = [14, 16], strides = [1, 1]} : vector<16x16xf32> to vector<14x16xf32>
      %105 = vector.extract_strided_slice %103 {offsets = [1, 0], sizes = [14, 16], strides = [1, 1]} : vector<16x16xf32> to vector<14x16xf32>
      %106 = vector.extract_strided_slice %103 {offsets = [2, 0], sizes = [14, 16], strides = [1, 1]} : vector<16x16xf32> to vector<14x16xf32>
      %107 = tpu.concatenate %104, %105, %106 in 1 : vector<14x16xf32>, vector<14x16xf32>, vector<14x16xf32> -> vector<14x48xf32>
      %c0_101 = arith.constant 0 : index
      %c0_102 = arith.constant 0 : index
      %108 = vector.load %arg2[%c0_101, %c0_102] : memref<48x112xf32, #tpu.memory_space<vmem>>, vector<48x112xf32>
      %cst_103 = arith.constant dense<0.000000e+00> : vector<14x112xf32>
      %109 = tpu.matmul %107, %108, %cst_103 {dimension_numbers = #tpu.dot_dimension_numbers<[1], [0], [0], [1], [0, 0, 1, 1], [], []>} : vector<14x48xf32>, vector<48x112xf32>, vector<14x112xf32> -> vector<14x112xf32>
      %110 = vector.broadcast %0 : vector<1x112xf32> to vector<14x112xf32>
      %111 = arith.addf %109, %110 : vector<14x112xf32>
      %cst_104 = arith.constant 0.000000e+00 : f32
      %112 = vector.broadcast %cst_104 : f32 to vector<14x112xf32>
      %113 = arith.maximumf %111, %112 : vector<14x112xf32>
      %114 = vector.extract_strided_slice %113 {offsets = [0, 0], sizes = [12, 112], strides = [1, 1]} : vector<14x112xf32> to vector<12x112xf32>
      %115 = vector.extract_strided_slice %113 {offsets = [1, 0], sizes = [12, 112], strides = [1, 1]} : vector<14x112xf32> to vector<12x112xf32>
      %116 = vector.extract_strided_slice %113 {offsets = [2, 0], sizes = [12, 112], strides = [1, 1]} : vector<14x112xf32> to vector<12x112xf32>
      %117 = tpu.concatenate %114, %115, %116 in 1 : vector<12x112xf32>, vector<12x112xf32>, vector<12x112xf32> -> vector<12x336xf32>
      %c0_105 = arith.constant 0 : index
      %c0_106 = arith.constant 0 : index
      %118 = vector.load %arg4[%c0_105, %c0_106] : memref<336x256xf32, #tpu.memory_space<vmem>>, vector<336x256xf32>
      %cst_107 = arith.constant dense<0.000000e+00> : vector<12x256xf32>
      %119 = tpu.matmul %117, %118, %cst_107 {dimension_numbers = #tpu.dot_dimension_numbers<[1], [0], [0], [1], [0, 0, 1, 1], [], []>} : vector<12x336xf32>, vector<336x256xf32>, vector<12x256xf32> -> vector<12x256xf32>
      %120 = vector.broadcast %1 : vector<1x256xf32> to vector<12x256xf32>
      %121 = arith.addf %119, %120 : vector<12x256xf32>
      %cst_108 = arith.constant 0.000000e+00 : f32
      %122 = vector.broadcast %cst_108 : f32 to vector<12x256xf32>
      %123 = arith.maximumf %121, %122 : vector<12x256xf32>
      %124 = arith.index_cast %arg16 : i32 to index
      %c0_109 = arith.constant 0 : index
      %c0_110 = arith.constant 0 : index
      %125 = vector.load %arg15[%124, %c0_109, %c0_110] : memref<8x12x256xf32, #tpu.memory_space<vmem>>, vector<1x12x256xf32>
      %126 = vector.shape_cast %125 : vector<1x12x256xf32> to vector<12x256xf32>
      %127 = vector.shape_cast %123 : vector<12x256xf32> to vector<1x12x256xf32>
      tpu.vector_store %arg15[%124, %c0_109, %c0_110], %127 {strides = array<i32>} : memref<8x12x256xf32, #tpu.memory_space<vmem>>, vector<1x12x256xf32>,
    }
    %c8_i32_3 = arith.constant 8 : i32
    %cst = arith.constant 0.000000e+00 : f32
    %3 = vector.broadcast %cst : f32 to vector<8x128xf32>
    %c0_4 = arith.constant 0 : index
    %c0_5 = arith.constant 0 : index
    %4 = vector.load %arg7[%c0_4, %c0_5] : memref<1x128xf32, #tpu.memory_space<vmem>>, vector<1x128xf32>
    %5 = vector.broadcast %4 : vector<1x128xf32> to vector<8x128xf32>
    %6 = arith.addf %3, %5 : vector<8x128xf32>
    %c0_6 = arith.constant 0 : index
    %c0_7 = arith.constant 0 : index
    %c0_8 = arith.constant 0 : index
    %7 = vector.load %arg15[%c0_6, %c0_7, %c0_8] : memref<8x12x256xf32, #tpu.memory_space<vmem>>, vector<8x1x256xf32>
    %8 = vector.shape_cast %7 : vector<8x1x256xf32> to vector<8x256xf32>
    %c0_9 = arith.constant 0 : index
    %c0_10 = arith.constant 0 : index
    %c0_11 = arith.constant 0 : index
    %9 = vector.load %arg6[%c0_9, %c0_10, %c0_11] : memref<12x256x128xf32, #tpu.memory_space<vmem>>, vector<1x256x128xf32>
    %10 = vector.shape_cast %9 : vector<1x256x128xf32> to vector<256x128xf32>
    %cst_12 = arith.constant dense<0.000000e+00> : vector<8x128xf32>
    %11 = tpu.matmul %8, %10, %cst_12 {dimension_numbers = #tpu.dot_dimension_numbers<[1], [0], [0], [1], [0, 0, 1, 1], [], []>} : vector<8x256xf32>, vector<256x128xf32>, vector<8x128xf32> -> vector<8x128xf32>
    %12 = arith.addf %6, %11 : vector<8x128xf32>
    %c0_13 = arith.constant 0 : index
    %c1 = arith.constant 1 : index
    %c0_14 = arith.constant 0 : index
    %13 = vector.load %arg15[%c0_13, %c1, %c0_14] : memref<8x12x256xf32, #tpu.memory_space<vmem>>, vector<8x1x256xf32>
    %14 = vector.shape_cast %13 : vector<8x1x256xf32> to vector<8x256xf32>
    %c1_15 = arith.constant 1 : index
    %c0_16 = arith.constant 0 : index
    %c0_17 = arith.constant 0 : index
    %15 = vector.load %arg6[%c1_15, %c0_16, %c0_17] : memref<12x256x128xf32, #tpu.memory_space<vmem>>, vector<1x256x128xf32>
    %16 = vector.shape_cast %15 : vector<1x256x128xf32> to vector<256x128xf32>
    %cst_18 = arith.constant dense<0.000000e+00> : vector<8x128xf32>
    %17 = tpu.matmul %14, %16, %cst_18 {dimension_numbers = #tpu.dot_dimension_numbers<[1], [0], [0], [1], [0, 0, 1, 1], [], []>} : vector<8x256xf32>, vector<256x128xf32>, vector<8x128xf32> -> vector<8x128xf32>
    %18 = arith.addf %12, %17 : vector<8x128xf32>
    %c0_19 = arith.constant 0 : index
    %c2 = arith.constant 2 : index
    %c0_20 = arith.constant 0 : index
    %19 = vector.load %arg15[%c0_19, %c2, %c0_20] : memref<8x12x256xf32, #tpu.memory_space<vmem>>, vector<8x1x256xf32>
    %20 = vector.shape_cast %19 : vector<8x1x256xf32> to vector<8x256xf32>
    %c2_21 = arith.constant 2 : index
    %c0_22 = arith.constant 0 : index
    %c0_23 = arith.constant 0 : index
    %21 = vector.load %arg6[%c2_21, %c0_22, %c0_23] : memref<12x256x128xf32, #tpu.memory_space<vmem>>, vector<1x256x128xf32>
    %22 = vector.shape_cast %21 : vector<1x256x128xf32> to vector<256x128xf32>
    %cst_24 = arith.constant dense<0.000000e+00> : vector<8x128xf32>
    %23 = tpu.matmul %20, %22, %cst_24 {dimension_numbers = #tpu.dot_dimension_numbers<[1], [0], [0], [1], [0, 0, 1, 1], [], []>} : vector<8x256xf32>, vector<256x128xf32>, vector<8x128xf32> -> vector<8x128xf32>
    %24 = arith.addf %18, %23 : vector<8x128xf32>
    %c0_25 = arith.constant 0 : index
    %c3 = arith.constant 3 : index
    %c0_26 = arith.constant 0 : index
    %25 = vector.load %arg15[%c0_25, %c3, %c0_26] : memref<8x12x256xf32, #tpu.memory_space<vmem>>, vector<8x1x256xf32>
    %26 = vector.shape_cast %25 : vector<8x1x256xf32> to vector<8x256xf32>
    %c3_27 = arith.constant 3 : index
    %c0_28 = arith.constant 0 : index
    %c0_29 = arith.constant 0 : index
    %27 = vector.load %arg6[%c3_27, %c0_28, %c0_29] : memref<12x256x128xf32, #tpu.memory_space<vmem>>, vector<1x256x128xf32>
    %28 = vector.shape_cast %27 : vector<1x256x128xf32> to vector<256x128xf32>
    %cst_30 = arith.constant dense<0.000000e+00> : vector<8x128xf32>
    %29 = tpu.matmul %26, %28, %cst_30 {dimension_numbers = #tpu.dot_dimension_numbers<[1], [0], [0], [1], [0, 0, 1, 1], [], []>} : vector<8x256xf32>, vector<256x128xf32>, vector<8x128xf32> -> vector<8x128xf32>
    %30 = arith.addf %24, %29 : vector<8x128xf32>
    %c0_31 = arith.constant 0 : index
    %c4 = arith.constant 4 : index
    %c0_32 = arith.constant 0 : index
    %31 = vector.load %arg15[%c0_31, %c4, %c0_32] : memref<8x12x256xf32, #tpu.memory_space<vmem>>, vector<8x1x256xf32>
    %32 = vector.shape_cast %31 : vector<8x1x256xf32> to vector<8x256xf32>
    %c4_33 = arith.constant 4 : index
    %c0_34 = arith.constant 0 : index
    %c0_35 = arith.constant 0 : index
    %33 = vector.load %arg6[%c4_33, %c0_34, %c0_35] : memref<12x256x128xf32, #tpu.memory_space<vmem>>, vector<1x256x128xf32>
    %34 = vector.shape_cast %33 : vector<1x256x128xf32> to vector<256x128xf32>
    %cst_36 = arith.constant dense<0.000000e+00> : vector<8x128xf32>
    %35 = tpu.matmul %32, %34, %cst_36 {dimension_numbers = #tpu.dot_dimension_numbers<[1], [0], [0], [1], [0, 0, 1, 1], [], []>} : vector<8x256xf32>, vector<256x128xf32>, vector<8x128xf32> -> vector<8x128xf32>
    %36 = arith.addf %30, %35 : vector<8x128xf32>
    %c0_37 = arith.constant 0 : index
    %c5 = arith.constant 5 : index
    %c0_38 = arith.constant 0 : index
    %37 = vector.load %arg15[%c0_37, %c5, %c0_38] : memref<8x12x256xf32, #tpu.memory_space<vmem>>, vector<8x1x256xf32>
    %38 = vector.shape_cast %37 : vector<8x1x256xf32> to vector<8x256xf32>
    %c5_39 = arith.constant 5 : index
    %c0_40 = arith.constant 0 : index
    %c0_41 = arith.constant 0 : index
    %39 = vector.load %arg6[%c5_39, %c0_40, %c0_41] : memref<12x256x128xf32, #tpu.memory_space<vmem>>, vector<1x256x128xf32>
    %40 = vector.shape_cast %39 : vector<1x256x128xf32> to vector<256x128xf32>
    %cst_42 = arith.constant dense<0.000000e+00> : vector<8x128xf32>
    %41 = tpu.matmul %38, %40, %cst_42 {dimension_numbers = #tpu.dot_dimension_numbers<[1], [0], [0], [1], [0, 0, 1, 1], [], []>} : vector<8x256xf32>, vector<256x128xf32>, vector<8x128xf32> -> vector<8x128xf32>
    %42 = arith.addf %36, %41 : vector<8x128xf32>
    %c0_43 = arith.constant 0 : index
    %c6 = arith.constant 6 : index
    %c0_44 = arith.constant 0 : index
    %43 = vector.load %arg15[%c0_43, %c6, %c0_44] : memref<8x12x256xf32, #tpu.memory_space<vmem>>, vector<8x1x256xf32>
    %44 = vector.shape_cast %43 : vector<8x1x256xf32> to vector<8x256xf32>
    %c6_45 = arith.constant 6 : index
    %c0_46 = arith.constant 0 : index
    %c0_47 = arith.constant 0 : index
    %45 = vector.load %arg6[%c6_45, %c0_46, %c0_47] : memref<12x256x128xf32, #tpu.memory_space<vmem>>, vector<1x256x128xf32>
    %46 = vector.shape_cast %45 : vector<1x256x128xf32> to vector<256x128xf32>
    %cst_48 = arith.constant dense<0.000000e+00> : vector<8x128xf32>
    %47 = tpu.matmul %44, %46, %cst_48 {dimension_numbers = #tpu.dot_dimension_numbers<[1], [0], [0], [1], [0, 0, 1, 1], [], []>} : vector<8x256xf32>, vector<256x128xf32>, vector<8x128xf32> -> vector<8x128xf32>
    %48 = arith.addf %42, %47 : vector<8x128xf32>
    %c0_49 = arith.constant 0 : index
    %c7 = arith.constant 7 : index
    %c0_50 = arith.constant 0 : index
    %49 = vector.load %arg15[%c0_49, %c7, %c0_50] : memref<8x12x256xf32, #tpu.memory_space<vmem>>, vector<8x1x256xf32>
    %50 = vector.shape_cast %49 : vector<8x1x256xf32> to vector<8x256xf32>
    %c7_51 = arith.constant 7 : index
    %c0_52 = arith.constant 0 : index
    %c0_53 = arith.constant 0 : index
    %51 = vector.load %arg6[%c7_51, %c0_52, %c0_53] : memref<12x256x128xf32, #tpu.memory_space<vmem>>, vector<1x256x128xf32>
    %52 = vector.shape_cast %51 : vector<1x256x128xf32> to vector<256x128xf32>
    %cst_54 = arith.constant dense<0.000000e+00> : vector<8x128xf32>
    %53 = tpu.matmul %50, %52, %cst_54 {dimension_numbers = #tpu.dot_dimension_numbers<[1], [0], [0], [1], [0, 0, 1, 1], [], []>} : vector<8x256xf32>, vector<256x128xf32>, vector<8x128xf32> -> vector<8x128xf32>
    %54 = arith.addf %48, %53 : vector<8x128xf32>
    %c0_55 = arith.constant 0 : index
    %c8 = arith.constant 8 : index
    %c0_56 = arith.constant 0 : index
    %55 = vector.load %arg15[%c0_55, %c8, %c0_56] : memref<8x12x256xf32, #tpu.memory_space<vmem>>, vector<8x1x256xf32>
    %56 = vector.shape_cast %55 : vector<8x1x256xf32> to vector<8x256xf32>
    %c8_57 = arith.constant 8 : index
    %c0_58 = arith.constant 0 : index
    %c0_59 = arith.constant 0 : index
    %57 = vector.load %arg6[%c8_57, %c0_58, %c0_59] : memref<12x256x128xf32, #tpu.memory_space<vmem>>, vector<1x256x128xf32>
    %58 = vector.shape_cast %57 : vector<1x256x128xf32> to vector<256x128xf32>
    %cst_60 = arith.constant dense<0.000000e+00> : vector<8x128xf32>
    %59 = tpu.matmul %56, %58, %cst_60 {dimension_numbers = #tpu.dot_dimension_numbers<[1], [0], [0], [1], [0, 0, 1, 1], [], []>} : vector<8x256xf32>, vector<256x128xf32>, vector<8x128xf32> -> vector<8x128xf32>
    %60 = arith.addf %54, %59 : vector<8x128xf32>
    %c0_61 = arith.constant 0 : index
    %c9 = arith.constant 9 : index
    %c0_62 = arith.constant 0 : index
    %61 = vector.load %arg15[%c0_61, %c9, %c0_62] : memref<8x12x256xf32, #tpu.memory_space<vmem>>, vector<8x1x256xf32>
    %62 = vector.shape_cast %61 : vector<8x1x256xf32> to vector<8x256xf32>
    %c9_63 = arith.constant 9 : index
    %c0_64 = arith.constant 0 : index
    %c0_65 = arith.constant 0 : index
    %63 = vector.load %arg6[%c9_63, %c0_64, %c0_65] : memref<12x256x128xf32, #tpu.memory_space<vmem>>, vector<1x256x128xf32>
    %64 = vector.shape_cast %63 : vector<1x256x128xf32> to vector<256x128xf32>
    %cst_66 = arith.constant dense<0.000000e+00> : vector<8x128xf32>
    %65 = tpu.matmul %62, %64, %cst_66 {dimension_numbers = #tpu.dot_dimension_numbers<[1], [0], [0], [1], [0, 0, 1, 1], [], []>} : vector<8x256xf32>, vector<256x128xf32>, vector<8x128xf32> -> vector<8x128xf32>
    %66 = arith.addf %60, %65 : vector<8x128xf32>
    %c0_67 = arith.constant 0 : index
    %c10 = arith.constant 10 : index
    %c0_68 = arith.constant 0 : index
    %67 = vector.load %arg15[%c0_67, %c10, %c0_68] : memref<8x12x256xf32, #tpu.memory_space<vmem>>, vector<8x1x256xf32>
    %68 = vector.shape_cast %67 : vector<8x1x256xf32> to vector<8x256xf32>
    %c10_69 = arith.constant 10 : index
    %c0_70 = arith.constant 0 : index
    %c0_71 = arith.constant 0 : index
    %69 = vector.load %arg6[%c10_69, %c0_70, %c0_71] : memref<12x256x128xf32, #tpu.memory_space<vmem>>, vector<1x256x128xf32>
    %70 = vector.shape_cast %69 : vector<1x256x128xf32> to vector<256x128xf32>
    %cst_72 = arith.constant dense<0.000000e+00> : vector<8x128xf32>
    %71 = tpu.matmul %68, %70, %cst_72 {dimension_numbers = #tpu.dot_dimension_numbers<[1], [0], [0], [1], [0, 0, 1, 1], [], []>} : vector<8x256xf32>, vector<256x128xf32>, vector<8x128xf32> -> vector<8x128xf32>
    %72 = arith.addf %66, %71 : vector<8x128xf32>
    %c0_73 = arith.constant 0 : index
    %c11 = arith.constant 11 : index
    %c0_74 = arith.constant 0 : index
    %73 = vector.load %arg15[%c0_73, %c11, %c0_74] : memref<8x12x256xf32, #tpu.memory_space<vmem>>, vector<8x1x256xf32>
    %74 = vector.shape_cast %73 : vector<8x1x256xf32> to vector<8x256xf32>
    %c11_75 = arith.constant 11 : index
    %c0_76 = arith.constant 0 : index
    %c0_77 = arith.constant 0 : index
    %75 = vector.load %arg6[%c11_75, %c0_76, %c0_77] : memref<12x256x128xf32, #tpu.memory_space<vmem>>, vector<1x256x128xf32>
    %76 = vector.shape_cast %75 : vector<1x256x128xf32> to vector<256x128xf32>
    %cst_78 = arith.constant dense<0.000000e+00> : vector<8x128xf32>
    %77 = tpu.matmul %74, %76, %cst_78 {dimension_numbers = #tpu.dot_dimension_numbers<[1], [0], [0], [1], [0, 0, 1, 1], [], []>} : vector<8x256xf32>, vector<256x128xf32>, vector<8x128xf32> -> vector<8x128xf32>
    %78 = arith.addf %72, %77 : vector<8x128xf32>
    %cst_79 = arith.constant 0.000000e+00 : f32
    %79 = vector.broadcast %cst_79 : f32 to vector<8x128xf32>
    %80 = arith.maximumf %78, %79 : vector<8x128xf32>
    %c0_80 = arith.constant 0 : index
    %c0_81 = arith.constant 0 : index
    %81 = vector.load %arg8[%c0_80, %c0_81] : memref<128x128xf32, #tpu.memory_space<vmem>>, vector<128x128xf32>
    %cst_82 = arith.constant dense<0.000000e+00> : vector<8x128xf32>
    %82 = tpu.matmul %80, %81, %cst_82 {dimension_numbers = #tpu.dot_dimension_numbers<[1], [0], [0], [1], [0, 0, 1, 1], [], []>} : vector<8x128xf32>, vector<128x128xf32>, vector<8x128xf32> -> vector<8x128xf32>
    %c0_83 = arith.constant 0 : index
    %c0_84 = arith.constant 0 : index
    %83 = vector.load %arg9[%c0_83, %c0_84] : memref<1x128xf32, #tpu.memory_space<vmem>>, vector<1x128xf32>
    %84 = vector.broadcast %83 : vector<1x128xf32> to vector<8x128xf32>
    %85 = arith.addf %82, %84 : vector<8x128xf32>
    %cst_85 = arith.constant 0.000000e+00 : f32
    %86 = vector.broadcast %cst_85 : f32 to vector<8x128xf32>
    %87 = arith.maximumf %85, %86 : vector<8x128xf32>
    %c0_86 = arith.constant 0 : index
    %c0_87 = arith.constant 0 : index
    %88 = vector.load %arg10[%c0_86, %c0_87] : memref<128x128xf32, #tpu.memory_space<vmem>>, vector<128x128xf32>
    %cst_88 = arith.constant dense<0.000000e+00> : vector<8x128xf32>
    %89 = tpu.matmul %87, %88, %cst_88 {dimension_numbers = #tpu.dot_dimension_numbers<[1], [0], [0], [1], [0, 0, 1, 1], [], []>} : vector<8x128xf32>, vector<128x128xf32>, vector<8x128xf32> -> vector<8x128xf32>
    %c0_89 = arith.constant 0 : index
    %c0_90 = arith.constant 0 : index
    %90 = vector.load %arg11[%c0_89, %c0_90] : memref<1x128xf32, #tpu.memory_space<vmem>>, vector<1x128xf32>
    %91 = vector.broadcast %90 : vector<1x128xf32> to vector<8x128xf32>
    %92 = arith.addf %89, %91 : vector<8x128xf32>
    %cst_91 = arith.constant 0.000000e+00 : f32
    %93 = vector.broadcast %cst_91 : f32 to vector<8x128xf32>
    %94 = arith.maximumf %92, %93 : vector<8x128xf32>
    %c0_92 = arith.constant 0 : index
    %c0_93 = arith.constant 0 : index
    %95 = vector.load %arg12[%c0_92, %c0_93] : memref<128x128xf32, #tpu.memory_space<vmem>>, vector<128x128xf32>
    %cst_94 = arith.constant dense<0.000000e+00> : vector<8x128xf32>
    %96 = tpu.matmul %94, %95, %cst_94 {dimension_numbers = #tpu.dot_dimension_numbers<[1], [0], [0], [1], [0, 0, 1, 1], [], []>} : vector<8x128xf32>, vector<128x128xf32>, vector<8x128xf32> -> vector<8x128xf32>
    %c0_95 = arith.constant 0 : index
    %c0_96 = arith.constant 0 : index
    %97 = vector.load %arg13[%c0_95, %c0_96] : memref<1x128xf32, #tpu.memory_space<vmem>>, vector<1x128xf32>
    %98 = vector.broadcast %97 : vector<1x128xf32> to vector<8x128xf32>
    %99 = arith.addf %96, %98 : vector<8x128xf32>
    %c0_97 = arith.constant 0 : index
    %c0_98 = arith.constant 0 : index
    %100 = vector.load %arg14[%c0_97, %c0_98] : memref<8x128xf32, #tpu.memory_space<vmem>>, vector<8x128xf32>
    tpu.vector_store %arg14[%c0_97, %c0_98], %99 {strides = array<i32>} : memref<8x128xf32, #tpu.memory_space<vmem>>, vector<8x128xf32>,
    return
  }
  func.func @transform_0(%arg0: i32) -> (i32, i32, i32) {
    %c0_i32 = arith.constant 0 : i32
    %c0_i32_0 = arith.constant 0 : i32
    %c0_i32_1 = arith.constant 0 : i32
    return %arg0, %c0_i32, %c0_i32_0 : i32, i32, i32
  }
  func.func @transform_1(%arg0: i32) -> (i32, i32) {
    %c0_i32 = arith.constant 0 : i32
    %c0_i32_0 = arith.constant 0 : i32
    %c0_i32_1 = arith.constant 0 : i32
    return %c0_i32, %c0_i32_0 : i32, i32
  }
  func.func @transform_2(%arg0: i32) -> (i32, i32) {
    %c0_i32 = arith.constant 0 : i32
    %c0_i32_0 = arith.constant 0 : i32
    %c0_i32_1 = arith.constant 0 : i32
    return %c0_i32, %c0_i32_0 : i32, i32
  }
  func.func @transform_3(%arg0: i32) -> (i32, i32) {
    %c0_i32 = arith.constant 0 : i32
    %c0_i32_0 = arith.constant 0 : i32
    %c0_i32_1 = arith.constant 0 : i32
    return %c0_i32, %c0_i32_0 : i32, i32
  }
  func.func @transform_4(%arg0: i32) -> (i32, i32) {
    %c0_i32 = arith.constant 0 : i32
    %c0_i32_0 = arith.constant 0 : i32
    %c0_i32_1 = arith.constant 0 : i32
    return %c0_i32, %c0_i32_0 : i32, i32
  }
  func.func @transform_5(%arg0: i32) -> (i32, i32, i32) {
    %c0_i32 = arith.constant 0 : i32
    %c0_i32_0 = arith.constant 0 : i32
    %c0_i32_1 = arith.constant 0 : i32
    %c0_i32_2 = arith.constant 0 : i32
    return %c0_i32, %c0_i32_0, %c0_i32_1 : i32, i32, i32
  }
  func.func @transform_6(%arg0: i32) -> (i32, i32) {
    %c0_i32 = arith.constant 0 : i32
    %c0_i32_0 = arith.constant 0 : i32
    %c0_i32_1 = arith.constant 0 : i32
    return %c0_i32, %c0_i32_0 : i32, i32
  }
  func.func @transform_7(%arg0: i32) -> (i32, i32) {
    %c0_i32 = arith.constant 0 : i32
    %c0_i32_0 = arith.constant 0 : i32
    %c0_i32_1 = arith.constant 0 : i32
    return %c0_i32, %c0_i32_0 : i32, i32
  }
  func.func @transform_8(%arg0: i32) -> (i32, i32) {
    %c0_i32 = arith.constant 0 : i32
    %c0_i32_0 = arith.constant 0 : i32
    %c0_i32_1 = arith.constant 0 : i32
    return %c0_i32, %c0_i32_0 : i32, i32
  }
  func.func @transform_9(%arg0: i32) -> (i32, i32) {
    %c0_i32 = arith.constant 0 : i32
    %c0_i32_0 = arith.constant 0 : i32
    %c0_i32_1 = arith.constant 0 : i32
    return %c0_i32, %c0_i32_0 : i32, i32
  }
  func.func @transform_10(%arg0: i32) -> (i32, i32) {
    %c0_i32 = arith.constant 0 : i32
    %c0_i32_0 = arith.constant 0 : i32
    %c0_i32_1 = arith.constant 0 : i32
    return %c0_i32, %c0_i32_0 : i32, i32
  }
  func.func @transform_11(%arg0: i32) -> (i32, i32) {
    %c0_i32 = arith.constant 0 : i32
    %c0_i32_0 = arith.constant 0 : i32
    %c0_i32_1 = arith.constant 0 : i32
    return %c0_i32, %c0_i32_0 : i32, i32
  }
  func.func @transform_12(%arg0: i32) -> (i32, i32) {
    %c0_i32 = arith.constant 0 : i32
    %c0_i32_0 = arith.constant 0 : i32
    %c0_i32_1 = arith.constant 0 : i32
    return %c0_i32, %c0_i32_0 : i32, i32
  }
  func.func @transform_13(%arg0: i32) -> (i32, i32) {
    %c0_i32 = arith.constant 0 : i32
    %c0_i32_0 = arith.constant 0 : i32
    return %arg0, %c0_i32 : i32, i32
  }
}

</mosaic_0001>

<llo_original>
// kernel: forward.1
$region0: #{forward.1}
  #allocation0 [shape = 'u32[]', space=smem, size = 0x4, offset = 0x4, fixed_abs, tag = 'smem constant byte address 0x4 - core index']
  #allocation1 [shape = 'u32[144,128]{1,0:T(1,128)}', space=vmem, size = 0x12000, scoped, tag = 'internal scratch']
  #allocation2 [shape = 'f32[8,12,256]{2,1,0:T(8,128)}', space=vmem, size = 0x20000, scoped, tag = 'scratch operand']
  %s0 = inlined_call_operand.hbm [shape: f32[16,16,16], index: 0, kind: input, shape index: {}]
  %s1 = inlined_call_operand.hbm [shape: f32[48,112], index: 1, kind: input, shape index: {}]
  %s2 = inlined_call_operand.hbm [shape: f32[1,112], index: 2, kind: input, shape index: {}]
  %s3 = inlined_call_operand.hbm [shape: f32[336,256], index: 3, kind: input, shape index: {}]
  %s4 = inlined_call_operand.hbm [shape: f32[1,256], index: 4, kind: input, shape index: {}]
  %s5 = inlined_call_operand.hbm [shape: f32[12,256,128], index: 5, kind: input, shape index: {}]
  %s6 = inlined_call_operand.hbm [shape: f32[1,128], index: 6, kind: input, shape index: {}]
  %s7 = inlined_call_operand.hbm [shape: f32[128,128], index: 7, kind: input, shape index: {}]
  %s8 = inlined_call_operand.hbm [shape: f32[1,128], index: 8, kind: input, shape index: {}]
  %s9 = inlined_call_operand.hbm [shape: f32[128,128], index: 9, kind: input, shape index: {}]
  %s10 = inlined_call_operand.hbm [shape: f32[1,128], index: 10, kind: input, shape index: {}]
  %s11 = inlined_call_operand.hbm [shape: f32[128,128], index: 11, kind: input, shape index: {}]
  %s12 = inlined_call_operand.hbm [shape: f32[1,128], index: 12, kind: input, shape index: {}]
  %s13 = inlined_call_operand.vmem [shape: f32[16,128], index: 13, kind: output, shape index: {}]
  %s14 = sld [smem:[#allocation0]]
  $region144: #{forward.1} parent=0
    _
  %s16 = ssub.s32 1, %s14
  %s17 = scalar_select 0, %s16, %s14
  $region1: #{forward.1} parent=0
    #allocation3 [shape = 'u8[131072]{0}', space=vmem, size = 0x20000, scoped, tag = 'input window, operand 0']
    #allocation4 [shape = 's32[2]{0}', space=sflag, size = 0x8, scoped, tag = 'scoped memory for forward.1']
    #allocation5 [shape = 'u8[24576]{0}', space=vmem, size = 0x6000, scoped, tag = 'input window, operand 1, single buffered']
    #allocation6 [shape = 's32[1]{0}', space=sflag, size = 0x4, scoped, tag = 'scoped memory for forward.1']
    #allocation7 [shape = 'u8[512]{0}', space=vmem, size = 0x400, scoped, tag = 'input window, operand 2, single buffered']
    #allocation8 [shape = 'u8[344064]{0}', space=vmem, size = 0x54000, scoped, tag = 'input window, operand 3, single buffered']
    #allocation9 [shape = 's32[1]{0}', space=sflag, size = 0x4, scoped, tag = 'scoped memory for forward.1']
    #allocation10 [shape = 'u8[1024]{0}', space=vmem, size = 0x400, scoped, tag = 'input window, operand 4, single buffered']
    #allocation11 [shape = 'u8[1572864]{0}', space=vmem, size = 0x180000, scoped, tag = 'input window, operand 5, single buffered']
    #allocation12 [shape = 's32[1]{0}', space=sflag, size = 0x4, scoped, tag = 'scoped memory for forward.1']
    #allocation13 [shape = 'u8[512]{0}', space=vmem, size = 0x400, scoped, tag = 'input window, operand 6, single buffered']
    #allocation14 [shape = 'u8[65536]{0}', space=vmem, size = 0x10000, scoped, tag = 'input window, operand 7, single buffered']
    #allocation15 [shape = 's32[1]{0}', space=sflag, size = 0x4, scoped, tag = 'scoped memory for forward.1']
    #allocation16 [shape = 'u8[512]{0}', space=vmem, size = 0x400, scoped, tag = 'input window, operand 8, single buffered']
    #allocation17 [shape = 'u8[65536]{0}', space=vmem, size = 0x10000, scoped, tag = 'input window, operand 9, single buffered']
    #allocation18 [shape = 's32[1]{0}', space=sflag, size = 0x4, scoped, tag = 'scoped memory for forward.1']
    #allocation19 [shape = 'u8[512]{0}', space=vmem, size = 0x400, scoped, tag = 'input window, operand 10, single buffered']
    #allocation20 [shape = 'u8[65536]{0}', space=vmem, size = 0x10000, scoped, tag = 'input window, operand 11, single buffered']
    #allocation21 [shape = 's32[1]{0}', space=sflag, size = 0x4, scoped, tag = 'scoped memory for forward.1']
    #allocation22 [shape = 'u8[512]{0}', space=vmem, size = 0x400, scoped, tag = 'input window, operand 12, single buffered']
    %18 = vsyncpa [#allocation4], 0
    %s19 = scalar_lea.sflag [#allocation4], 1
    %20 = vsyncpa %s19, 0
    %21 = vsyncpa [#allocation6], 0
    %22 = vsyncpa [#allocation9], 0
    %23 = vsyncpa [#allocation12], 0
    %24 = vsyncpa [#allocation15], 0
    %25 = vsyncpa [#allocation18], 0
    %26 = vsyncpa [#allocation21], 0
    loop: start=0, step=1, limit=4
    $region2: #{forward.1} parent=1 // loop_pre_header
      _
    $region3: #{forward.1} parent=1 // loop_header
      %s28 = sphi 0, %s32
      %p29 = scmp.ge.s32.totalorder %s28, 4
      %s38 = sphi 0, %s40
      %s41 = sphi 0, %s38
      %s42 = sphi 0, %s41
      %s58 = sphi 0, %s42
      %s62 = sphi 0, %s62
      %s64 = sphi 0, %s62
      %s65 = sphi 0, %s64
      %s79 = sphi 0, %s65
      %s83 = sphi 0, %s83
      %s85 = sphi 0, %s83
      %s86 = sphi 0, %s85
      %s100 = sphi 0, %s86
      %s104 = sphi 0, %s104
      %s106 = sphi 0, %s104
      %s107 = sphi 0, %s106
      %s121 = sphi 0, %s107
      %s125 = sphi 0, %s125
      %s127 = sphi 0, %s125
      %s128 = sphi 0, %s127
      %s142 = sphi 0, %s128
      %s146 = sphi 0, %s146
      %s148 = sphi 0, %s146
      %s149 = sphi 0, %s148
      %s163 = sphi 0, %s149
      %s167 = sphi 0, %s167
      %s169 = sphi 0, %s167
      %s170 = sphi 0, %s169
      %s184 = sphi 0, %s170
      %s188 = sphi 0, %s188
      %s190 = sphi 0, %s188
      %s191 = sphi 0, %s190
      %s205 = sphi 0, %s191
      %s209 = sphi 0, %s209
      %s211 = sphi 0, %s209
      %s212 = sphi 0, %s211
      %s226 = sphi 0, %s212
      %s230 = sphi 0, %s230
      %s232 = sphi 0, %s230
      %s233 = sphi 0, %s232
      %s247 = sphi 0, %s233
      %s251 = sphi 0, %s251
      %s253 = sphi 0, %s251
      %s254 = sphi 0, %s253
      %s268 = sphi 0, %s254
      %s272 = sphi 0, %s272
      %s274 = sphi 0, %s272
      %s275 = sphi 0, %s274
      %s289 = sphi 0, %s275
      %s293 = sphi 0, %s293
      %s295 = sphi 0, %s293
      %s296 = sphi 0, %s295
      %s310 = sphi 0, %s296
      %s316 = sphi 0, %s318
      %s319 = sphi 0, %s316
      %s320 = sphi 0, %s319
      %s336 = sphi 0, %s320
    $region4: #{forward.1} parent=1 // loop_header_branch
      %31 = sbr.rel (%p29) target = $region8
    $region5: #{forward.1} parent=1 // loop_body
      %s33 = ssub.s32 %s28, 1
      %s34 = ssub.s32 %s28, 2
      %s35 = sadd.s32 %s28, 1
      %s36 = ssub.s32 %s28, %s35
      %p37 = scmp.eq.s32.totalorder %s36, 0
      %s39 = sadd.s32 %s38, 1
      %s40 = scalar_select %p37, %s38, %s39
      %p43 = pneg %p37
      %p44 = scmp.eq.s32.totalorder %s28, 1
      %p45 = por %p43, %p44
      %p46 = scmp.ne.s32.totalorder %s38, %s41
      %p47 = scmp.eq.s32.totalorder %s28, 0
      %p48 = por %p46, %p47
      %p49 = scmp.ne.s32.totalorder %s38, %s41
      %p50 = scmp.eq.s32.totalorder %s33, 1
      %p51 = por %p49, %p50
      %p52 = scmp.ne.s32.totalorder %s41, %s42
      %p53 = scmp.eq.s32.totalorder %s33, 0
      %p54 = por %p52, %p53
      %p55 = scmp.ne.s32.totalorder %s41, %s42
      %p56 = scmp.eq.s32.totalorder %s34, 1
      %p57 = por %p55, %p56
      %p59 = scmp.ne.s32.totalorder %s42, %s58
      %p60 = scmp.eq.s32.totalorder %s34, 0
      %p61 = por %p59, %p60
      %s63 = sadd.s32 %s62, 1
      %p66 = scmp.eq.s32.totalorder %s28, 1
      %p67 = scmp.ne.s32.totalorder %s62, %s64
      %p68 = scmp.eq.s32.totalorder %s28, 0
      %p69 = por %p67, %p68
      %p70 = scmp.ne.s32.totalorder %s62, %s64
      %p71 = scmp.eq.s32.totalorder %s33, 1
      %p72 = por %p70, %p71
      %p73 = scmp.ne.s32.totalorder %s64, %s65
      %p74 = scmp.eq.s32.totalorder %s33, 0
      %p75 = por %p73, %p74
      %p76 = scmp.ne.s32.totalorder %s64, %s65
      %p77 = scmp.eq.s32.totalorder %s34, 1
      %p78 = por %p76, %p77
      %p80 = scmp.ne.s32.totalorder %s65, %s79
      %p81 = scmp.eq.s32.totalorder %s34, 0
      %p82 = por %p80, %p81
      %s84 = sadd.s32 %s83, 1
      %p87 = scmp.eq.s32.totalorder %s28, 1
      %p88 = scmp.ne.s32.totalorder %s83, %s85
      %p89 = scmp.eq.s32.totalorder %s28, 0
      %p90 = por %p88, %p89
      %p91 = scmp.ne.s32.totalorder %s83, %s85
      %p92 = scmp.eq.s32.totalorder %s33, 1
      %p93 = por %p91, %p92
      %p94 = scmp.ne.s32.totalorder %s85, %s86
      %p95 = scmp.eq.s32.totalorder %s33, 0
      %p96 = por %p94, %p95
      %p97 = scmp.ne.s32.totalorder %s85, %s86
      %p98 = scmp.eq.s32.totalorder %s34, 1
      %p99 = por %p97, %p98
      %p101 = scmp.ne.s32.totalorder %s86, %s100
      %p102 = scmp.eq.s32.totalorder %s34, 0
      %p103 = por %p101, %p102
      %s105 = sadd.s32 %s104, 1
      %p108 = scmp.eq.s32.totalorder %s28, 1
      %p109 = scmp.ne.s32.totalorder %s104, %s106
      %p110 = scmp.eq.s32.totalorder %s28, 0
      %p111 = por %p109, %p110
      %p112 = scmp.ne.s32.totalorder %s104, %s106
      %p113 = scmp.eq.s32.totalorder %s33, 1
      %p114 = por %p112, %p113
      %p115 = scmp.ne.s32.totalorder %s106, %s107
      %p116 = scmp.eq.s32.totalorder %s33, 0
      %p117 = por %p115, %p116
      %p118 = scmp.ne.s32.totalorder %s106, %s107
      %p119 = scmp.eq.s32.totalorder %s34, 1
      %p120 = por %p118, %p119
      %p122 = scmp.ne.s32.totalorder %s107, %s121
      %p123 = scmp.eq.s32.totalorder %s34, 0
      %p124 = por %p122, %p123
      %s126 = sadd.s32 %s125, 1
      %p129 = scmp.eq.s32.totalorder %s28, 1
      %p130 = scmp.ne.s32.totalorder %s125, %s127
      %p131 = scmp.eq.s32.totalorder %s28, 0
      %p132 = por %p130, %p131
      %p133 = scmp.ne.s32.totalorder %s125, %s127
      %p134 = scmp.eq.s32.totalorder %s33, 1
      %p135 = por %p133, %p134
      %p136 = scmp.ne.s32.totalorder %s127, %s128
      %p137 = scmp.eq.s32.totalorder %s33, 0
      %p138 = por %p136, %p137
      %p139 = scmp.ne.s32.totalorder %s127, %s128
      %p140 = scmp.eq.s32.totalorder %s34, 1
      %p141 = por %p139, %p140
      %p143 = scmp.ne.s32.totalorder %s128, %s142
      %p144 = scmp.eq.s32.totalorder %s34, 0
      %p145 = por %p143, %p144
      %s147 = sadd.s32 %s146, 1
      %p150 = scmp.eq.s32.totalorder %s28, 1
      %p151 = scmp.ne.s32.totalorder %s146, %s148
      %p152 = scmp.eq.s32.totalorder %s28, 0
      %p153 = por %p151, %p152
      %p154 = scmp.ne.s32.totalorder %s146, %s148
      %p155 = scmp.eq.s32.totalorder %s33, 1
      %p156 = por %p154, %p155
      %p157 = scmp.ne.s32.totalorder %s148, %s149
      %p158 = scmp.eq.s32.totalorder %s33, 0
      %p159 = por %p157, %p158
      %p160 = scmp.ne.s32.totalorder %s148, %s149
      %p161 = scmp.eq.s32.totalorder %s34, 1
      %p162 = por %p160, %p161
      %p164 = scmp.ne.s32.totalorder %s149, %s163
      %p165 = scmp.eq.s32.totalorder %s34, 0
      %p166 = por %p164, %p165
      %s168 = sadd.s32 %s167, 1
      %p171 = scmp.eq.s32.totalorder %s28, 1
      %p172 = scmp.ne.s32.totalorder %s167, %s169
      %p173 = scmp.eq.s32.totalorder %s28, 0
      %p174 = por %p172, %p173
      %p175 = scmp.ne.s32.totalorder %s167, %s169
      %p176 = scmp.eq.s32.totalorder %s33, 1
      %p177 = por %p175, %p176
      %p178 = scmp.ne.s32.totalorder %s169, %s170
      %p179 = scmp.eq.s32.totalorder %s33, 0
      %p180 = por %p178, %p179
      %p181 = scmp.ne.s32.totalorder %s169, %s170
      %p182 = scmp.eq.s32.totalorder %s34, 1
      %p183 = por %p181, %p182
      %p185 = scmp.ne.s32.totalorder %s170, %s184
      %p186 = scmp.eq.s32.totalorder %s34, 0
      %p187 = por %p185, %p186
      %s189 = sadd.s32 %s188, 1
      %p192 = scmp.eq.s32.totalorder %s28, 1
      %p193 = scmp.ne.s32.totalorder %s188, %s190
      %p194 = scmp.eq.s32.totalorder %s28, 0
      %p195 = por %p193, %p194
      %p196 = scmp.ne.s32.totalorder %s188, %s190
      %p197 = scmp.eq.s32.totalorder %s33, 1
      %p198 = por %p196, %p197
      %p199 = scmp.ne.s32.totalorder %s190, %s191
      %p200 = scmp.eq.s32.totalorder %s33, 0
      %p201 = por %p199, %p200
      %p202 = scmp.ne.s32.totalorder %s190, %s191
      %p203 = scmp.eq.s32.totalorder %s34, 1
      %p204 = por %p202, %p203
      %p206 = scmp.ne.s32.totalorder %s191, %s205
      %p207 = scmp.eq.s32.totalorder %s34, 0
      %p208 = por %p206, %p207
      %s210 = sadd.s32 %s209, 1
      %p213 = scmp.eq.s32.totalorder %s28, 1
      %p214 = scmp.ne.s32.totalorder %s209, %s211
      %p215 = scmp.eq.s32.totalorder %s28, 0
      %p216 = por %p214, %p215
      %p217 = scmp.ne.s32.totalorder %s209, %s211
      %p218 = scmp.eq.s32.totalorder %s33, 1
      %p219 = por %p217, %p218
      %p220 = scmp.ne.s32.totalorder %s211, %s212
      %p221 = scmp.eq.s32.totalorder %s33, 0
      %p222 = por %p220, %p221
      %p223 = scmp.ne.s32.totalorder %s211, %s212
      %p224 = scmp.eq.s32.totalorder %s34, 1
      %p225 = por %p223, %p224
      %p227 = scmp.ne.s32.totalorder %s212, %s226
      %p228 = scmp.eq.s32.totalorder %s34, 0
      %p229 = por %p227, %p228
      %s231 = sadd.s32 %s230, 1
      %p234 = scmp.eq.s32.totalorder %s28, 1
      %p235 = scmp.ne.s32.totalorder %s230, %s232
      %p236 = scmp.eq.s32.totalorder %s28, 0
      %p237 = por %p235, %p236
      %p238 = scmp.ne.s32.totalorder %s230, %s232
      %p239 = scmp.eq.s32.totalorder %s33, 1
      %p240 = por %p238, %p239
      %p241 = scmp.ne.s32.totalorder %s232, %s233
      %p242 = scmp.eq.s32.totalorder %s33, 0
      %p243 = por %p241, %p242
      %p244 = scmp.ne.s32.totalorder %s232, %s233
      %p245 = scmp.eq.s32.totalorder %s34, 1
      %p246 = por %p244, %p245
      %p248 = scmp.ne.s32.totalorder %s233, %s247
      %p249 = scmp.eq.s32.totalorder %s34, 0
      %p250 = por %p248, %p249
      %s252 = sadd.s32 %s251, 1
      %p255 = scmp.eq.s32.totalorder %s28, 1
      %p256 = scmp.ne.s32.totalorder %s251, %s253
      %p257 = scmp.eq.s32.totalorder %s28, 0
      %p258 = por %p256, %p257
      %p259 = scmp.ne.s32.totalorder %s251, %s253
      %p260 = scmp.eq.s32.totalorder %s33, 1
      %p261 = por %p259, %p260
      %p262 = scmp.ne.s32.totalorder %s253, %s254
      %p263 = scmp.eq.s32.totalorder %s33, 0
      %p264 = por %p262, %p263
      %p265 = scmp.ne.s32.totalorder %s253, %s254
      %p266 = scmp.eq.s32.totalorder %s34, 1
      %p267 = por %p265, %p266
      %p269 = scmp.ne.s32.totalorder %s254, %s268
      %p270 = scmp.eq.s32.totalorder %s34, 0
      %p271 = por %p269, %p270
      %s273 = sadd.s32 %s272, 1
      %p276 = scmp.eq.s32.totalorder %s28, 1
      %p277 = scmp.ne.s32.totalorder %s272, %s274
      %p278 = scmp.eq.s32.totalorder %s28, 0
      %p279 = por %p277, %p278
      %p280 = scmp.ne.s32.totalorder %s272, %s274
      %p281 = scmp.eq.s32.totalorder %s33, 1
      %p282 = por %p280, %p281
      %p283 = scmp.ne.s32.totalorder %s274, %s275
      %p284 = scmp.eq.s32.totalorder %s33, 0
      %p285 = por %p283, %p284
      %p286 = scmp.ne.s32.totalorder %s274, %s275
      %p287 = scmp.eq.s32.totalorder %s34, 1
      %p288 = por %p286, %p287
      %p290 = scmp.ne.s32.totalorder %s275, %s289
      %p291 = scmp.eq.s32.totalorder %s34, 0
      %p292 = por %p290, %p291
      %s294 = sadd.s32 %s293, 1
      %p297 = scmp.eq.s32.totalorder %s28, 1
      %p298 = scmp.ne.s32.totalorder %s293, %s295
      %p299 = scmp.eq.s32.totalorder %s28, 0
      %p300 = por %p298, %p299
      %p301 = scmp.ne.s32.totalorder %s293, %s295
      %p302 = scmp.eq.s32.totalorder %s33, 1
      %p303 = por %p301, %p302
      %p304 = scmp.ne.s32.totalorder %s295, %s296
      %p305 = scmp.eq.s32.totalorder %s33, 0
      %p306 = por %p304, %p305
      %p307 = scmp.ne.s32.totalorder %s295, %s296
      %p308 = scmp.eq.s32.totalorder %s34, 1
      %p309 = por %p307, %p308
      %p311 = scmp.ne.s32.totalorder %s296, %s310
      %p312 = scmp.eq.s32.totalorder %s34, 0
      %p313 = por %p311, %p312
      %s314 = ssub.s32 %s28, %s35
      %p315 = scmp.eq.s32.totalorder %s314, 0
      %s317 = sadd.s32 %s316, 1
      %s318 = scalar_select %p315, %s316, %s317
      %p321 = pneg %p315
      %p322 = scmp.eq.s32.totalorder %s28, 1
      %p323 = por %p321, %p322
      %p324 = scmp.ne.s32.totalorder %s316, %s319
      %p325 = scmp.eq.s32.totalorder %s28, 0
      %p326 = por %p324, %p325
      %p327 = scmp.ne.s32.totalorder %s316, %s319
      %p328 = scmp.eq.s32.totalorder %s33, 1
      %p329 = por %p327, %p328
      %p330 = scmp.ne.s32.totalorder %s319, %s320
      %p331 = scmp.eq.s32.totalorder %s33, 0
      %p332 = por %p330, %p331
      %p333 = scmp.ne.s32.totalorder %s319, %s320
      %p334 = scmp.eq.s32.totalorder %s34, 1
      %p335 = por %p333, %p334
      %p337 = scmp.ne.s32.totalorder %s320, %s336
      %p338 = scmp.eq.s32.totalorder %s34, 0
      %p339 = por %p337, %p338
      %p340 = scmp.le.s32.totalorder 1, %s28
      %p341 = scmp.lt.s32.totalorder %s28, 3
      %p342 = pnand %p340, %p341
      %p343 = pneg %p342
      // Predicated region
      $region9: #{forward.1} parent=5 // pred_check
        _
      $region10: #{forward.1} parent=5 // pred_check_branch
        %345 = sbr.rel (%p342) target = $region12
      $region11: #{forward.1} parent=5 // pred_region
        %s346 = ssub.s32 %s28, 1
        // Predicated region
        $region13: #{forward.1} parent=11 // pred_check
          %p347 = pneg %p75
        $region14: #{forward.1} parent=11 // pred_check_branch
          %349 = sbr.rel (%p347) target = $region16
        $region15: #{forward.1} parent=11 // pred_region
          %s351 = ssub.s32 768, 768
          %352 = vsyncadd [#allocation6], %s351
          %s353 = sshll.u32 [#allocation5], 4
          %s354 = int_to_ptr.vmem [resolvable:$true] %s353
          %359 = dma.hbm_to_vmem [thread:$0]  %s1, 768, %s354, [#allocation6], 128, 128, 8
        $region16: #{forward.1} parent=11 // pred_fallthru
          _
        // Predicated region
        $region17: #{forward.1} parent=11 // pred_check
          %p360 = pneg %p96
        $region18: #{forward.1} parent=11 // pred_check_branch
          %362 = sbr.rel (%p360) target = $region20
        $region19: #{forward.1} parent=11 // pred_region
          %s364 = ssub.s32 16, 16
          %365 = vsyncadd [#allocation6], %s364
          %s367 = sshll.u32 [#allocation7], 4
          %s368 = int_to_ptr.vmem [resolvable:$true] %s367
          %370 = dma.hbm_to_vmem [thread:$0]  %s2, 16, %s368, [#allocation6]
        $region20: #{forward.1} parent=11 // pred_fallthru
          _
        // Predicated region
        $region21: #{forward.1} parent=11 // pred_check
          %p371 = pneg %p117
        $region22: #{forward.1} parent=11 // pred_check_branch
          %373 = sbr.rel (%p371) target = $region24
        $region23: #{forward.1} parent=11 // pred_region
          %s375 = ssub.s32 10752, 10752
          %376 = vsyncadd [#allocation9], %s375
          %s377 = sshll.u32 [#allocation8], 4
          %s378 = int_to_ptr.vmem [resolvable:$true] %s377
          %383 = dma.hbm_to_vmem [thread:$0]  %s3, 10752, %s378, [#allocation9], 256, 256, 16
        $region24: #{forward.1} parent=11 // pred_fallthru
          _
        // Predicated region
        $region25: #{forward.1} parent=11 // pred_check
          %p384 = pneg %p138
        $region26: #{forward.1} parent=11 // pred_check_branch
          %386 = sbr.rel (%p384) target = $region28
        $region27: #{forward.1} parent=11 // pred_region
          %s388 = ssub.s32 32, 32
          %389 = vsyncadd [#allocation9], %s388
          %s391 = sshll.u32 [#allocation10], 4
          %s392 = int_to_ptr.vmem [resolvable:$true] %s391
          %394 = dma.hbm_to_vmem [thread:$0]  %s4, 32, %s392, [#allocation9]
        $region28: #{forward.1} parent=11 // pred_fallthru
          _
        // Predicated region
        $region29: #{forward.1} parent=11 // pred_check
          %p395 = pneg %p159
        $region30: #{forward.1} parent=11 // pred_check_branch
          %397 = sbr.rel (%p395) target = $region32
        $region31: #{forward.1} parent=11 // pred_region
          %s399 = ssub.s32 49152, 49152
          %400 = vsyncadd [#allocation12], %s399
          %s401 = sshll.u32 [#allocation11], 4
          %s402 = int_to_ptr.vmem [resolvable:$true] %s401
          %407 = dma.hbm_to_vmem [thread:$0]  %s5, 49152, %s402, [#allocation12], 128, 128, 8
        $region32: #{forward.1} parent=11 // pred_fallthru
          _
        // Predicated region
        $region33: #{forward.1} parent=11 // pred_check
          %p408 = pneg %p180
        $region34: #{forward.1} parent=11 // pred_check_branch
          %410 = sbr.rel (%p408) target = $region36
        $region35: #{forward.1} parent=11 // pred_region
          %s412 = ssub.s32 16, 16
          %413 = vsyncadd [#allocation12], %s412
          %s415 = sshll.u32 [#allocation13], 4
          %s416 = int_to_ptr.vmem [resolvable:$true] %s415
          %418 = dma.hbm_to_vmem [thread:$0]  %s6, 16, %s416, [#allocation12]
        $region36: #{forward.1} parent=11 // pred_fallthru
          _
        // Predicated region
        $region37: #{forward.1} parent=11 // pred_check
          %p419 = pneg %p201
        $region38: #{forward.1} parent=11 // pred_check_branch
          %421 = sbr.rel (%p419) target = $region40
        $region39: #{forward.1} parent=11 // pred_region
          %s423 = ssub.s32 2048, 2048
          %424 = vsyncadd [#allocation15], %s423
          %s425 = sshll.u32 [#allocation14], 4
          %s426 = int_to_ptr.vmem [resolvable:$true] %s425
          %431 = dma.hbm_to_vmem [thread:$0]  %s7, 2048, %s426, [#allocation15], 128, 128, 8
        $region40: #{forward.1} parent=11 // pred_fallthru
          _
        // Predicated region
        $region41: #{forward.1} parent=11 // pred_check
          %p432 = pneg %p222
        $region42: #{forward.1} parent=11 // pred_check_branch
          %434 = sbr.rel (%p432) target = $region44
        $region43: #{forward.1} parent=11 // pred_region
          %s436 = ssub.s32 16, 16
          %437 = vsyncadd [#allocation15], %s436
          %s439 = sshll.u32 [#allocation16], 4
          %s440 = int_to_ptr.vmem [resolvable:$true] %s439
          %442 = dma.hbm_to_vmem [thread:$0]  %s8, 16, %s440, [#allocation15]
        $region44: #{forward.1} parent=11 // pred_fallthru
          _
        // Predicated region
        $region45: #{forward.1} parent=11 // pred_check
          %p443 = pneg %p243
        $region46: #{forward.1} parent=11 // pred_check_branch
          %445 = sbr.rel (%p443) target = $region48
        $region47: #{forward.1} parent=11 // pred_region
          %s447 = ssub.s32 2048, 2048
          %448 = vsyncadd [#allocation18], %s447
          %s449 = sshll.u32 [#allocation17], 4
          %s450 = int_to_ptr.vmem [resolvable:$true] %s449
          %455 = dma.hbm_to_vmem [thread:$0]  %s9, 2048, %s450, [#allocation18], 128, 128, 8
        $region48: #{forward.1} parent=11 // pred_fallthru
          _
        // Predicated region
        $region49: #{forward.1} parent=11 // pred_check
          %p456 = pneg %p264
        $region50: #{forward.1} parent=11 // pred_check_branch
          %458 = sbr.rel (%p456) target = $region52
        $region51: #{forward.1} parent=11 // pred_region
          %s460 = ssub.s32 16, 16
          %461 = vsyncadd [#allocation18], %s460
          %s463 = sshll.u32 [#allocation19], 4
          %s464 = int_to_ptr.vmem [resolvable:$true] %s463
          %466 = dma.hbm_to_vmem [thread:$0]  %s10, 16, %s464, [#allocation18]
        $region52: #{forward.1} parent=11 // pred_fallthru
          _
        // Predicated region
        $region53: #{forward.1} parent=11 // pred_check
          %p467 = pneg %p285
        $region54: #{forward.1} parent=11 // pred_check_branch
          %469 = sbr.rel (%p467) target = $region56
        $region55: #{forward.1} parent=11 // pred_region
          %s471 = ssub.s32 2048, 2048
          %472 = vsyncadd [#allocation21], %s471
          %s473 = sshll.u32 [#allocation20], 4
          %s474 = int_to_ptr.vmem [resolvable:$true] %s473
          %479 = dma.hbm_to_vmem [thread:$0]  %s11, 2048, %s474, [#allocation21], 128, 128, 8
        $region56: #{forward.1} parent=11 // pred_fallthru
          _
        // Predicated region
        $region57: #{forward.1} parent=11 // pred_check
          %p480 = pneg %p306
        $region58: #{forward.1} parent=11 // pred_check_branch
          %482 = sbr.rel (%p480) target = $region60
        $region59: #{forward.1} parent=11 // pred_region
          %s484 = ssub.s32 16, 16
          %485 = vsyncadd [#allocation21], %s484
          %s487 = sshll.u32 [#allocation22], 4
          %s488 = int_to_ptr.vmem [resolvable:$true] %s487
          %490 = dma.hbm_to_vmem [thread:$0]  %s12, 16, %s488, [#allocation21]
        $region60: #{forward.1} parent=11 // pred_fallthru
          _
      $region12: #{forward.1} parent=5 // pred_fallthru
        _
      %p491 = scmp.lt.s32.totalorder %s28, 2
      // Predicated region
      $region61: #{forward.1} parent=5 // pred_check
        %p492 = pneg %p491
      $region62: #{forward.1} parent=5 // pred_check_branch
        %494 = sbr.rel (%p492) target = $region64
      $region63: #{forward.1} parent=5 // pred_region
        // Predicated region
        $region65: #{forward.1} parent=63 // pred_check
          %p495 = pneg %p48
        $region66: #{forward.1} parent=63 // pred_check_branch
          %497 = sbr.rel (%p495) target = $region68
        $region67: #{forward.1} parent=63 // pred_region
          %s498 = sand.u32 %s38, 1
          %s499 = scalar_lea.sflag [#allocation4], %s498
          %s500 = sand.u32 %s38, 1
          %s501 = smul.addr %s500, 128
          %s502 = scalar_lea.vmem [#allocation3], %s501
          %s503 = smul.u32 8, %s28
          %s505 = ssub.s32 2048, 2048
          %506 = vsyncadd %s499, %s505
          %s507 = smul.addr %s503, 2
          %s508 = smul.addr %s507, 128
          %s509 = scalar_lea.hbm %s0, %s508
          %s510 = sshll.u32 %s502, 4
          %s511 = int_to_ptr.vmem [resolvable:$true] %s510
          %516 = dma.hbm_to_vmem [thread:$0]  %s509, 2048, %s511, %s499, 128, 128, 8
        $region68: #{forward.1} parent=63 // pred_fallthru
          _
      $region64: #{forward.1} parent=5 // pred_fallthru
        _
      %p517 = scmp.le.s32.totalorder 1, %s28
      %p518 = scmp.lt.s32.totalorder %s28, 3
      %p519 = pnand %p517, %p518
      %p520 = pneg %p519
      // Predicated region
      $region69: #{forward.1} parent=5 // pred_check
        _
      $region70: #{forward.1} parent=5 // pred_check_branch
        %522 = sbr.rel (%p519) target = $region72
      $region71: #{forward.1} parent=5 // pred_region
        %s523 = ssub.s32 %s28, 1
        %s524 = sand.u32 %s41, 1
        %s525 = scalar_lea.sflag [#allocation4], %s524
        %s526 = sand.u32 %s41, 1
        %s527 = smul.addr %s526, 128
        %s528 = scalar_lea.vmem [#allocation3], %s527
        // Predicated region
        $region73: #{forward.1} parent=71 // pred_check
          %p529 = pneg %p54
        $region74: #{forward.1} parent=71 // pred_check_branch
          %531 = sbr.rel (%p529) target = $region76
        $region75: #{forward.1} parent=71 // pred_region
          %532 = dma.done %s525, 2048
        $region76: #{forward.1} parent=71 // pred_fallthru
          _
        // Predicated region
        $region77: #{forward.1} parent=71 // pred_check
          %p533 = pneg %p75
        $region78: #{forward.1} parent=71 // pred_check_branch
          %535 = sbr.rel (%p533) target = $region80
        $region79: #{forward.1} parent=71 // pred_region
          %536 = dma.done [#allocation6], 768
        $region80: #{forward.1} parent=71 // pred_fallthru
          _
        // Predicated region
        $region81: #{forward.1} parent=71 // pred_check
          %p537 = pneg %p96
        $region82: #{forward.1} parent=71 // pred_check_branch
          %539 = sbr.rel (%p537) target = $region84
        $region83: #{forward.1} parent=71 // pred_region
          %540 = dma.done [#allocation6], 16
        $region84: #{forward.1} parent=71 // pred_fallthru
          _
        // Predicated region
        $region85: #{forward.1} parent=71 // pred_check
          %p541 = pneg %p117
        $region86: #{forward.1} parent=71 // pred_check_branch
          %543 = sbr.rel (%p541) target = $region88
        $region87: #{forward.1} parent=71 // pred_region
          %544 = dma.done [#allocation9], 10752
        $region88: #{forward.1} parent=71 // pred_fallthru
          _
        // Predicated region
        $region89: #{forward.1} parent=71 // pred_check
          %p545 = pneg %p138
        $region90: #{forward.1} parent=71 // pred_check_branch
          %547 = sbr.rel (%p545) target = $region92
        $region91: #{forward.1} parent=71 // pred_region
          %548 = dma.done [#allocation9], 32
        $region92: #{forward.1} parent=71 // pred_fallthru
          _
        // Predicated region
        $region93: #{forward.1} parent=71 // pred_check
          %p549 = pneg %p159
        $region94: #{forward.1} parent=71 // pred_check_branch
          %551 = sbr.rel (%p549) target = $region96
        $region95: #{forward.1} parent=71 // pred_region
          %552 = dma.done [#allocation12], 49152
        $region96: #{forward.1} parent=71 // pred_fallthru
          _
        // Predicated region
        $region97: #{forward.1} parent=71 // pred_check
          %p553 = pneg %p180
        $region98: #{forward.1} parent=71 // pred_check_branch
          %555 = sbr.rel (%p553) target = $region100
        $region99: #{forward.1} parent=71 // pred_region
          %556 = dma.done [#allocation12], 16
        $region100: #{forward.1} parent=71 // pred_fallthru
          _
        // Predicated region
        $region101: #{forward.1} parent=71 // pred_check
          %p557 = pneg %p201
        $region102: #{forward.1} parent=71 // pred_check_branch
          %559 = sbr.rel (%p557) target = $region104
        $region103: #{forward.1} parent=71 // pred_region
          %560 = dma.done [#allocation15], 2048
        $region104: #{forward.1} parent=71 // pred_fallthru
          _
        // Predicated region
        $region105: #{forward.1} parent=71 // pred_check
          %p561 = pneg %p222
        $region106: #{forward.1} parent=71 // pred_check_branch
          %563 = sbr.rel (%p561) target = $region108
        $region107: #{forward.1} parent=71 // pred_region
          %564 = dma.done [#allocation15], 16
        $region108: #{forward.1} parent=71 // pred_fallthru
          _
        // Predicated region
        $region109: #{forward.1} parent=71 // pred_check
          %p565 = pneg %p243
        $region110: #{forward.1} parent=71 // pred_check_branch
          %567 = sbr.rel (%p565) target = $region112
        $region111: #{forward.1} parent=71 // pred_region
          %568 = dma.done [#allocation18], 2048
        $region112: #{forward.1} parent=71 // pred_fallthru
          _
        // Predicated region
        $region113: #{forward.1} parent=71 // pred_check
          %p569 = pneg %p264
        $region114: #{forward.1} parent=71 // pred_check_branch
          %571 = sbr.rel (%p569) target = $region116
        $region115: #{forward.1} parent=71 // pred_region
          %572 = dma.done [#allocation18], 16
        $region116: #{forward.1} parent=71 // pred_fallthru
          _
        // Predicated region
        $region117: #{forward.1} parent=71 // pred_check
          %p573 = pneg %p285
        $region118: #{forward.1} parent=71 // pred_check_branch
          %575 = sbr.rel (%p573) target = $region120
        $region119: #{forward.1} parent=71 // pred_region
          %576 = dma.done [#allocation21], 2048
        $region120: #{forward.1} parent=71 // pred_fallthru
          _
        // Predicated region
        $region121: #{forward.1} parent=71 // pred_check
          %p577 = pneg %p306
        $region122: #{forward.1} parent=71 // pred_check_branch
          %579 = sbr.rel (%p577) target = $region124
        $region123: #{forward.1} parent=71 // pred_region
          %580 = dma.done [#allocation21], 16
        $region124: #{forward.1} parent=71 // pred_fallthru
          _
        %s581 = sand.u32 %s41, 1
        %s582 = scalar_lea.sflag [#allocation4], %s581
        %s583 = sand.u32 %s41, 1
        %s584 = smul.addr %s583, 128
        %s585 = scalar_lea.vmem [#allocation3], %s584
        %p586 = pneg %p54
        %p587 = pneg %p51
        %p588 = pneg %p75
        %p589 = pneg %p72
        %p590 = pneg %p96
        %p591 = pneg %p93
        %p592 = pneg %p117
        %p593 = pneg %p114
        %p594 = pneg %p138
        %p595 = pneg %p135
        %p596 = pneg %p159
        %p597 = pneg %p156
        %p598 = pneg %p180
        %p599 = pneg %p177
        %p600 = pneg %p201
        %p601 = pneg %p198
        %p602 = pneg %p222
        %p603 = pneg %p219
        %p604 = pneg %p243
        %p605 = pneg %p240
        %p606 = pneg %p264
        %p607 = pneg %p261
        %p608 = pneg %p285
        %p609 = pneg %p282
        %p610 = pneg %p306
        %p611 = pneg %p303
        %p612 = pneg %p332
        %p613 = pneg %p329
        %p614 = scmp.lt.s32.totalorder %s33, 1
        %s615 = scalar_select %p614, %s33, 1
        %s616 = smul.addr %s615, 8
        %s617 = scalar_lea.vmem %s13, %s616
        %s618 = smul.u32 8, %s33
        %p619 = scmp.lt.s32.totalorder %s33, 1
        %s620 = scalar_select %p619, %s33, 1
        %s621 = smul.addr %s620, 8
        %s622 = scalar_lea.vmem %s13, %s621
        %v623 = vld [vmem:[#allocation7] sm:$0x1]
        %v624 = vld [vmem:[#allocation10] sm:$0x3]
        loop: start=0, step=1, limit=8
        $region125: #{forward.1} parent=71 // loop_pre_header
          _
        $region126: #{forward.1} parent=71 // loop_header
          %s626 = sphi 0, %s630
          %p627 = scmp.ge.s32.totalorder %s626, 8
        $region127: #{forward.1} parent=71 // loop_header_branch
          %629 = sbr.rel (%p627) target = $region131
        $region128: #{forward.1} parent=71 // loop_body
          %s631 = smul.u32 %s626, 16
          %s632 = scalar_lea.vmem %s528, %s631 [#allocation3]
          %v633 = vld [vmem:[%s632] sm:$0xff]
          %v634 = vld [vmem:[%s632 + $0x8] sm:$0xff]
          %vm637 = vcmask 1046528
          %v638 = vrot.slane %v633, 1
          %v639 = vrot.slane %v634, 1
          %v640 = vsel %vm637, %v638, %v639
          %641 = vrot.lane.b32.xlu0 %v640, 16
          %v642 = vpop.permute.xlu0 %641
          %643 = vrot.lane.b32.xlu0 %v639, 16
          %v644 = vpop.permute.xlu0 %643
          %vm647 = vcmask 1045504
          %v648 = vrot.slane %v633, 2
          %v649 = vrot.slane %v634, 2
          %v650 = vsel %vm647, %v648, %v649
          %651 = vrot.lane.b32.xlu0 %v650, 32
          %v652 = vpop.permute.xlu0 %651
          %653 = vrot.lane.b32.xlu0 %v649, 32
          %v654 = vpop.permute.xlu0 %653
          %vm657 = vcmask 130048
          %v658 = vsel %vm657, %v633, %v642
          %v659 = vsel %vm657, %v634, %v644
          %vm660 = vcmask 261120
          %v661 = vsel %vm660, %v658, %v652
          %v662 = vsel %vm660, %v659, %v654
          %v663 = vld [vmem:[#allocation5] sm:$0xff]
          %v664 = vld [vmem:[#allocation5 + $0x8] sm:$0xff]
          %v665 = vld [vmem:[#allocation5 + $0x10] sm:$0xff]
          %v666 = vld [vmem:[#allocation5 + $0x18] sm:$0xff]
          %v667 = vld [vmem:[#allocation5 + $0x20] sm:$0xff]
          %v668 = vld [vmem:[#allocation5 + $0x28] sm:$0xff]
          %v670 = vlaneseq
          %v671 = vshrl.u32 %v670, 7
          %v672 = vsub.s32 0, %v671
          %v673 = vrot.slane %v623, %v672
          %vm675 = vcmask 392192
          %v677 = vsel %vm675, %v661, 0
          %v680 = vsel %vm675, %v662, 0
          %682 = vmatprep.subr.mxu0 0.0
          %683 = vmatpush1.msra.mxu0 %v663
          %684 = vmatprep.subr.mxu0 0.0
          %685 = vmatpush1.msra.mxu0 %v664
          %686 = vmatprep.subr.mxu0 0.0
          %687 = vmatpush1.msra.mxu0 %v665
          %688 = vmatprep.subr.mxu0 0.0
          %689 = vmatpush1.msra.mxu0 %v666
          %690 = vmatprep.subr.mxu0 0.0
          %691 = vmatpush1.msra.mxu0 %v667
          %692 = vmatprep.subr.mxu0 0.0
          %693 = vmatpush1.msra.mxu0 %v668
          %694 = vmatprep.subr.mxu0 0.0
          %695 = vmatpush1.msra.mxu0 0.0
          %696 = vmatprep.subr.mxu0 0.0
          %697 = vmatpush1.msra.mxu0 0.0
          %698 = vmatprep.subr.mxu0 0.0
          %699 = vmatpush1.msra.mxu0 0.0
          %700 = vmatprep.subr.mxu0 0.0
          %701 = vmatpush1.msra.mxu0 0.0
          %702 = vmatprep.subr.mxu0 0.0
          %703 = vmatpush1.msra.mxu0 0.0
          %704 = vmatprep.subr.mxu0 0.0
          %705 = vmatpush1.msra.mxu0 0.0
          %706 = vmatprep.subr.mxu0 0.0
          %707 = vmatpush1.msra.mxu0 0.0
          %708 = vmatprep.subr.mxu0 0.0
          %709 = vmatpush1.msra.mxu0 0.0
          %710 = vmatprep.subr.mxu0 0.0
          %711 = vmatpush1.msra.mxu0 0.0
          %712 = vmatprep.subr.mxu0 0.0
          %713 = vmatpush1.msra.mxu0 0.0
          %714 = vmatprep.subr.mxu0 0.0
          %715 = vmatpush1.msra.mxu0 0.0
          %716 = vmatprep.subr.mxu0 0.0
          %717 = vmatpush1.msra.mxu0 0.0
          %718 = vmatprep.subr.mxu0 0.0
          %719 = vmatpush1.msra.mxu0 0.0
          %720 = vmatprep.subr.mxu0 0.0
          %721 = vmatpush1.msra.mxu0 0.0
          %722 = vmatprep.subr.mxu0 0.0
          %723 = vmatpush1.msra.mxu0 0.0
          %724 = vmatprep.subr.mxu0 0.0
          %725 = vmatpush1.msra.mxu0 0.0
          %726 = vmatprep.subr.mxu0 0.0
          %727 = vmatpush1.msra.mxu0 0.0
          %728 = vmatprep.subr.mxu0 0.0
          %729 = vmatpush1.msra.mxu0 0.0
          %730 = vmatprep.subr.mxu0 0.0
          %731 = vmatpush1.msra.mxu0 0.0
          %732 = vmatprep.subr.mxu0 0.0
          %733 = vmatpush1.msra.mxu0 0.0
          %734 = vmatprep.subr.mxu0 0.0
          %735 = vmatpush1.msra.mxu0 0.0
          %736 = vmatprep.subr.mxu0 0.0
          %737 = vmatpush1.msra.mxu0 0.0
          %738 = vmatprep.subr.mxu0 0.0
          %739 = vmatpush1.msra.mxu0 0.0
          %740 = vmatprep.subr.mxu0 0.0
          %741 = vmatpush1.msra.mxu0 0.0
          %742 = vmatprep.subr.mxu0 0.0
          %743 = vmatpush1.msra.mxu0 0.0
          %744 = vmatprep.subr.mxu0 0.0
          %745 = vmatpush1.msra.mxu0 0.0
          %746 = vmatprep.mubr.f32.mxu0 0.0
          %747 = vmatmul.mubr.f32.gmra.mrb[0].mxu0 %v677
          %v748 = vpop.f32.mrb[0].mxu0
          %v749 = vadd.f32 %v673, %v748
          %v750 = vpop.f32.mrb[0].mxu0
          %751 = vmatprep.mubr.f32.mxu0 0.0
          %752 = vmatmul.mubr.f32.gmra.mrb[0].mxu0 %v680
          %v753 = vpop.f32.mrb[0].mxu0
          %v754 = vadd.f32 %v673, %v753
          %v755 = vpop.f32.mrb[0].mxu0
          %756 = vdwg.mxu0
          %v757 = vmax.f32 %v749, 0.0
          %v758 = vmax.f32 %v754, 0.0
          %v761 = vrot.slane %v757, 1
          %v762 = vrot.slane %v758, 1
          %v763 = vsel %vm637, %v761, %v762
          %764 = vrot.lane.b32.xlu0 %v763, 112
          %v765 = vpop.permute.xlu0 %764
          %766 = vrot.lane.b32.xlu0 %v762, 112
          %v767 = vpop.permute.xlu0 %766
          %v770 = vrot.slane %v757, 2
          %v771 = vrot.slane %v758, 2
          %v772 = vsel %vm647, %v770, %v771
          %773 = vrot.lane.b32.xlu0 %v772, 96
          %v774 = vpop.permute.xlu0 %773
          %775 = vrot.lane.b32.xlu0 %v771, 96
          %v776 = vpop.permute.xlu0 %775
          %vm779 = vcmask 916480
          %v780 = vsel %vm779, %v757, %v765
          %v781 = vsel %vm779, %v758, %v767
          %vm782 = vcmask 785408
          %v783 = vsel %vm782, %v765, %v774
          %v784 = vsel %vm782, %v767, %v776
          %v785 = vld [vmem:[#allocation8] sm:$0xff]
          %v786 = vld [vmem:[#allocation8 + $0x8] sm:$0xff]
          %v787 = vld [vmem:[#allocation8 + $0x10] sm:$0xff]
          %v788 = vld [vmem:[#allocation8 + $0x18] sm:$0xff]
          %v789 = vld [vmem:[#allocation8 + $0x20] sm:$0xff]
          %v790 = vld [vmem:[#allocation8 + $0x28] sm:$0xff]
          %v791 = vld [vmem:[#allocation8 + $0x30] sm:$0xff]
          %v792 = vld [vmem:[#allocation8 + $0x38] sm:$0xff]
          %v793 = vld [vmem:[#allocation8 + $0x40] sm:$0xff]
          %v794 = vld [vmem:[#allocation8 + $0x48] sm:$0xff]
          %v795 = vld [vmem:[#allocation8 + $0x50] sm:$0xff]
          %v796 = vld [vmem:[#allocation8 + $0x58] sm:$0xff]
          %v797 = vld [vmem:[#allocation8 + $0x60] sm:$0xff]
          %v798 = vld [vmem:[#allocation8 + $0x68] sm:$0xff]
          %v799 = vld [vmem:[#allocation8 + $0x70] sm:$0xff]
          %v800 = vld [vmem:[#allocation8 + $0x78] sm:$0xff]
          %v801 = vld [vmem:[#allocation8 + $0x80] sm:$0xff]
          %v802 = vld [vmem:[#allocation8 + $0x88] sm:$0xff]
          %v803 = vld [vmem:[#allocation8 + $0x90] sm:$0xff]
          %v804 = vld [vmem:[#allocation8 + $0x98] sm:$0xff]
          %v805 = vld [vmem:[#allocation8 + $0xa0] sm:$0xff]
          %v806 = vld [vmem:[#allocation8 + $0xa8] sm:$0xff]
          %v807 = vld [vmem:[#allocation8 + $0xb0] sm:$0xff]
          %v808 = vld [vmem:[#allocation8 + $0xb8] sm:$0xff]
          %v809 = vld [vmem:[#allocation8 + $0xc0] sm:$0xff]
          %v810 = vld [vmem:[#allocation8 + $0xc8] sm:$0xff]
          %v811 = vld [vmem:[#allocation8 + $0xd0] sm:$0xff]
          %v812 = vld [vmem:[#allocation8 + $0xd8] sm:$0xff]
          %v813 = vld [vmem:[#allocation8 + $0xe0] sm:$0xff]
          %v814 = vld [vmem:[#allocation8 + $0xe8] sm:$0xff]
          %v815 = vld [vmem:[#allocation8 + $0xf0] sm:$0xff]
          %v816 = vld [vmem:[#allocation8 + $0xf8] sm:$0xff]
          %v817 = vld [vmem:[#allocation8 + $0x100] sm:$0xff]
          %v818 = vld [vmem:[#allocation8 + $0x108] sm:$0xff]
          %v819 = vld [vmem:[#allocation8 + $0x110] sm:$0xff]
          %v820 = vld [vmem:[#allocation8 + $0x118] sm:$0xff]
          %v821 = vld [vmem:[#allocation8 + $0x120] sm:$0xff]
          %v822 = vld [vmem:[#allocation8 + $0x128] sm:$0xff]
          %v823 = vld [vmem:[#allocation8 + $0x130] sm:$0xff]
          %v824 = vld [vmem:[#allocation8 + $0x138] sm:$0xff]
          %v825 = vld [vmem:[#allocation8 + $0x140] sm:$0xff]
          %v826 = vld [vmem:[#allocation8 + $0x148] sm:$0xff]
          %v827 = vld [vmem:[#allocation8 + $0x150] sm:$0xff]
          %v828 = vld [vmem:[#allocation8 + $0x158] sm:$0xff]
          %v829 = vld [vmem:[#allocation8 + $0x160] sm:$0xff]
          %v830 = vld [vmem:[#allocation8 + $0x168] sm:$0xff]
          %v831 = vld [vmem:[#allocation8 + $0x170] sm:$0xff]
          %v832 = vld [vmem:[#allocation8 + $0x178] sm:$0xff]
          %v833 = vld [vmem:[#allocation8 + $0x180] sm:$0xff]
          %v834 = vld [vmem:[#allocation8 + $0x188] sm:$0xff]
          %v835 = vld [vmem:[#allocation8 + $0x190] sm:$0xff]
          %v836 = vld [vmem:[#allocation8 + $0x198] sm:$0xff]
          %v837 = vld [vmem:[#allocation8 + $0x1a0] sm:$0xff]
          %v838 = vld [vmem:[#allocation8 + $0x1a8] sm:$0xff]
          %v839 = vld [vmem:[#allocation8 + $0x1b0] sm:$0xff]
          %v840 = vld [vmem:[#allocation8 + $0x1b8] sm:$0xff]
          %v841 = vld [vmem:[#allocation8 + $0x1c0] sm:$0xff]
          %v842 = vld [vmem:[#allocation8 + $0x1c8] sm:$0xff]
          %v843 = vld [vmem:[#allocation8 + $0x1d0] sm:$0xff]
          %v844 = vld [vmem:[#allocation8 + $0x1d8] sm:$0xff]
          %v845 = vld [vmem:[#allocation8 + $0x1e0] sm:$0xff]
          %v846 = vld [vmem:[#allocation8 + $0x1e8] sm:$0xff]
          %v847 = vld [vmem:[#allocation8 + $0x1f0] sm:$0xff]
          %v848 = vld [vmem:[#allocation8 + $0x1f8] sm:$0xff]
          %v849 = vld [vmem:[#allocation8 + $0x200] sm:$0xff]
          %v850 = vld [vmem:[#allocation8 + $0x208] sm:$0xff]
          %v851 = vld [vmem:[#allocation8 + $0x210] sm:$0xff]
          %v852 = vld [vmem:[#allocation8 + $0x218] sm:$0xff]
          %v853 = vld [vmem:[#allocation8 + $0x220] sm:$0xff]
          %v854 = vld [vmem:[#allocation8 + $0x228] sm:$0xff]
          %v855 = vld [vmem:[#allocation8 + $0x230] sm:$0xff]
          %v856 = vld [vmem:[#allocation8 + $0x238] sm:$0xff]
          %v857 = vld [vmem:[#allocation8 + $0x240] sm:$0xff]
          %v858 = vld [vmem:[#allocation8 + $0x248] sm:$0xff]
          %v859 = vld [vmem:[#allocation8 + $0x250] sm:$0xff]
          %v860 = vld [vmem:[#allocation8 + $0x258] sm:$0xff]
          %v861 = vld [vmem:[#allocation8 + $0x260] sm:$0xff]
          %v862 = vld [vmem:[#allocation8 + $0x268] sm:$0xff]
          %v863 = vld [vmem:[#allocation8 + $0x270] sm:$0xff]
          %v864 = vld [vmem:[#allocation8 + $0x278] sm:$0xff]
          %v865 = vld [vmem:[#allocation8 + $0x280] sm:$0xff]
          %v866 = vld [vmem:[#allocation8 + $0x288] sm:$0xff]
          %v867 = vld [vmem:[#allocation8 + $0x290] sm:$0xff]
          %v868 = vld [vmem:[#allocation8 + $0x298] sm:$0xff]
          %v870 = vlaneseq
          %v871 = vshrl.u32 %v870, 7
          %v872 = vsub.s32 0, %v871
          %v873 = vrot.slane %v624, %v872
          %v874 = vlaneseq
          %v875 = vshrl.u32 %v874, 7
          %v876 = vsub.s32 1, %v875
          %v877 = vrot.slane %v624, %v876
          %vm880 = vcmask 654336
          %v881 = vsel %vm880, %v774, 0
          %v883 = vsel %vm880, %v776, 0
          %885 = vmatprep.subr.mxu0 %v786
          %886 = vmatpush1.msra.mxu0 %v785
          %887 = vmatprep.subr.mxu0 %v788
          %888 = vmatpush1.msra.mxu0 %v787
          %889 = vmatprep.subr.mxu0 %v790
          %890 = vmatpush1.msra.mxu0 %v789
          %891 = vmatprep.subr.mxu0 %v792
          %892 = vmatpush1.msra.mxu0 %v791
          %893 = vmatprep.subr.mxu0 %v794
          %894 = vmatpush1.msra.mxu0 %v793
          %895 = vmatprep.subr.mxu0 %v796
          %896 = vmatpush1.msra.mxu0 %v795
          %897 = vmatprep.subr.mxu0 %v798
          %898 = vmatpush1.msra.mxu0 %v797
          %899 = vmatprep.subr.mxu0 %v800
          %900 = vmatpush1.msra.mxu0 %v799
          %901 = vmatprep.subr.mxu0 %v802
          %902 = vmatpush1.msra.mxu0 %v801
          %903 = vmatprep.subr.mxu0 %v804
          %904 = vmatpush1.msra.mxu0 %v803
          %905 = vmatprep.subr.mxu0 %v806
          %906 = vmatpush1.msra.mxu0 %v805
          %907 = vmatprep.subr.mxu0 %v808
          %908 = vmatpush1.msra.mxu0 %v807
          %909 = vmatprep.subr.mxu0 %v810
          %910 = vmatpush1.msra.mxu0 %v809
          %911 = vmatprep.subr.mxu0 %v812
          %912 = vmatpush1.msra.mxu0 %v811
          %913 = vmatprep.subr.mxu0 %v814
          %914 = vmatpush1.msra.mxu0 %v813
          %915 = vmatprep.subr.mxu0 %v816
          %916 = vmatpush1.msra.mxu0 %v815
          %917 = vmatprep.subr.mxu0 %v818
          %918 = vmatpush1.msra.mxu0 %v817
          %919 = vmatprep.subr.mxu0 %v820
          %920 = vmatpush1.msra.mxu0 %v819
          %921 = vmatprep.subr.mxu0 %v822
          %922 = vmatpush1.msra.mxu0 %v821
          %923 = vmatprep.subr.mxu0 %v824
          %924 = vmatpush1.msra.mxu0 %v823
          %925 = vmatprep.subr.mxu0 %v826
          %926 = vmatpush1.msra.mxu0 %v825
          %927 = vmatprep.subr.mxu0 %v828
          %928 = vmatpush1.msra.mxu0 %v827
          %929 = vmatprep.subr.mxu0 %v830
          %930 = vmatpush1.msra.mxu0 %v829
          %931 = vmatprep.subr.mxu0 %v832
          %932 = vmatpush1.msra.mxu0 %v831
          %933 = vmatprep.subr.mxu0 %v834
          %934 = vmatpush1.msra.mxu0 %v833
          %935 = vmatprep.subr.mxu0 %v836
          %936 = vmatpush1.msra.mxu0 %v835
          %937 = vmatprep.subr.mxu0 %v838
          %938 = vmatpush1.msra.mxu0 %v837
          %939 = vmatprep.subr.mxu0 %v840
          %940 = vmatpush1.msra.mxu0 %v839
          %941 = vmatprep.subr.mxu0 %v842
          %942 = vmatpush1.msra.mxu0 %v841
          %943 = vmatprep.subr.mxu0 %v844
          %944 = vmatpush1.msra.mxu0 %v843
          %945 = vmatprep.subr.mxu0 %v846
          %946 = vmatpush1.msra.mxu0 %v845
          %947 = vmatprep.subr.mxu0 %v848
          %948 = vmatpush1.msra.mxu0 %v847
          %949 = vmatprep.mubr.f32.mxu0 %v783
          %950 = vmatmul.mubr.f32.gmra.mrb[0].mxu0 %v780
          %v951 = vpop.f32.mrb[0].mxu0
          %v952 = vadd.f32 %v873, %v951
          %v953 = vpop.f32.mrb[0].mxu0
          %v954 = vadd.f32 %v877, %v953
          %955 = vmatprep.mubr.f32.mxu0 %v784
          %956 = vmatmul.mubr.f32.gmra.mrb[0].mxu0 %v781
          %v957 = vpop.f32.mrb[0].mxu0
          %v958 = vadd.f32 %v873, %v957
          %v959 = vpop.f32.mrb[0].mxu0
          %v960 = vadd.f32 %v877, %v959
          %961 = vdwg.mxu0
          %962 = vmatprep.subr.mxu0 %v850
          %963 = vmatpush1.msra.mxu0 %v849
          %964 = vmatprep.subr.mxu0 %v852
          %965 = vmatpush1.msra.mxu0 %v851
          %966 = vmatprep.subr.mxu0 %v854
          %967 = vmatpush1.msra.mxu0 %v853
          %968 = vmatprep.subr.mxu0 %v856
          %969 = vmatpush1.msra.mxu0 %v855
          %970 = vmatprep.subr.mxu0 %v858
          %971 = vmatpush1.msra.mxu0 %v857
          %972 = vmatprep.subr.mxu0 %v860
          %973 = vmatpush1.msra.mxu0 %v859
          %974 = vmatprep.subr.mxu0 %v862
          %975 = vmatpush1.msra.mxu0 %v861
          %976 = vmatprep.subr.mxu0 %v864
          %977 = vmatpush1.msra.mxu0 %v863
          %978 = vmatprep.subr.mxu0 %v866
          %979 = vmatpush1.msra.mxu0 %v865
          %980 = vmatprep.subr.mxu0 %v868
          %981 = vmatpush1.msra.mxu0 %v867
          %982 = vmatprep.subr.mxu0 0.0
          %983 = vmatpush1.msra.mxu0 0.0
          %984 = vmatprep.subr.mxu0 0.0
          %985 = vmatpush1.msra.mxu0 0.0
          %986 = vmatprep.subr.mxu0 0.0
          %987 = vmatpush1.msra.mxu0 0.0
          %988 = vmatprep.subr.mxu0 0.0
          %989 = vmatpush1.msra.mxu0 0.0
          %990 = vmatprep.subr.mxu0 0.0
          %991 = vmatpush1.msra.mxu0 0.0
          %992 = vmatprep.subr.mxu0 0.0
          %993 = vmatpush1.msra.mxu0 0.0
          %994 = vmatprep.subr.mxu0 0.0
          %995 = vmatpush1.msra.mxu0 0.0
          %996 = vmatprep.subr.mxu0 0.0
          %997 = vmatpush1.msra.mxu0 0.0
          %998 = vmatprep.subr.mxu0 0.0
          %999 = vmatpush1.msra.mxu0 0.0
          %1000 = vmatprep.subr.mxu0 0.0
          %1001 = vmatpush1.msra.mxu0 0.0
          %1002 = vmatprep.subr.mxu0 0.0
          %1003 = vmatpush1.msra.mxu0 0.0
          %1004 = vmatprep.subr.mxu0 0.0
          %1005 = vmatpush1.msra.mxu0 0.0
          %1006 = vmatprep.subr.mxu0 0.0
          %1007 = vmatpush1.msra.mxu0 0.0
          %1008 = vmatprep.subr.mxu0 0.0
          %1009 = vmatpush1.msra.mxu0 0.0
          %1010 = vmatprep.subr.mxu0 0.0
          %1011 = vmatpush1.msra.mxu0 0.0
          %1012 = vmatprep.subr.mxu0 0.0
          %1013 = vmatpush1.msra.mxu0 0.0
          %1014 = vmatprep.subr.mxu0 0.0
          %1015 = vmatpush1.msra.mxu0 0.0
          %1016 = vmatprep.subr.mxu0 0.0
          %1017 = vmatpush1.msra.mxu0 0.0
          %1018 = vmatprep.subr.mxu0 0.0
          %1019 = vmatpush1.msra.mxu0 0.0
          %1020 = vmatprep.subr.mxu0 0.0
          %1021 = vmatpush1.msra.mxu0 0.0
          %1022 = vmatprep.subr.mxu0 0.0
          %1023 = vmatpush1.msra.mxu0 0.0
          %1024 = vmatprep.subr.mxu0 0.0
          %1025 = vmatpush1.msra.mxu0 0.0
          %1026 = vmatprep.mubr.f32.mxu0 0.0
          %1027 = vmatmul.mubr.f32.gmra.mrb[0].mxu0 %v881
          %v1028 = vpop.f32.mrb[0].mxu0
          %v1029 = vadd.f32 %v952, %v1028
          %v1030 = vpop.f32.mrb[0].mxu0
          %v1031 = vadd.f32 %v954, %v1030
          %1032 = vmatprep.mubr.f32.mxu0 0.0
          %1033 = vmatmul.mubr.f32.gmra.mrb[0].mxu0 %v883
          %v1034 = vpop.f32.mrb[0].mxu0
          %v1035 = vadd.f32 %v958, %v1034
          %v1036 = vpop.f32.mrb[0].mxu0
          %v1037 = vadd.f32 %v960, %v1036
          %1038 = vdwg.mxu0
          %v1039 = vmax.f32 %v1029, 0.0
          %v1040 = vmax.f32 %v1031, 0.0
          %v1041 = vmax.f32 %v1035, 0.0
          %v1042 = vmax.f32 %v1037, 0.0
          %s1043 = smul.u32 %s626, 4
          %s1044 = smul.addr %s1043, 8
          %s1045 = scalar_lea.vmem [#allocation2], %s1044
          %1046 = vst [vmem:[%s1045] sm:$0xff] %v1039
          %1047 = vst [vmem:[%s1045 + $0x8] sm:$0xff] %v1040
          %1048 = vst [vmem:[%s1045 + $0x10] sm:$0xf] %v1041
          %1049 = vst [vmem:[%s1045 + $0x18] sm:$0xf] %v1042
        $region129: #{forward.1} parent=71 // loop_footer
          %s630 = sadd.s32 1, %s626
        $region130: #{forward.1} parent=71 // loop_footer_branch
          %625 = sbr.rel target = $region126
        $region131: #{forward.1} parent=71 // loop_exit
          _
        %v1050 = vld [vmem:[#allocation13] sm:$0x1]
        %v1052 = vlaneseq
        %v1053 = vshrl.u32 %v1052, 7
        %v1054 = vsub.s32 0, %v1053
        %v1055 = vrot.slane %v1050, %v1054
        %v1057 = vadd.f32 %v1055, 0.0
        %v1058 = vld [vmem:[#allocation2] ss:$8 sm:$0x3]
        %s1059 = scalar_lea.vmem [#allocation2], 32
        %v1060 = vld [vmem:[%s1059] ss:$8 sm:$0x3]
        %s1061 = scalar_lea.vmem [#allocation2], 64
        %v1062 = vld [vmem:[%s1061] ss:$8 sm:$0x3]
        %s1063 = scalar_lea.vmem [#allocation2], 96
        %v1064 = vld [vmem:[%s1063] ss:$8 sm:$0x3]
        %s1065 = scalar_lea.vmem [#allocation2], 128
        %v1066 = vld [vmem:[%s1065] ss:$8 sm:$0x3]
        %s1067 = scalar_lea.vmem [#allocation2], 160
        %v1068 = vld [vmem:[%s1067] ss:$8 sm:$0x3]
        %s1069 = scalar_lea.vmem [#allocation2], 192
        %v1070 = vld [vmem:[%s1069] ss:$8 sm:$0x3]
        %s1071 = scalar_lea.vmem [#allocation2], 224
        %v1072 = vld [vmem:[%s1071] ss:$8 sm:$0x3]
        %v1073 = vld [vmem:[#allocation11] sm:$0xff]
        %v1074 = vld [vmem:[#allocation11 + $0x8] sm:$0xff]
        %v1075 = vld [vmem:[#allocation11 + $0x10] sm:$0xff]
        %v1076 = vld [vmem:[#allocation11 + $0x18] sm:$0xff]
        %v1077 = vld [vmem:[#allocation11 + $0x20] sm:$0xff]
        %v1078 = vld [vmem:[#allocation11 + $0x28] sm:$0xff]
        %v1079 = vld [vmem:[#allocation11 + $0x30] sm:$0xff]
        %v1080 = vld [vmem:[#allocation11 + $0x38] sm:$0xff]
        %v1081 = vld [vmem:[#allocation11 + $0x40] sm:$0xff]
        %v1082 = vld [vmem:[#allocation11 + $0x48] sm:$0xff]
        %v1083 = vld [vmem:[#allocation11 + $0x50] sm:$0xff]
        %v1084 = vld [vmem:[#allocation11 + $0x58] sm:$0xff]
        %v1085 = vld [vmem:[#allocation11 + $0x60] sm:$0xff]
        %v1086 = vld [vmem:[#allocation11 + $0x68] sm:$0xff]
        %v1087 = vld [vmem:[#allocation11 + $0x70] sm:$0xff]
        %v1088 = vld [vmem:[#allocation11 + $0x78] sm:$0xff]
        %v1089 = vld [vmem:[#allocation11 + $0x80] sm:$0xff]
        %v1090 = vld [vmem:[#allocation11 + $0x88] sm:$0xff]
        %v1091 = vld [vmem:[#allocation11 + $0x90] sm:$0xff]
        %v1092 = vld [vmem:[#allocation11 + $0x98] sm:$0xff]
        %v1093 = vld [vmem:[#allocation11 + $0xa0] sm:$0xff]
        %v1094 = vld [vmem:[#allocation11 + $0xa8] sm:$0xff]
        %v1095 = vld [vmem:[#allocation11 + $0xb0] sm:$0xff]
        %v1096 = vld [vmem:[#allocation11 + $0xb8] sm:$0xff]
        %v1097 = vld [vmem:[#allocation11 + $0xc0] sm:$0xff]
        %v1098 = vld [vmem:[#allocation11 + $0xc8] sm:$0xff]
        %v1099 = vld [vmem:[#allocation11 + $0xd0] sm:$0xff]
        %v1100 = vld [vmem:[#allocation11 + $0xd8] sm:$0xff]
        %v1101 = vld [vmem:[#allocation11 + $0xe0] sm:$0xff]
        %v1102 = vld [vmem:[#allocation11 + $0xe8] sm:$0xff]
        %v1103 = vld [vmem:[#allocation11 + $0xf0] sm:$0xff]
        %v1104 = vld [vmem:[#allocation11 + $0xf8] sm:$0xff]
        %v1113 = vcombine.low %v1058, %v1060
        %v1114 = vcombine.low %v1062, %v1064
        %v1115 = vcombine.low %v1066, %v1068
        %v1116 = vcombine.low %v1070, %v1072
        %v1118 = vunpack.c.l.s4 1966171168
        %v1119 = vunpack.c.0.s8 %v1118
        %v1120 = vlaneseq
        %v1121 = vshrl.u32 %v1120, 7
        %v1122 = vsub.s32 %v1119, %v1121
        %v1123 = vrot.slane %v1113, %v1122
        %v1125 = vunpack.c.l.s4 1966171168
        %v1126 = vunpack.c.0.s8 %v1125
        %v1127 = vlaneseq
        %v1128 = vshrl.u32 %v1127, 7
        %v1129 = vsub.s32 %v1126, %v1128
        %v1130 = vrot.slane %v1114, %v1129
        %v1132 = vunpack.c.l.s4 1966171168
        %v1133 = vunpack.c.0.s8 %v1132
        %v1134 = vlaneseq
        %v1135 = vshrl.u32 %v1134, 7
        %v1136 = vsub.s32 %v1133, %v1135
        %v1137 = vrot.slane %v1115, %v1136
        %v1139 = vunpack.c.l.s4 1966171168
        %v1140 = vunpack.c.0.s8 %v1139
        %v1141 = vlaneseq
        %v1142 = vshrl.u32 %v1141, 7
        %v1143 = vsub.s32 %v1140, %v1142
        %v1144 = vrot.slane %v1116, %v1143
        %v1145 = vcombine.low %v1123, %v1130
        %v1146 = vcombine.high %v1123, %v1130
        %v1147 = vcombine.low %v1137, %v1144
        %v1148 = vcombine.high %v1137, %v1144
        %v1150 = vunpack.c.l.s4 1966171168
        %v1151 = vunpack.c.0.s8 %v1150
        %v1152 = vlaneseq
        %v1153 = vshrl.u32 %v1152, 7
        %v1154 = vsub.s32 %v1151, %v1153
        %v1155 = vrot.slane %v1145, %v1154
        %v1157 = vunpack.c.l.s4 1966171168
        %v1158 = vunpack.c.0.s8 %v1157
        %v1159 = vlaneseq
        %v1160 = vshrl.u32 %v1159, 7
        %v1161 = vsub.s32 %v1158, %v1160
        %v1162 = vrot.slane %v1146, %v1161
        %v1164 = vunpack.c.l.s4 1966171168
        %v1165 = vunpack.c.0.s8 %v1164
        %v1166 = vlaneseq
        %v1167 = vshrl.u32 %v1166, 7
        %v1168 = vsub.s32 %v1165, %v1167
        %v1169 = vrot.slane %v1147, %v1168
        %v1171 = vunpack.c.l.s4 1966171168
        %v1172 = vunpack.c.0.s8 %v1171
        %v1173 = vlaneseq
        %v1174 = vshrl.u32 %v1173, 7
        %v1175 = vsub.s32 %v1172, %v1174
        %v1176 = vrot.slane %v1148, %v1175
        %v1177 = vcombine.low %v1155, %v1169
        %v1178 = vcombine.low %v1162, %v1176
        %1181 = vmatprep.subr.mxu0 0.0
        %1182 = vmatpush1.msra.mxu0 %v1073
        %1183 = vmatprep.subr.mxu0 0.0
        %1184 = vmatpush1.msra.mxu0 %v1074
        %1185 = vmatprep.subr.mxu0 0.0
        %1186 = vmatpush1.msra.mxu0 %v1075
        %1187 = vmatprep.subr.mxu0 0.0
        %1188 = vmatpush1.msra.mxu0 %v1076
        %1189 = vmatprep.subr.mxu0 0.0
        %1190 = vmatpush1.msra.mxu0 %v1077
        %1191 = vmatprep.subr.mxu0 0.0
        %1192 = vmatpush1.msra.mxu0 %v1078
        %1193 = vmatprep.subr.mxu0 0.0
        %1194 = vmatpush1.msra.mxu0 %v1079
        %1195 = vmatprep.subr.mxu0 0.0
        %1196 = vmatpush1.msra.mxu0 %v1080
        %1197 = vmatprep.subr.mxu0 0.0
        %1198 = vmatpush1.msra.mxu0 %v1081
        %1199 = vmatprep.subr.mxu0 0.0
        %1200 = vmatpush1.msra.mxu0 %v1082
        %1201 = vmatprep.subr.mxu0 0.0
        %1202 = vmatpush1.msra.mxu0 %v1083
        %1203 = vmatprep.subr.mxu0 0.0
        %1204 = vmatpush1.msra.mxu0 %v1084
        %1205 = vmatprep.subr.mxu0 0.0
        %1206 = vmatpush1.msra.mxu0 %v1085
        %1207 = vmatprep.subr.mxu0 0.0
        %1208 = vmatpush1.msra.mxu0 %v1086
        %1209 = vmatprep.subr.mxu0 0.0
        %1210 = vmatpush1.msra.mxu0 %v1087
        %1211 = vmatprep.subr.mxu0 0.0
        %1212 = vmatpush1.msra.mxu0 %v1088
        %1213 = vmatprep.subr.mxu0 0.0
        %1214 = vmatpush1.msra.mxu0 %v1089
        %1215 = vmatprep.subr.mxu0 0.0
        %1216 = vmatpush1.msra.mxu0 %v1090
        %1217 = vmatprep.subr.mxu0 0.0
        %1218 = vmatpush1.msra.mxu0 %v1091
        %1219 = vmatprep.subr.mxu0 0.0
        %1220 = vmatpush1.msra.mxu0 %v1092
        %1221 = vmatprep.subr.mxu0 0.0
        %1222 = vmatpush1.msra.mxu0 %v1093
        %1223 = vmatprep.subr.mxu0 0.0
        %1224 = vmatpush1.msra.mxu0 %v1094
        %1225 = vmatprep.subr.mxu0 0.0
        %1226 = vmatpush1.msra.mxu0 %v1095
        %1227 = vmatprep.subr.mxu0 0.0
        %1228 = vmatpush1.msra.mxu0 %v1096
        %1229 = vmatprep.subr.mxu0 0.0
        %1230 = vmatpush1.msra.mxu0 %v1097
        %1231 = vmatprep.subr.mxu0 0.0
        %1232 = vmatpush1.msra.mxu0 %v1098
        %1233 = vmatprep.subr.mxu0 0.0
        %1234 = vmatpush1.msra.mxu0 %v1099
        %1235 = vmatprep.subr.mxu0 0.0
        %1236 = vmatpush1.msra.mxu0 %v1100
        %1237 = vmatprep.subr.mxu0 0.0
        %1238 = vmatpush1.msra.mxu0 %v1101
        %1239 = vmatprep.subr.mxu0 0.0
        %1240 = vmatpush1.msra.mxu0 %v1102
        %1241 = vmatprep.subr.mxu0 0.0
        %1242 = vmatpush1.msra.mxu0 %v1103
        %1243 = vmatprep.subr.mxu0 0.0
        %1244 = vmatpush1.msra.mxu0 %v1104
        %1245 = vmatprep.mubr.f32.mxu0 %v1178
        %1246 = vmatmul.mubr.f32.gmra.mrb[0].mxu0 %v1177
        %v1247 = vpop.f32.mrb[0].mxu0
        %v1248 = vadd.f32 0.0, %v1247
        %v1249 = vpop.f32.mrb[0].mxu0
        %1250 = vdwg.mxu0
        %v1251 = vadd.f32 %v1057, %v1248
        %s1252 = scalar_lea.vmem [#allocation2], 1
        %v1253 = vld [vmem:[%s1252] ss:$8 sm:$0x3]
        %s1254 = scalar_lea.vmem [#allocation2], 33
        %v1255 = vld [vmem:[%s1254] ss:$8 sm:$0x3]
        %s1256 = scalar_lea.vmem [#allocation2], 65
        %v1257 = vld [vmem:[%s1256] ss:$8 sm:$0x3]
        %s1258 = scalar_lea.vmem [#allocation2], 97
        %v1259 = vld [vmem:[%s1258] ss:$8 sm:$0x3]
        %s1260 = scalar_lea.vmem [#allocation2], 129
        %v1261 = vld [vmem:[%s1260] ss:$8 sm:$0x3]
        %s1262 = scalar_lea.vmem [#allocation2], 161
        %v1263 = vld [vmem:[%s1262] ss:$8 sm:$0x3]
        %s1264 = scalar_lea.vmem [#allocation2], 193
        %v1265 = vld [vmem:[%s1264] ss:$8 sm:$0x3]
        %s1266 = scalar_lea.vmem [#allocation2], 225
        %v1267 = vld [vmem:[%s1266] ss:$8 sm:$0x3]
        %s1268 = scalar_lea.vmem [#allocation11], 256
        %v1269 = vld [vmem:[%s1268] sm:$0xff]
        %v1270 = vld [vmem:[%s1268 + $0x8] sm:$0xff]
        %v1271 = vld [vmem:[%s1268 + $0x10] sm:$0xff]
        %v1272 = vld [vmem:[%s1268 + $0x18] sm:$0xff]
        %v1273 = vld [vmem:[%s1268 + $0x20] sm:$0xff]
        %v1274 = vld [vmem:[%s1268 + $0x28] sm:$0xff]
        %v1275 = vld [vmem:[%s1268 + $0x30] sm:$0xff]
        %v1276 = vld [vmem:[%s1268 + $0x38] sm:$0xff]
        %v1277 = vld [vmem:[%s1268 + $0x40] sm:$0xff]
        %v1278 = vld [vmem:[%s1268 + $0x48] sm:$0xff]
        %v1279 = vld [vmem:[%s1268 + $0x50] sm:$0xff]
        %v1280 = vld [vmem:[%s1268 + $0x58] sm:$0xff]
        %v1281 = vld [vmem:[%s1268 + $0x60] sm:$0xff]
        %v1282 = vld [vmem:[%s1268 + $0x68] sm:$0xff]
        %v1283 = vld [vmem:[%s1268 + $0x70] sm:$0xff]
        %v1284 = vld [vmem:[%s1268 + $0x78] sm:$0xff]
        %v1285 = vld [vmem:[%s1268 + $0x80] sm:$0xff]
        %v1286 = vld [vmem:[%s1268 + $0x88] sm:$0xff]
        %v1287 = vld [vmem:[%s1268 + $0x90] sm:$0xff]
        %v1288 = vld [vmem:[%s1268 + $0x98] sm:$0xff]
        %v1289 = vld [vmem:[%s1268 + $0xa0] sm:$0xff]
        %v1290 = vld [vmem:[%s1268 + $0xa8] sm:$0xff]
        %v1291 = vld [vmem:[%s1268 + $0xb0] sm:$0xff]
        %v1292 = vld [vmem:[%s1268 + $0xb8] sm:$0xff]
        %v1293 = vld [vmem:[%s1268 + $0xc0] sm:$0xff]
        %v1294 = vld [vmem:[%s1268 + $0xc8] sm:$0xff]
        %v1295 = vld [vmem:[%s1268 + $0xd0] sm:$0xff]
        %v1296 = vld [vmem:[%s1268 + $0xd8] sm:$0xff]
        %v1297 = vld [vmem:[%s1268 + $0xe0] sm:$0xff]
        %v1298 = vld [vmem:[%s1268 + $0xe8] sm:$0xff]
        %v1299 = vld [vmem:[%s1268 + $0xf0] sm:$0xff]
        %v1300 = vld [vmem:[%s1268 + $0xf8] sm:$0xff]
        %v1309 = vcombine.low %v1253, %v1255
        %v1310 = vcombine.low %v1257, %v1259
        %v1311 = vcombine.low %v1261, %v1263
        %v1312 = vcombine.low %v1265, %v1267
        %v1314 = vunpack.c.l.s4 1966171168
        %v1315 = vunpack.c.0.s8 %v1314
        %v1316 = vlaneseq
        %v1317 = vshrl.u32 %v1316, 7
        %v1318 = vsub.s32 %v1315, %v1317
        %v1319 = vrot.slane %v1309, %v1318
        %v1321 = vunpack.c.l.s4 1966171168
        %v1322 = vunpack.c.0.s8 %v1321
        %v1323 = vlaneseq
        %v1324 = vshrl.u32 %v1323, 7
        %v1325 = vsub.s32 %v1322, %v1324
        %v1326 = vrot.slane %v1310, %v1325
        %v1328 = vunpack.c.l.s4 1966171168
        %v1329 = vunpack.c.0.s8 %v1328
        %v1330 = vlaneseq
        %v1331 = vshrl.u32 %v1330, 7
        %v1332 = vsub.s32 %v1329, %v1331
        %v1333 = vrot.slane %v1311, %v1332
        %v1335 = vunpack.c.l.s4 1966171168
        %v1336 = vunpack.c.0.s8 %v1335
        %v1337 = vlaneseq
        %v1338 = vshrl.u32 %v1337, 7
        %v1339 = vsub.s32 %v1336, %v1338
        %v1340 = vrot.slane %v1312, %v1339
        %v1341 = vcombine.low %v1319, %v1326
        %v1342 = vcombine.high %v1319, %v1326
        %v1343 = vcombine.low %v1333, %v1340
        %v1344 = vcombine.high %v1333, %v1340
        %v1346 = vunpack.c.l.s4 1966171168
        %v1347 = vunpack.c.0.s8 %v1346
        %v1348 = vlaneseq
        %v1349 = vshrl.u32 %v1348, 7
        %v1350 = vsub.s32 %v1347, %v1349
        %v1351 = vrot.slane %v1341, %v1350
        %v1353 = vunpack.c.l.s4 1966171168
        %v1354 = vunpack.c.0.s8 %v1353
        %v1355 = vlaneseq
        %v1356 = vshrl.u32 %v1355, 7
        %v1357 = vsub.s32 %v1354, %v1356
        %v1358 = vrot.slane %v1342, %v1357
        %v1360 = vunpack.c.l.s4 1966171168
        %v1361 = vunpack.c.0.s8 %v1360
        %v1362 = vlaneseq
        %v1363 = vshrl.u32 %v1362, 7
        %v1364 = vsub.s32 %v1361, %v1363
        %v1365 = vrot.slane %v1343, %v1364
        %v1367 = vunpack.c.l.s4 1966171168
        %v1368 = vunpack.c.0.s8 %v1367
        %v1369 = vlaneseq
        %v1370 = vshrl.u32 %v1369, 7
        %v1371 = vsub.s32 %v1368, %v1370
        %v1372 = vrot.slane %v1344, %v1371
        %v1373 = vcombine.low %v1351, %v1365
        %v1374 = vcombine.low %v1358, %v1372
        %1377 = vmatprep.subr.mxu0 0.0
        %1378 = vmatpush1.msra.mxu0 %v1269
        %1379 = vmatprep.subr.mxu0 0.0
        %1380 = vmatpush1.msra.mxu0 %v1270
        %1381 = vmatprep.subr.mxu0 0.0
        %1382 = vmatpush1.msra.mxu0 %v1271
        %1383 = vmatprep.subr.mxu0 0.0
        %1384 = vmatpush1.msra.mxu0 %v1272
        %1385 = vmatprep.subr.mxu0 0.0
        %1386 = vmatpush1.msra.mxu0 %v1273
        %1387 = vmatprep.subr.mxu0 0.0
        %1388 = vmatpush1.msra.mxu0 %v1274
        %1389 = vmatprep.subr.mxu0 0.0
        %1390 = vmatpush1.msra.mxu0 %v1275
        %1391 = vmatprep.subr.mxu0 0.0
        %1392 = vmatpush1.msra.mxu0 %v1276
        %1393 = vmatprep.subr.mxu0 0.0
        %1394 = vmatpush1.msra.mxu0 %v1277
        %1395 = vmatprep.subr.mxu0 0.0
        %1396 = vmatpush1.msra.mxu0 %v1278
        %1397 = vmatprep.subr.mxu0 0.0
        %1398 = vmatpush1.msra.mxu0 %v1279
        %1399 = vmatprep.subr.mxu0 0.0
        %1400 = vmatpush1.msra.mxu0 %v1280
        %1401 = vmatprep.subr.mxu0 0.0
        %1402 = vmatpush1.msra.mxu0 %v1281
        %1403 = vmatprep.subr.mxu0 0.0
        %1404 = vmatpush1.msra.mxu0 %v1282
        %1405 = vmatprep.subr.mxu0 0.0
        %1406 = vmatpush1.msra.mxu0 %v1283
        %1407 = vmatprep.subr.mxu0 0.0
        %1408 = vmatpush1.msra.mxu0 %v1284
        %1409 = vmatprep.subr.mxu0 0.0
        %1410 = vmatpush1.msra.mxu0 %v1285
        %1411 = vmatprep.subr.mxu0 0.0
        %1412 = vmatpush1.msra.mxu0 %v1286
        %1413 = vmatprep.subr.mxu0 0.0
        %1414 = vmatpush1.msra.mxu0 %v1287
        %1415 = vmatprep.subr.mxu0 0.0
        %1416 = vmatpush1.msra.mxu0 %v1288
        %1417 = vmatprep.subr.mxu0 0.0
        %1418 = vmatpush1.msra.mxu0 %v1289
        %1419 = vmatprep.subr.mxu0 0.0
        %1420 = vmatpush1.msra.mxu0 %v1290
        %1421 = vmatprep.subr.mxu0 0.0
        %1422 = vmatpush1.msra.mxu0 %v1291
        %1423 = vmatprep.subr.mxu0 0.0
        %1424 = vmatpush1.msra.mxu0 %v1292
        %1425 = vmatprep.subr.mxu0 0.0
        %1426 = vmatpush1.msra.mxu0 %v1293
        %1427 = vmatprep.subr.mxu0 0.0
        %1428 = vmatpush1.msra.mxu0 %v1294
        %1429 = vmatprep.subr.mxu0 0.0
        %1430 = vmatpush1.msra.mxu0 %v1295
        %1431 = vmatprep.subr.mxu0 0.0
        %1432 = vmatpush1.msra.mxu0 %v1296
        %1433 = vmatprep.subr.mxu0 0.0
        %1434 = vmatpush1.msra.mxu0 %v1297
        %1435 = vmatprep.subr.mxu0 0.0
        %1436 = vmatpush1.msra.mxu0 %v1298
        %1437 = vmatprep.subr.mxu0 0.0
        %1438 = vmatpush1.msra.mxu0 %v1299
        %1439 = vmatprep.subr.mxu0 0.0
        %1440 = vmatpush1.msra.mxu0 %v1300
        %1441 = vmatprep.mubr.f32.mxu0 %v1374
        %1442 = vmatmul.mubr.f32.gmra.mrb[0].mxu0 %v1373
        %v1443 = vpop.f32.mrb[0].mxu0
        %v1444 = vadd.f32 0.0, %v1443
        %v1445 = vpop.f32.mrb[0].mxu0
        %1446 = vdwg.mxu0
        %v1447 = vadd.f32 %v1251, %v1444
        %s1448 = scalar_lea.vmem [#allocation2], 2
        %v1449 = vld [vmem:[%s1448] ss:$8 sm:$0x3]
        %s1450 = scalar_lea.vmem [#allocation2], 34
        %v1451 = vld [vmem:[%s1450] ss:$8 sm:$0x3]
        %s1452 = scalar_lea.vmem [#allocation2], 66
        %v1453 = vld [vmem:[%s1452] ss:$8 sm:$0x3]
        %s1454 = scalar_lea.vmem [#allocation2], 98
        %v1455 = vld [vmem:[%s1454] ss:$8 sm:$0x3]
        %s1456 = scalar_lea.vmem [#allocation2], 130
        %v1457 = vld [vmem:[%s1456] ss:$8 sm:$0x3]
        %s1458 = scalar_lea.vmem [#allocation2], 162
        %v1459 = vld [vmem:[%s1458] ss:$8 sm:$0x3]
        %s1460 = scalar_lea.vmem [#allocation2], 194
        %v1461 = vld [vmem:[%s1460] ss:$8 sm:$0x3]
        %s1462 = scalar_lea.vmem [#allocation2], 226
        %v1463 = vld [vmem:[%s1462] ss:$8 sm:$0x3]
        %s1464 = scalar_lea.vmem [#allocation11], 512
        %v1465 = vld [vmem:[%s1464] sm:$0xff]
        %v1466 = vld [vmem:[%s1464 + $0x8] sm:$0xff]
        %v1467 = vld [vmem:[%s1464 + $0x10] sm:$0xff]
        %v1468 = vld [vmem:[%s1464 + $0x18] sm:$0xff]
        %v1469 = vld [vmem:[%s1464 + $0x20] sm:$0xff]
        %v1470 = vld [vmem:[%s1464 + $0x28] sm:$0xff]
        %v1471 = vld [vmem:[%s1464 + $0x30] sm:$0xff]
        %v1472 = vld [vmem:[%s1464 + $0x38] sm:$0xff]
        %v1473 = vld [vmem:[%s1464 + $0x40] sm:$0xff]
        %v1474 = vld [vmem:[%s1464 + $0x48] sm:$0xff]
        %v1475 = vld [vmem:[%s1464 + $0x50] sm:$0xff]
        %v1476 = vld [vmem:[%s1464 + $0x58] sm:$0xff]
        %v1477 = vld [vmem:[%s1464 + $0x60] sm:$0xff]
        %v1478 = vld [vmem:[%s1464 + $0x68] sm:$0xff]
        %v1479 = vld [vmem:[%s1464 + $0x70] sm:$0xff]
        %v1480 = vld [vmem:[%s1464 + $0x78] sm:$0xff]
        %v1481 = vld [vmem:[%s1464 + $0x80] sm:$0xff]
        %v1482 = vld [vmem:[%s1464 + $0x88] sm:$0xff]
        %v1483 = vld [vmem:[%s1464 + $0x90] sm:$0xff]
        %v1484 = vld [vmem:[%s1464 + $0x98] sm:$0xff]
        %v1485 = vld [vmem:[%s1464 + $0xa0] sm:$0xff]
        %v1486 = vld [vmem:[%s1464 + $0xa8] sm:$0xff]
        %v1487 = vld [vmem:[%s1464 + $0xb0] sm:$0xff]
        %v1488 = vld [vmem:[%s1464 + $0xb8] sm:$0xff]
        %v1489 = vld [vmem:[%s1464 + $0xc0] sm:$0xff]
        %v1490 = vld [vmem:[%s1464 + $0xc8] sm:$0xff]
        %v1491 = vld [vmem:[%s1464 + $0xd0] sm:$0xff]
        %v1492 = vld [vmem:[%s1464 + $0xd8] sm:$0xff]
        %v1493 = vld [vmem:[%s1464 + $0xe0] sm:$0xff]
        %v1494 = vld [vmem:[%s1464 + $0xe8] sm:$0xff]
        %v1495 = vld [vmem:[%s1464 + $0xf0] sm:$0xff]
        %v1496 = vld [vmem:[%s1464 + $0xf8] sm:$0xff]
        %v1505 = vcombine.low %v1449, %v1451
        %v1506 = vcombine.low %v1453, %v1455
        %v1507 = vcombine.low %v1457, %v1459
        %v1508 = vcombine.low %v1461, %v1463
        %v1510 = vunpack.c.l.s4 1966171168
        %v1511 = vunpack.c.0.s8 %v1510
        %v1512 = vlaneseq
        %v1513 = vshrl.u32 %v1512, 7
        %v1514 = vsub.s32 %v1511, %v1513
        %v1515 = vrot.slane %v1505, %v1514
        %v1517 = vunpack.c.l.s4 1966171168
        %v1518 = vunpack.c.0.s8 %v1517
        %v1519 = vlaneseq
        %v1520 = vshrl.u32 %v1519, 7
        %v1521 = vsub.s32 %v1518, %v1520
        %v1522 = vrot.slane %v1506, %v1521
        %v1524 = vunpack.c.l.s4 1966171168
        %v1525 = vunpack.c.0.s8 %v1524
        %v1526 = vlaneseq
        %v1527 = vshrl.u32 %v1526, 7
        %v1528 = vsub.s32 %v1525, %v1527
        %v1529 = vrot.slane %v1507, %v1528
        %v1531 = vunpack.c.l.s4 1966171168
        %v1532 = vunpack.c.0.s8 %v1531
        %v1533 = vlaneseq
        %v1534 = vshrl.u32 %v1533, 7
        %v1535 = vsub.s32 %v1532, %v1534
        %v1536 = vrot.slane %v1508, %v1535
        %v1537 = vcombine.low %v1515, %v1522
        %v1538 = vcombine.high %v1515, %v1522
        %v1539 = vcombine.low %v1529, %v1536
        %v1540 = vcombine.high %v1529, %v1536
        %v1542 = vunpack.c.l.s4 1966171168
        %v1543 = vunpack.c.0.s8 %v1542
        %v1544 = vlaneseq
        %v1545 = vshrl.u32 %v1544, 7
        %v1546 = vsub.s32 %v1543, %v1545
        %v1547 = vrot.slane %v1537, %v1546
        %v1549 = vunpack.c.l.s4 1966171168
        %v1550 = vunpack.c.0.s8 %v1549
        %v1551 = vlaneseq
        %v1552 = vshrl.u32 %v1551, 7
        %v1553 = vsub.s32 %v1550, %v1552
        %v1554 = vrot.slane %v1538, %v1553
        %v1556 = vunpack.c.l.s4 1966171168
        %v1557 = vunpack.c.0.s8 %v1556
        %v1558 = vlaneseq
        %v1559 = vshrl.u32 %v1558, 7
        %v1560 = vsub.s32 %v1557, %v1559
        %v1561 = vrot.slane %v1539, %v1560
        %v1563 = vunpack.c.l.s4 1966171168
        %v1564 = vunpack.c.0.s8 %v1563
        %v1565 = vlaneseq
        %v1566 = vshrl.u32 %v1565, 7
        %v1567 = vsub.s32 %v1564, %v1566
        %v1568 = vrot.slane %v1540, %v1567
        %v1569 = vcombine.low %v1547, %v1561
        %v1570 = vcombine.low %v1554, %v1568
        %1573 = vmatprep.subr.mxu0 0.0
        %1574 = vmatpush1.msra.mxu0 %v1465
        %1575 = vmatprep.subr.mxu0 0.0
        %1576 = vmatpush1.msra.mxu0 %v1466
        %1577 = vmatprep.subr.mxu0 0.0
        %1578 = vmatpush1.msra.mxu0 %v1467
        %1579 = vmatprep.subr.mxu0 0.0
        %1580 = vmatpush1.msra.mxu0 %v1468
        %1581 = vmatprep.subr.mxu0 0.0
        %1582 = vmatpush1.msra.mxu0 %v1469
        %1583 = vmatprep.subr.mxu0 0.0
        %1584 = vmatpush1.msra.mxu0 %v1470
        %1585 = vmatprep.subr.mxu0 0.0
        %1586 = vmatpush1.msra.mxu0 %v1471
        %1587 = vmatprep.subr.mxu0 0.0
        %1588 = vmatpush1.msra.mxu0 %v1472
        %1589 = vmatprep.subr.mxu0 0.0
        %1590 = vmatpush1.msra.mxu0 %v1473
        %1591 = vmatprep.subr.mxu0 0.0
        %1592 = vmatpush1.msra.mxu0 %v1474
        %1593 = vmatprep.subr.mxu0 0.0
        %1594 = vmatpush1.msra.mxu0 %v1475
        %1595 = vmatprep.subr.mxu0 0.0
        %1596 = vmatpush1.msra.mxu0 %v1476
        %1597 = vmatprep.subr.mxu0 0.0
        %1598 = vmatpush1.msra.mxu0 %v1477
        %1599 = vmatprep.subr.mxu0 0.0
        %1600 = vmatpush1.msra.mxu0 %v1478
        %1601 = vmatprep.subr.mxu0 0.0
        %1602 = vmatpush1.msra.mxu0 %v1479
        %1603 = vmatprep.subr.mxu0 0.0
        %1604 = vmatpush1.msra.mxu0 %v1480
        %1605 = vmatprep.subr.mxu0 0.0
        %1606 = vmatpush1.msra.mxu0 %v1481
        %1607 = vmatprep.subr.mxu0 0.0
        %1608 = vmatpush1.msra.mxu0 %v1482
        %1609 = vmatprep.subr.mxu0 0.0
        %1610 = vmatpush1.msra.mxu0 %v1483
        %1611 = vmatprep.subr.mxu0 0.0
        %1612 = vmatpush1.msra.mxu0 %v1484
        %1613 = vmatprep.subr.mxu0 0.0
        %1614 = vmatpush1.msra.mxu0 %v1485
        %1615 = vmatprep.subr.mxu0 0.0
        %1616 = vmatpush1.msra.mxu0 %v1486
        %1617 = vmatprep.subr.mxu0 0.0
        %1618 = vmatpush1.msra.mxu0 %v1487
        %1619 = vmatprep.subr.mxu0 0.0
        %1620 = vmatpush1.msra.mxu0 %v1488
        %1621 = vmatprep.subr.mxu0 0.0
        %1622 = vmatpush1.msra.mxu0 %v1489
        %1623 = vmatprep.subr.mxu0 0.0
        %1624 = vmatpush1.msra.mxu0 %v1490
        %1625 = vmatprep.subr.mxu0 0.0
        %1626 = vmatpush1.msra.mxu0 %v1491
        %1627 = vmatprep.subr.mxu0 0.0
        %1628 = vmatpush1.msra.mxu0 %v1492
        %1629 = vmatprep.subr.mxu0 0.0
        %1630 = vmatpush1.msra.mxu0 %v1493
        %1631 = vmatprep.subr.mxu0 0.0
        %1632 = vmatpush1.msra.mxu0 %v1494
        %1633 = vmatprep.subr.mxu0 0.0
        %1634 = vmatpush1.msra.mxu0 %v1495
        %1635 = vmatprep.subr.mxu0 0.0
        %1636 = vmatpush1.msra.mxu0 %v1496
        %1637 = vmatprep.mubr.f32.mxu0 %v1570
        %1638 = vmatmul.mubr.f32.gmra.mrb[0].mxu0 %v1569
        %v1639 = vpop.f32.mrb[0].mxu0
        %v1640 = vadd.f32 0.0, %v1639
        %v1641 = vpop.f32.mrb[0].mxu0
        %1642 = vdwg.mxu0
        %v1643 = vadd.f32 %v1447, %v1640
        %s1644 = scalar_lea.vmem [#allocation2], 3
        %v1645 = vld [vmem:[%s1644] ss:$8 sm:$0x3]
        %s1646 = scalar_lea.vmem [#allocation2], 35
        %v1647 = vld [vmem:[%s1646] ss:$8 sm:$0x3]
        %s1648 = scalar_lea.vmem [#allocation2], 67
        %v1649 = vld [vmem:[%s1648] ss:$8 sm:$0x3]
        %s1650 = scalar_lea.vmem [#allocation2], 99
        %v1651 = vld [vmem:[%s1650] ss:$8 sm:$0x3]
        %s1652 = scalar_lea.vmem [#allocation2], 131
        %v1653 = vld [vmem:[%s1652] ss:$8 sm:$0x3]
        %s1654 = scalar_lea.vmem [#allocation2], 163
        %v1655 = vld [vmem:[%s1654] ss:$8 sm:$0x3]
        %s1656 = scalar_lea.vmem [#allocation2], 195
        %v1657 = vld [vmem:[%s1656] ss:$8 sm:$0x3]
        %s1658 = scalar_lea.vmem [#allocation2], 227
        %v1659 = vld [vmem:[%s1658] ss:$8 sm:$0x3]
        %s1660 = scalar_lea.vmem [#allocation11], 768
        %v1661 = vld [vmem:[%s1660] sm:$0xff]
        %v1662 = vld [vmem:[%s1660 + $0x8] sm:$0xff]
        %v1663 = vld [vmem:[%s1660 + $0x10] sm:$0xff]
        %v1664 = vld [vmem:[%s1660 + $0x18] sm:$0xff]
        %v1665 = vld [vmem:[%s1660 + $0x20] sm:$0xff]
        %v1666 = vld [vmem:[%s1660 + $0x28] sm:$0xff]
        %v1667 = vld [vmem:[%s1660 + $0x30] sm:$0xff]
        %v1668 = vld [vmem:[%s1660 + $0x38] sm:$0xff]
        %v1669 = vld [vmem:[%s1660 + $0x40] sm:$0xff]
        %v1670 = vld [vmem:[%s1660 + $0x48] sm:$0xff]
        %v1671 = vld [vmem:[%s1660 + $0x50] sm:$0xff]
        %v1672 = vld [vmem:[%s1660 + $0x58] sm:$0xff]
        %v1673 = vld [vmem:[%s1660 + $0x60] sm:$0xff]
        %v1674 = vld [vmem:[%s1660 + $0x68] sm:$0xff]
        %v1675 = vld [vmem:[%s1660 + $0x70] sm:$0xff]
        %v1676 = vld [vmem:[%s1660 + $0x78] sm:$0xff]
        %v1677 = vld [vmem:[%s1660 + $0x80] sm:$0xff]
        %v1678 = vld [vmem:[%s1660 + $0x88] sm:$0xff]
        %v1679 = vld [vmem:[%s1660 + $0x90] sm:$0xff]
        %v1680 = vld [vmem:[%s1660 + $0x98] sm:$0xff]
        %v1681 = vld [vmem:[%s1660 + $0xa0] sm:$0xff]
        %v1682 = vld [vmem:[%s1660 + $0xa8] sm:$0xff]
        %v1683 = vld [vmem:[%s1660 + $0xb0] sm:$0xff]
        %v1684 = vld [vmem:[%s1660 + $0xb8] sm:$0xff]
        %v1685 = vld [vmem:[%s1660 + $0xc0] sm:$0xff]
        %v1686 = vld [vmem:[%s1660 + $0xc8] sm:$0xff]
        %v1687 = vld [vmem:[%s1660 + $0xd0] sm:$0xff]
        %v1688 = vld [vmem:[%s1660 + $0xd8] sm:$0xff]
        %v1689 = vld [vmem:[%s1660 + $0xe0] sm:$0xff]
        %v1690 = vld [vmem:[%s1660 + $0xe8] sm:$0xff]
        %v1691 = vld [vmem:[%s1660 + $0xf0] sm:$0xff]
        %v1692 = vld [vmem:[%s1660 + $0xf8] sm:$0xff]
        %v1701 = vcombine.low %v1645, %v1647
        %v1702 = vcombine.low %v1649, %v1651
        %v1703 = vcombine.low %v1653, %v1655
        %v1704 = vcombine.low %v1657, %v1659
        %v1706 = vunpack.c.l.s4 1966171168
        %v1707 = vunpack.c.0.s8 %v1706
        %v1708 = vlaneseq
        %v1709 = vshrl.u32 %v1708, 7
        %v1710 = vsub.s32 %v1707, %v1709
        %v1711 = vrot.slane %v1701, %v1710
        %v1713 = vunpack.c.l.s4 1966171168
        %v1714 = vunpack.c.0.s8 %v1713
        %v1715 = vlaneseq
        %v1716 = vshrl.u32 %v1715, 7
        %v1717 = vsub.s32 %v1714, %v1716
        %v1718 = vrot.slane %v1702, %v1717
        %v1720 = vunpack.c.l.s4 1966171168
        %v1721 = vunpack.c.0.s8 %v1720
        %v1722 = vlaneseq
        %v1723 = vshrl.u32 %v1722, 7
        %v1724 = vsub.s32 %v1721, %v1723
        %v1725 = vrot.slane %v1703, %v1724
        %v1727 = vunpack.c.l.s4 1966171168
        %v1728 = vunpack.c.0.s8 %v1727
        %v1729 = vlaneseq
        %v1730 = vshrl.u32 %v1729, 7
        %v1731 = vsub.s32 %v1728, %v1730
        %v1732 = vrot.slane %v1704, %v1731
        %v1733 = vcombine.low %v1711, %v1718
        %v1734 = vcombine.high %v1711, %v1718
        %v1735 = vcombine.low %v1725, %v1732
        %v1736 = vcombine.high %v1725, %v1732
        %v1738 = vunpack.c.l.s4 1966171168
        %v1739 = vunpack.c.0.s8 %v1738
        %v1740 = vlaneseq
        %v1741 = vshrl.u32 %v1740, 7
        %v1742 = vsub.s32 %v1739, %v1741
        %v1743 = vrot.slane %v1733, %v1742
        %v1745 = vunpack.c.l.s4 1966171168
        %v1746 = vunpack.c.0.s8 %v1745
        %v1747 = vlaneseq
        %v1748 = vshrl.u32 %v1747, 7
        %v1749 = vsub.s32 %v1746, %v1748
        %v1750 = vrot.slane %v1734, %v1749
        %v1752 = vunpack.c.l.s4 1966171168
        %v1753 = vunpack.c.0.s8 %v1752
        %v1754 = vlaneseq
        %v1755 = vshrl.u32 %v1754, 7
        %v1756 = vsub.s32 %v1753, %v1755
        %v1757 = vrot.slane %v1735, %v1756
        %v1759 = vunpack.c.l.s4 1966171168
        %v1760 = vunpack.c.0.s8 %v1759
        %v1761 = vlaneseq
        %v1762 = vshrl.u32 %v1761, 7
        %v1763 = vsub.s32 %v1760, %v1762
        %v1764 = vrot.slane %v1736, %v1763
        %v1765 = vcombine.low %v1743, %v1757
        %v1766 = vcombine.low %v1750, %v1764
        %1769 = vmatprep.subr.mxu0 0.0
        %1770 = vmatpush1.msra.mxu0 %v1661
        %1771 = vmatprep.subr.mxu0 0.0
        %1772 = vmatpush1.msra.mxu0 %v1662
        %1773 = vmatprep.subr.mxu0 0.0
        %1774 = vmatpush1.msra.mxu0 %v1663
        %1775 = vmatprep.subr.mxu0 0.0
        %1776 = vmatpush1.msra.mxu0 %v1664
        %1777 = vmatprep.subr.mxu0 0.0
        %1778 = vmatpush1.msra.mxu0 %v1665
        %1779 = vmatprep.subr.mxu0 0.0
        %1780 = vmatpush1.msra.mxu0 %v1666
        %1781 = vmatprep.subr.mxu0 0.0
        %1782 = vmatpush1.msra.mxu0 %v1667
        %1783 = vmatprep.subr.mxu0 0.0
        %1784 = vmatpush1.msra.mxu0 %v1668
        %1785 = vmatprep.subr.mxu0 0.0
        %1786 = vmatpush1.msra.mxu0 %v1669
        %1787 = vmatprep.subr.mxu0 0.0
        %1788 = vmatpush1.msra.mxu0 %v1670
        %1789 = vmatprep.subr.mxu0 0.0
        %1790 = vmatpush1.msra.mxu0 %v1671
        %1791 = vmatprep.subr.mxu0 0.0
        %1792 = vmatpush1.msra.mxu0 %v1672
        %1793 = vmatprep.subr.mxu0 0.0
        %1794 = vmatpush1.msra.mxu0 %v1673
        %1795 = vmatprep.subr.mxu0 0.0
        %1796 = vmatpush1.msra.mxu0 %v1674
        %1797 = vmatprep.subr.mxu0 0.0
        %1798 = vmatpush1.msra.mxu0 %v1675
        %1799 = vmatprep.subr.mxu0 0.0
        %1800 = vmatpush1.msra.mxu0 %v1676
        %1801 = vmatprep.subr.mxu0 0.0
        %1802 = vmatpush1.msra.mxu0 %v1677
        %1803 = vmatprep.subr.mxu0 0.0
        %1804 = vmatpush1.msra.mxu0 %v1678
        %1805 = vmatprep.subr.mxu0 0.0
        %1806 = vmatpush1.msra.mxu0 %v1679
        %1807 = vmatprep.subr.mxu0 0.0
        %1808 = vmatpush1.msra.mxu0 %v1680
        %1809 = vmatprep.subr.mxu0 0.0
        %1810 = vmatpush1.msra.mxu0 %v1681
        %1811 = vmatprep.subr.mxu0 0.0
        %1812 = vmatpush1.msra.mxu0 %v1682
        %1813 = vmatprep.subr.mxu0 0.0
        %1814 = vmatpush1.msra.mxu0 %v1683
        %1815 = vmatprep.subr.mxu0 0.0
        %1816 = vmatpush1.msra.mxu0 %v1684
        %1817 = vmatprep.subr.mxu0 0.0
        %1818 = vmatpush1.msra.mxu0 %v1685
        %1819 = vmatprep.subr.mxu0 0.0
        %1820 = vmatpush1.msra.mxu0 %v1686
        %1821 = vmatprep.subr.mxu0 0.0
        %1822 = vmatpush1.msra.mxu0 %v1687
        %1823 = vmatprep.subr.mxu0 0.0
        %1824 = vmatpush1.msra.mxu0 %v1688
        %1825 = vmatprep.subr.mxu0 0.0
        %1826 = vmatpush1.msra.mxu0 %v1689
        %1827 = vmatprep.subr.mxu0 0.0
        %1828 = vmatpush1.msra.mxu0 %v1690
        %1829 = vmatprep.subr.mxu0 0.0
        %1830 = vmatpush1.msra.mxu0 %v1691
        %1831 = vmatprep.subr.mxu0 0.0
        %1832 = vmatpush1.msra.mxu0 %v1692
        %1833 = vmatprep.mubr.f32.mxu0 %v1766
        %1834 = vmatmul.mubr.f32.gmra.mrb[0].mxu0 %v1765
        %v1835 = vpop.f32.mrb[0].mxu0
        %v1836 = vadd.f32 0.0, %v1835
        %v1837 = vpop.f32.mrb[0].mxu0
        %1838 = vdwg.mxu0
        %v1839 = vadd.f32 %v1643, %v1836
        %s1840 = scalar_lea.vmem [#allocation2], 4
        %v1841 = vld [vmem:[%s1840] ss:$8 sm:$0x3]
        %s1842 = scalar_lea.vmem [#allocation2], 36
        %v1843 = vld [vmem:[%s1842] ss:$8 sm:$0x3]
        %s1844 = scalar_lea.vmem [#allocation2], 68
        %v1845 = vld [vmem:[%s1844] ss:$8 sm:$0x3]
        %s1846 = scalar_lea.vmem [#allocation2], 100
        %v1847 = vld [vmem:[%s1846] ss:$8 sm:$0x3]
        %s1848 = scalar_lea.vmem [#allocation2], 132
        %v1849 = vld [vmem:[%s1848] ss:$8 sm:$0x3]
        %s1850 = scalar_lea.vmem [#allocation2], 164
        %v1851 = vld [vmem:[%s1850] ss:$8 sm:$0x3]
        %s1852 = scalar_lea.vmem [#allocation2], 196
        %v1853 = vld [vmem:[%s1852] ss:$8 sm:$0x3]
        %s1854 = scalar_lea.vmem [#allocation2], 228
        %v1855 = vld [vmem:[%s1854] ss:$8 sm:$0x3]
        %s1856 = scalar_lea.vmem [#allocation11], 1024
        %v1857 = vld [vmem:[%s1856] sm:$0xff]
        %v1858 = vld [vmem:[%s1856 + $0x8] sm:$0xff]
        %v1859 = vld [vmem:[%s1856 + $0x10] sm:$0xff]
        %v1860 = vld [vmem:[%s1856 + $0x18] sm:$0xff]
        %v1861 = vld [vmem:[%s1856 + $0x20] sm:$0xff]
        %v1862 = vld [vmem:[%s1856 + $0x28] sm:$0xff]
        %v1863 = vld [vmem:[%s1856 + $0x30] sm:$0xff]
        %v1864 = vld [vmem:[%s1856 + $0x38] sm:$0xff]
        %v1865 = vld [vmem:[%s1856 + $0x40] sm:$0xff]
        %v1866 = vld [vmem:[%s1856 + $0x48] sm:$0xff]
        %v1867 = vld [vmem:[%s1856 + $0x50] sm:$0xff]
        %v1868 = vld [vmem:[%s1856 + $0x58] sm:$0xff]
        %v1869 = vld [vmem:[%s1856 + $0x60] sm:$0xff]
        %v1870 = vld [vmem:[%s1856 + $0x68] sm:$0xff]
        %v1871 = vld [vmem:[%s1856 + $0x70] sm:$0xff]
        %v1872 = vld [vmem:[%s1856 + $0x78] sm:$0xff]
        %v1873 = vld [vmem:[%s1856 + $0x80] sm:$0xff]
        %v1874 = vld [vmem:[%s1856 + $0x88] sm:$0xff]
        %v1875 = vld [vmem:[%s1856 + $0x90] sm:$0xff]
        %v1876 = vld [vmem:[%s1856 + $0x98] sm:$0xff]
        %v1877 = vld [vmem:[%s1856 + $0xa0] sm:$0xff]
        %v1878 = vld [vmem:[%s1856 + $0xa8] sm:$0xff]
        %v1879 = vld [vmem:[%s1856 + $0xb0] sm:$0xff]
        %v1880 = vld [vmem:[%s1856 + $0xb8] sm:$0xff]
        %v1881 = vld [vmem:[%s1856 + $0xc0] sm:$0xff]
        %v1882 = vld [vmem:[%s1856 + $0xc8] sm:$0xff]
        %v1883 = vld [vmem:[%s1856 + $0xd0] sm:$0xff]
        %v1884 = vld [vmem:[%s1856 + $0xd8] sm:$0xff]
        %v1885 = vld [vmem:[%s1856 + $0xe0] sm:$0xff]
        %v1886 = vld [vmem:[%s1856 + $0xe8] sm:$0xff]
        %v1887 = vld [vmem:[%s1856 + $0xf0] sm:$0xff]
        %v1888 = vld [vmem:[%s1856 + $0xf8] sm:$0xff]
        %v1897 = vcombine.low %v1841, %v1843
        %v1898 = vcombine.low %v1845, %v1847
        %v1899 = vcombine.low %v1849, %v1851
        %v1900 = vcombine.low %v1853, %v1855
        %v1902 = vunpack.c.l.s4 1966171168
        %v1903 = vunpack.c.0.s8 %v1902
        %v1904 = vlaneseq
        %v1905 = vshrl.u32 %v1904, 7
        %v1906 = vsub.s32 %v1903, %v1905
        %v1907 = vrot.slane %v1897, %v1906
        %v1909 = vunpack.c.l.s4 1966171168
        %v1910 = vunpack.c.0.s8 %v1909
        %v1911 = vlaneseq
        %v1912 = vshrl.u32 %v1911, 7
        %v1913 = vsub.s32 %v1910, %v1912
        %v1914 = vrot.slane %v1898, %v1913
        %v1916 = vunpack.c.l.s4 1966171168
        %v1917 = vunpack.c.0.s8 %v1916
        %v1918 = vlaneseq
        %v1919 = vshrl.u32 %v1918, 7
        %v1920 = vsub.s32 %v1917, %v1919
        %v1921 = vrot.slane %v1899, %v1920
        %v1923 = vunpack.c.l.s4 1966171168
        %v1924 = vunpack.c.0.s8 %v1923
        %v1925 = vlaneseq
        %v1926 = vshrl.u32 %v1925, 7
        %v1927 = vsub.s32 %v1924, %v1926
        %v1928 = vrot.slane %v1900, %v1927
        %v1929 = vcombine.low %v1907, %v1914
        %v1930 = vcombine.high %v1907, %v1914
        %v1931 = vcombine.low %v1921, %v1928
        %v1932 = vcombine.high %v1921, %v1928
        %v1934 = vunpack.c.l.s4 1966171168
        %v1935 = vunpack.c.0.s8 %v1934
        %v1936 = vlaneseq
        %v1937 = vshrl.u32 %v1936, 7
        %v1938 = vsub.s32 %v1935, %v1937
        %v1939 = vrot.slane %v1929, %v1938
        %v1941 = vunpack.c.l.s4 1966171168
        %v1942 = vunpack.c.0.s8 %v1941
        %v1943 = vlaneseq
        %v1944 = vshrl.u32 %v1943, 7
        %v1945 = vsub.s32 %v1942, %v1944
        %v1946 = vrot.slane %v1930, %v1945
        %v1948 = vunpack.c.l.s4 1966171168
        %v1949 = vunpack.c.0.s8 %v1948
        %v1950 = vlaneseq
        %v1951 = vshrl.u32 %v1950, 7
        %v1952 = vsub.s32 %v1949, %v1951
        %v1953 = vrot.slane %v1931, %v1952
        %v1955 = vunpack.c.l.s4 1966171168
        %v1956 = vunpack.c.0.s8 %v1955
        %v1957 = vlaneseq
        %v1958 = vshrl.u32 %v1957, 7
        %v1959 = vsub.s32 %v1956, %v1958
        %v1960 = vrot.slane %v1932, %v1959
        %v1961 = vcombine.low %v1939, %v1953
        %v1962 = vcombine.low %v1946, %v1960
        %1965 = vmatprep.subr.mxu0 0.0
        %1966 = vmatpush1.msra.mxu0 %v1857
        %1967 = vmatprep.subr.mxu0 0.0
        %1968 = vmatpush1.msra.mxu0 %v1858
        %1969 = vmatprep.subr.mxu0 0.0
        %1970 = vmatpush1.msra.mxu0 %v1859
        %1971 = vmatprep.subr.mxu0 0.0
        %1972 = vmatpush1.msra.mxu0 %v1860
        %1973 = vmatprep.subr.mxu0 0.0
        %1974 = vmatpush1.msra.mxu0 %v1861
        %1975 = vmatprep.subr.mxu0 0.0
        %1976 = vmatpush1.msra.mxu0 %v1862
        %1977 = vmatprep.subr.mxu0 0.0
        %1978 = vmatpush1.msra.mxu0 %v1863
        %1979 = vmatprep.subr.mxu0 0.0
        %1980 = vmatpush1.msra.mxu0 %v1864
        %1981 = vmatprep.subr.mxu0 0.0
        %1982 = vmatpush1.msra.mxu0 %v1865
        %1983 = vmatprep.subr.mxu0 0.0
        %1984 = vmatpush1.msra.mxu0 %v1866
        %1985 = vmatprep.subr.mxu0 0.0
        %1986 = vmatpush1.msra.mxu0 %v1867
        %1987 = vmatprep.subr.mxu0 0.0
        %1988 = vmatpush1.msra.mxu0 %v1868
        %1989 = vmatprep.subr.mxu0 0.0
        %1990 = vmatpush1.msra.mxu0 %v1869
        %1991 = vmatprep.subr.mxu0 0.0
        %1992 = vmatpush1.msra.mxu0 %v1870
        %1993 = vmatprep.subr.mxu0 0.0
        %1994 = vmatpush1.msra.mxu0 %v1871
        %1995 = vmatprep.subr.mxu0 0.0
        %1996 = vmatpush1.msra.mxu0 %v1872
        %1997 = vmatprep.subr.mxu0 0.0
        %1998 = vmatpush1.msra.mxu0 %v1873
        %1999 = vmatprep.subr.mxu0 0.0
        %2000 = vmatpush1.msra.mxu0 %v1874
        %2001 = vmatprep.subr.mxu0 0.0
        %2002 = vmatpush1.msra.mxu0 %v1875
        %2003 = vmatprep.subr.mxu0 0.0
        %2004 = vmatpush1.msra.mxu0 %v1876
        %2005 = vmatprep.subr.mxu0 0.0
        %2006 = vmatpush1.msra.mxu0 %v1877
        %2007 = vmatprep.subr.mxu0 0.0
        %2008 = vmatpush1.msra.mxu0 %v1878
        %2009 = vmatprep.subr.mxu0 0.0
        %2010 = vmatpush1.msra.mxu0 %v1879
        %2011 = vmatprep.subr.mxu0 0.0
        %2012 = vmatpush1.msra.mxu0 %v1880
        %2013 = vmatprep.subr.mxu0 0.0
        %2014 = vmatpush1.msra.mxu0 %v1881
        %2015 = vmatprep.subr.mxu0 0.0
        %2016 = vmatpush1.msra.mxu0 %v1882
        %2017 = vmatprep.subr.mxu0 0.0
        %2018 = vmatpush1.msra.mxu0 %v1883
        %2019 = vmatprep.subr.mxu0 0.0
        %2020 = vmatpush1.msra.mxu0 %v1884
        %2021 = vmatprep.subr.mxu0 0.0
        %2022 = vmatpush1.msra.mxu0 %v1885
        %2023 = vmatprep.subr.mxu0 0.0
        %2024 = vmatpush1.msra.mxu0 %v1886
        %2025 = vmatprep.subr.mxu0 0.0
        %2026 = vmatpush1.msra.mxu0 %v1887
        %2027 = vmatprep.subr.mxu0 0.0
        %2028 = vmatpush1.msra.mxu0 %v1888
        %2029 = vmatprep.mubr.f32.mxu0 %v1962
        %2030 = vmatmul.mubr.f32.gmra.mrb[0].mxu0 %v1961
        %v2031 = vpop.f32.mrb[0].mxu0
        %v2032 = vadd.f32 0.0, %v2031
        %v2033 = vpop.f32.mrb[0].mxu0
        %2034 = vdwg.mxu0
        %v2035 = vadd.f32 %v1839, %v2032
        %s2036 = scalar_lea.vmem [#allocation2], 5
        %v2037 = vld [vmem:[%s2036] ss:$8 sm:$0x3]
        %s2038 = scalar_lea.vmem [#allocation2], 37
        %v2039 = vld [vmem:[%s2038] ss:$8 sm:$0x3]
        %s2040 = scalar_lea.vmem [#allocation2], 69
        %v2041 = vld [vmem:[%s2040] ss:$8 sm:$0x3]
        %s2042 = scalar_lea.vmem [#allocation2], 101
        %v2043 = vld [vmem:[%s2042] ss:$8 sm:$0x3]
        %s2044 = scalar_lea.vmem [#allocation2], 133
        %v2045 = vld [vmem:[%s2044] ss:$8 sm:$0x3]
        %s2046 = scalar_lea.vmem [#allocation2], 165
        %v2047 = vld [vmem:[%s2046] ss:$8 sm:$0x3]
        %s2048 = scalar_lea.vmem [#allocation2], 197
        %v2049 = vld [vmem:[%s2048] ss:$8 sm:$0x3]
        %s2050 = scalar_lea.vmem [#allocation2], 229
        %v2051 = vld [vmem:[%s2050] ss:$8 sm:$0x3]
        %s2052 = scalar_lea.vmem [#allocation11], 1280
        %v2053 = vld [vmem:[%s2052] sm:$0xff]
        %v2054 = vld [vmem:[%s2052 + $0x8] sm:$0xff]
        %v2055 = vld [vmem:[%s2052 + $0x10] sm:$0xff]
        %v2056 = vld [vmem:[%s2052 + $0x18] sm:$0xff]
        %v2057 = vld [vmem:[%s2052 + $0x20] sm:$0xff]
        %v2058 = vld [vmem:[%s2052 + $0x28] sm:$0xff]
        %v2059 = vld [vmem:[%s2052 + $0x30] sm:$0xff]
        %v2060 = vld [vmem:[%s2052 + $0x38] sm:$0xff]
        %v2061 = vld [vmem:[%s2052 + $0x40] sm:$0xff]
        %v2062 = vld [vmem:[%s2052 + $0x48] sm:$0xff]
        %v2063 = vld [vmem:[%s2052 + $0x50] sm:$0xff]
        %v2064 = vld [vmem:[%s2052 + $0x58] sm:$0xff]
        %v2065 = vld [vmem:[%s2052 + $0x60] sm:$0xff]
        %v2066 = vld [vmem:[%s2052 + $0x68] sm:$0xff]
        %v2067 = vld [vmem:[%s2052 + $0x70] sm:$0xff]
        %v2068 = vld [vmem:[%s2052 + $0x78] sm:$0xff]
        %v2069 = vld [vmem:[%s2052 + $0x80] sm:$0xff]
        %v2070 = vld [vmem:[%s2052 + $0x88] sm:$0xff]
        %v2071 = vld [vmem:[%s2052 + $0x90] sm:$0xff]
        %v2072 = vld [vmem:[%s2052 + $0x98] sm:$0xff]
        %v2073 = vld [vmem:[%s2052 + $0xa0] sm:$0xff]
        %v2074 = vld [vmem:[%s2052 + $0xa8] sm:$0xff]
        %v2075 = vld [vmem:[%s2052 + $0xb0] sm:$0xff]
        %v2076 = vld [vmem:[%s2052 + $0xb8] sm:$0xff]
        %v2077 = vld [vmem:[%s2052 + $0xc0] sm:$0xff]
        %v2078 = vld [vmem:[%s2052 + $0xc8] sm:$0xff]
        %v2079 = vld [vmem:[%s2052 + $0xd0] sm:$0xff]
        %v2080 = vld [vmem:[%s2052 + $0xd8] sm:$0xff]
        %v2081 = vld [vmem:[%s2052 + $0xe0] sm:$0xff]
        %v2082 = vld [vmem:[%s2052 + $0xe8] sm:$0xff]
        %v2083 = vld [vmem:[%s2052 + $0xf0] sm:$0xff]
        %v2084 = vld [vmem:[%s2052 + $0xf8] sm:$0xff]
        %v2093 = vcombine.low %v2037, %v2039
        %v2094 = vcombine.low %v2041, %v2043
        %v2095 = vcombine.low %v2045, %v2047
        %v2096 = vcombine.low %v2049, %v2051
        %v2098 = vunpack.c.l.s4 1966171168
        %v2099 = vunpack.c.0.s8 %v2098
        %v2100 = vlaneseq
        %v2101 = vshrl.u32 %v2100, 7
        %v2102 = vsub.s32 %v2099, %v2101
        %v2103 = vrot.slane %v2093, %v2102
        %v2105 = vunpack.c.l.s4 1966171168
        %v2106 = vunpack.c.0.s8 %v2105
        %v2107 = vlaneseq
        %v2108 = vshrl.u32 %v2107, 7
        %v2109 = vsub.s32 %v2106, %v2108
        %v2110 = vrot.slane %v2094, %v2109
        %v2112 = vunpack.c.l.s4 1966171168
        %v2113 = vunpack.c.0.s8 %v2112
        %v2114 = vlaneseq
        %v2115 = vshrl.u32 %v2114, 7
        %v2116 = vsub.s32 %v2113, %v2115
        %v2117 = vrot.slane %v2095, %v2116
        %v2119 = vunpack.c.l.s4 1966171168
        %v2120 = vunpack.c.0.s8 %v2119
        %v2121 = vlaneseq
        %v2122 = vshrl.u32 %v2121, 7
        %v2123 = vsub.s32 %v2120, %v2122
        %v2124 = vrot.slane %v2096, %v2123
        %v2125 = vcombine.low %v2103, %v2110
        %v2126 = vcombine.high %v2103, %v2110
        %v2127 = vcombine.low %v2117, %v2124
        %v2128 = vcombine.high %v2117, %v2124
        %v2130 = vunpack.c.l.s4 1966171168
        %v2131 = vunpack.c.0.s8 %v2130
        %v2132 = vlaneseq
        %v2133 = vshrl.u32 %v2132, 7
        %v2134 = vsub.s32 %v2131, %v2133
        %v2135 = vrot.slane %v2125, %v2134
        %v2137 = vunpack.c.l.s4 1966171168
        %v2138 = vunpack.c.0.s8 %v2137
        %v2139 = vlaneseq
        %v2140 = vshrl.u32 %v2139, 7
        %v2141 = vsub.s32 %v2138, %v2140
        %v2142 = vrot.slane %v2126, %v2141
        %v2144 = vunpack.c.l.s4 1966171168
        %v2145 = vunpack.c.0.s8 %v2144
        %v2146 = vlaneseq
        %v2147 = vshrl.u32 %v2146, 7
        %v2148 = vsub.s32 %v2145, %v2147
        %v2149 = vrot.slane %v2127, %v2148
        %v2151 = vunpack.c.l.s4 1966171168
        %v2152 = vunpack.c.0.s8 %v2151
        %v2153 = vlaneseq
        %v2154 = vshrl.u32 %v2153, 7
        %v2155 = vsub.s32 %v2152, %v2154
        %v2156 = vrot.slane %v2128, %v2155
        %v2157 = vcombine.low %v2135, %v2149
        %v2158 = vcombine.low %v2142, %v2156
        %2161 = vmatprep.subr.mxu0 0.0
        %2162 = vmatpush1.msra.mxu0 %v2053
        %2163 = vmatprep.subr.mxu0 0.0
        %2164 = vmatpush1.msra.mxu0 %v2054
        %2165 = vmatprep.subr.mxu0 0.0
        %2166 = vmatpush1.msra.mxu0 %v2055
        %2167 = vmatprep.subr.mxu0 0.0
        %2168 = vmatpush1.msra.mxu0 %v2056
        %2169 = vmatprep.subr.mxu0 0.0
        %2170 = vmatpush1.msra.mxu0 %v2057
        %2171 = vmatprep.subr.mxu0 0.0
        %2172 = vmatpush1.msra.mxu0 %v2058
        %2173 = vmatprep.subr.mxu0 0.0
        %2174 = vmatpush1.msra.mxu0 %v2059
        %2175 = vmatprep.subr.mxu0 0.0
        %2176 = vmatpush1.msra.mxu0 %v2060
        %2177 = vmatprep.subr.mxu0 0.0
        %2178 = vmatpush1.msra.mxu0 %v2061
        %2179 = vmatprep.subr.mxu0 0.0
        %2180 = vmatpush1.msra.mxu0 %v2062
        %2181 = vmatprep.subr.mxu0 0.0
        %2182 = vmatpush1.msra.mxu0 %v2063
        %2183 = vmatprep.subr.mxu0 0.0
        %2184 = vmatpush1.msra.mxu0 %v2064
        %2185 = vmatprep.subr.mxu0 0.0
        %2186 = vmatpush1.msra.mxu0 %v2065
        %2187 = vmatprep.subr.mxu0 0.0
        %2188 = vmatpush1.msra.mxu0 %v2066
        %2189 = vmatprep.subr.mxu0 0.0
        %2190 = vmatpush1.msra.mxu0 %v2067
        %2191 = vmatprep.subr.mxu0 0.0
        %2192 = vmatpush1.msra.mxu0 %v2068
        %2193 = vmatprep.subr.mxu0 0.0
        %2194 = vmatpush1.msra.mxu0 %v2069
        %2195 = vmatprep.subr.mxu0 0.0
        %2196 = vmatpush1.msra.mxu0 %v2070
        %2197 = vmatprep.subr.mxu0 0.0
        %2198 = vmatpush1.msra.mxu0 %v2071
        %2199 = vmatprep.subr.mxu0 0.0
        %2200 = vmatpush1.msra.mxu0 %v2072
        %2201 = vmatprep.subr.mxu0 0.0
        %2202 = vmatpush1.msra.mxu0 %v2073
        %2203 = vmatprep.subr.mxu0 0.0
        %2204 = vmatpush1.msra.mxu0 %v2074
        %2205 = vmatprep.subr.mxu0 0.0
        %2206 = vmatpush1.msra.mxu0 %v2075
        %2207 = vmatprep.subr.mxu0 0.0
        %2208 = vmatpush1.msra.mxu0 %v2076
        %2209 = vmatprep.subr.mxu0 0.0
        %2210 = vmatpush1.msra.mxu0 %v2077
        %2211 = vmatprep.subr.mxu0 0.0
        %2212 = vmatpush1.msra.mxu0 %v2078
        %2213 = vmatprep.subr.mxu0 0.0
        %2214 = vmatpush1.msra.mxu0 %v2079
        %2215 = vmatprep.subr.mxu0 0.0
        %2216 = vmatpush1.msra.mxu0 %v2080
        %2217 = vmatprep.subr.mxu0 0.0
        %2218 = vmatpush1.msra.mxu0 %v2081
        %2219 = vmatprep.subr.mxu0 0.0
        %2220 = vmatpush1.msra.mxu0 %v2082
        %2221 = vmatprep.subr.mxu0 0.0
        %2222 = vmatpush1.msra.mxu0 %v2083
        %2223 = vmatprep.subr.mxu0 0.0
        %2224 = vmatpush1.msra.mxu0 %v2084
        %2225 = vmatprep.mubr.f32.mxu0 %v2158
        %2226 = vmatmul.mubr.f32.gmra.mrb[0].mxu0 %v2157
        %v2227 = vpop.f32.mrb[0].mxu0
        %v2228 = vadd.f32 0.0, %v2227
        %v2229 = vpop.f32.mrb[0].mxu0
        %2230 = vdwg.mxu0
        %v2231 = vadd.f32 %v2035, %v2228
        %s2232 = scalar_lea.vmem [#allocation2], 6
        %v2233 = vld [vmem:[%s2232] ss:$8 sm:$0x3]
        %s2234 = scalar_lea.vmem [#allocation2], 38
        %v2235 = vld [vmem:[%s2234] ss:$8 sm:$0x3]
        %s2236 = scalar_lea.vmem [#allocation2], 70
        %v2237 = vld [vmem:[%s2236] ss:$8 sm:$0x3]
        %s2238 = scalar_lea.vmem [#allocation2], 102
        %v2239 = vld [vmem:[%s2238] ss:$8 sm:$0x3]
        %s2240 = scalar_lea.vmem [#allocation2], 134
        %v2241 = vld [vmem:[%s2240] ss:$8 sm:$0x3]
        %s2242 = scalar_lea.vmem [#allocation2], 166
        %v2243 = vld [vmem:[%s2242] ss:$8 sm:$0x3]
        %s2244 = scalar_lea.vmem [#allocation2], 198
        %v2245 = vld [vmem:[%s2244] ss:$8 sm:$0x3]
        %s2246 = scalar_lea.vmem [#allocation2], 230
        %v2247 = vld [vmem:[%s2246] ss:$8 sm:$0x3]
        %s2248 = scalar_lea.vmem [#allocation11], 1536
        %v2249 = vld [vmem:[%s2248] sm:$0xff]
        %v2250 = vld [vmem:[%s2248 + $0x8] sm:$0xff]
        %v2251 = vld [vmem:[%s2248 + $0x10] sm:$0xff]
        %v2252 = vld [vmem:[%s2248 + $0x18] sm:$0xff]
        %v2253 = vld [vmem:[%s2248 + $0x20] sm:$0xff]
        %v2254 = vld [vmem:[%s2248 + $0x28] sm:$0xff]
        %v2255 = vld [vmem:[%s2248 + $0x30] sm:$0xff]
        %v2256 = vld [vmem:[%s2248 + $0x38] sm:$0xff]
        %v2257 = vld [vmem:[%s2248 + $0x40] sm:$0xff]
        %v2258 = vld [vmem:[%s2248 + $0x48] sm:$0xff]
        %v2259 = vld [vmem:[%s2248 + $0x50] sm:$0xff]
        %v2260 = vld [vmem:[%s2248 + $0x58] sm:$0xff]
        %v2261 = vld [vmem:[%s2248 + $0x60] sm:$0xff]
        %v2262 = vld [vmem:[%s2248 + $0x68] sm:$0xff]
        %v2263 = vld [vmem:[%s2248 + $0x70] sm:$0xff]
        %v2264 = vld [vmem:[%s2248 + $0x78] sm:$0xff]
        %v2265 = vld [vmem:[%s2248 + $0x80] sm:$0xff]
        %v2266 = vld [vmem:[%s2248 + $0x88] sm:$0xff]
        %v2267 = vld [vmem:[%s2248 + $0x90] sm:$0xff]
        %v2268 = vld [vmem:[%s2248 + $0x98] sm:$0xff]
        %v2269 = vld [vmem:[%s2248 + $0xa0] sm:$0xff]
        %v2270 = vld [vmem:[%s2248 + $0xa8] sm:$0xff]
        %v2271 = vld [vmem:[%s2248 + $0xb0] sm:$0xff]
        %v2272 = vld [vmem:[%s2248 + $0xb8] sm:$0xff]
        %v2273 = vld [vmem:[%s2248 + $0xc0] sm:$0xff]
        %v2274 = vld [vmem:[%s2248 + $0xc8] sm:$0xff]
        %v2275 = vld [vmem:[%s2248 + $0xd0] sm:$0xff]
        %v2276 = vld [vmem:[%s2248 + $0xd8] sm:$0xff]
        %v2277 = vld [vmem:[%s2248 + $0xe0] sm:$0xff]
        %v2278 = vld [vmem:[%s2248 + $0xe8] sm:$0xff]
        %v2279 = vld [vmem:[%s2248 + $0xf0] sm:$0xff]
        %v2280 = vld [vmem:[%s2248 + $0xf8] sm:$0xff]
        %v2289 = vcombine.low %v2233, %v2235
        %v2290 = vcombine.low %v2237, %v2239
        %v2291 = vcombine.low %v2241, %v2243
        %v2292 = vcombine.low %v2245, %v2247
        %v2294 = vunpack.c.l.s4 1966171168
        %v2295 = vunpack.c.0.s8 %v2294
        %v2296 = vlaneseq
        %v2297 = vshrl.u32 %v2296, 7
        %v2298 = vsub.s32 %v2295, %v2297
        %v2299 = vrot.slane %v2289, %v2298
        %v2301 = vunpack.c.l.s4 1966171168
        %v2302 = vunpack.c.0.s8 %v2301
        %v2303 = vlaneseq
        %v2304 = vshrl.u32 %v2303, 7
        %v2305 = vsub.s32 %v2302, %v2304
        %v2306 = vrot.slane %v2290, %v2305
        %v2308 = vunpack.c.l.s4 1966171168
        %v2309 = vunpack.c.0.s8 %v2308
        %v2310 = vlaneseq
        %v2311 = vshrl.u32 %v2310, 7
        %v2312 = vsub.s32 %v2309, %v2311
        %v2313 = vrot.slane %v2291, %v2312
        %v2315 = vunpack.c.l.s4 1966171168
        %v2316 = vunpack.c.0.s8 %v2315
        %v2317 = vlaneseq
        %v2318 = vshrl.u32 %v2317, 7
        %v2319 = vsub.s32 %v2316, %v2318
        %v2320 = vrot.slane %v2292, %v2319
        %v2321 = vcombine.low %v2299, %v2306
        %v2322 = vcombine.high %v2299, %v2306
        %v2323 = vcombine.low %v2313, %v2320
        %v2324 = vcombine.high %v2313, %v2320
        %v2326 = vunpack.c.l.s4 1966171168
        %v2327 = vunpack.c.0.s8 %v2326
        %v2328 = vlaneseq
        %v2329 = vshrl.u32 %v2328, 7
        %v2330 = vsub.s32 %v2327, %v2329
        %v2331 = vrot.slane %v2321, %v2330
        %v2333 = vunpack.c.l.s4 1966171168
        %v2334 = vunpack.c.0.s8 %v2333
        %v2335 = vlaneseq
        %v2336 = vshrl.u32 %v2335, 7
        %v2337 = vsub.s32 %v2334, %v2336
        %v2338 = vrot.slane %v2322, %v2337
        %v2340 = vunpack.c.l.s4 1966171168
        %v2341 = vunpack.c.0.s8 %v2340
        %v2342 = vlaneseq
        %v2343 = vshrl.u32 %v2342, 7
        %v2344 = vsub.s32 %v2341, %v2343
        %v2345 = vrot.slane %v2323, %v2344
        %v2347 = vunpack.c.l.s4 1966171168
        %v2348 = vunpack.c.0.s8 %v2347
        %v2349 = vlaneseq
        %v2350 = vshrl.u32 %v2349, 7
        %v2351 = vsub.s32 %v2348, %v2350
        %v2352 = vrot.slane %v2324, %v2351
        %v2353 = vcombine.low %v2331, %v2345
        %v2354 = vcombine.low %v2338, %v2352
        %2357 = vmatprep.subr.mxu0 0.0
        %2358 = vmatpush1.msra.mxu0 %v2249
        %2359 = vmatprep.subr.mxu0 0.0
        %2360 = vmatpush1.msra.mxu0 %v2250
        %2361 = vmatprep.subr.mxu0 0.0
        %2362 = vmatpush1.msra.mxu0 %v2251
        %2363 = vmatprep.subr.mxu0 0.0
        %2364 = vmatpush1.msra.mxu0 %v2252
        %2365 = vmatprep.subr.mxu0 0.0
        %2366 = vmatpush1.msra.mxu0 %v2253
        %2367 = vmatprep.subr.mxu0 0.0
        %2368 = vmatpush1.msra.mxu0 %v2254
        %2369 = vmatprep.subr.mxu0 0.0
        %2370 = vmatpush1.msra.mxu0 %v2255
        %2371 = vmatprep.subr.mxu0 0.0
        %2372 = vmatpush1.msra.mxu0 %v2256
        %2373 = vmatprep.subr.mxu0 0.0
        %2374 = vmatpush1.msra.mxu0 %v2257
        %2375 = vmatprep.subr.mxu0 0.0
        %2376 = vmatpush1.msra.mxu0 %v2258
        %2377 = vmatprep.subr.mxu0 0.0
        %2378 = vmatpush1.msra.mxu0 %v2259
        %2379 = vmatprep.subr.mxu0 0.0
        %2380 = vmatpush1.msra.mxu0 %v2260
        %2381 = vmatprep.subr.mxu0 0.0
        %2382 = vmatpush1.msra.mxu0 %v2261
        %2383 = vmatprep.subr.mxu0 0.0
        %2384 = vmatpush1.msra.mxu0 %v2262
        %2385 = vmatprep.subr.mxu0 0.0
        %2386 = vmatpush1.msra.mxu0 %v2263
        %2387 = vmatprep.subr.mxu0 0.0
        %2388 = vmatpush1.msra.mxu0 %v2264
        %2389 = vmatprep.subr.mxu0 0.0
        %2390 = vmatpush1.msra.mxu0 %v2265
        %2391 = vmatprep.subr.mxu0 0.0
        %2392 = vmatpush1.msra.mxu0 %v2266
        %2393 = vmatprep.subr.mxu0 0.0
        %2394 = vmatpush1.msra.mxu0 %v2267
        %2395 = vmatprep.subr.mxu0 0.0
        %2396 = vmatpush1.msra.mxu0 %v2268
        %2397 = vmatprep.subr.mxu0 0.0
        %2398 = vmatpush1.msra.mxu0 %v2269
        %2399 = vmatprep.subr.mxu0 0.0
        %2400 = vmatpush1.msra.mxu0 %v2270
        %2401 = vmatprep.subr.mxu0 0.0
        %2402 = vmatpush1.msra.mxu0 %v2271
        %2403 = vmatprep.subr.mxu0 0.0
        %2404 = vmatpush1.msra.mxu0 %v2272
        %2405 = vmatprep.subr.mxu0 0.0
        %2406 = vmatpush1.msra.mxu0 %v2273
        %2407 = vmatprep.subr.mxu0 0.0
        %2408 = vmatpush1.msra.mxu0 %v2274
        %2409 = vmatprep.subr.mxu0 0.0
        %2410 = vmatpush1.msra.mxu0 %v2275
        %2411 = vmatprep.subr.mxu0 0.0
        %2412 = vmatpush1.msra.mxu0 %v2276
        %2413 = vmatprep.subr.mxu0 0.0
        %2414 = vmatpush1.msra.mxu0 %v2277
        %2415 = vmatprep.subr.mxu0 0.0
        %2416 = vmatpush1.msra.mxu0 %v2278
        %2417 = vmatprep.subr.mxu0 0.0
        %2418 = vmatpush1.msra.mxu0 %v2279
        %2419 = vmatprep.subr.mxu0 0.0
        %2420 = vmatpush1.msra.mxu0 %v2280
        %2421 = vmatprep.mubr.f32.mxu0 %v2354
        %2422 = vmatmul.mubr.f32.gmra.mrb[0].mxu0 %v2353
        %v2423 = vpop.f32.mrb[0].mxu0
        %v2424 = vadd.f32 0.0, %v2423
        %v2425 = vpop.f32.mrb[0].mxu0
        %2426 = vdwg.mxu0
        %v2427 = vadd.f32 %v2231, %v2424
        %s2428 = scalar_lea.vmem [#allocation2], 7
        %v2429 = vld [vmem:[%s2428] ss:$8 sm:$0x3]
        %s2430 = scalar_lea.vmem [#allocation2], 39
        %v2431 = vld [vmem:[%s2430] ss:$8 sm:$0x3]
        %s2432 = scalar_lea.vmem [#allocation2], 71
        %v2433 = vld [vmem:[%s2432] ss:$8 sm:$0x3]
        %s2434 = scalar_lea.vmem [#allocation2], 103
        %v2435 = vld [vmem:[%s2434] ss:$8 sm:$0x3]
        %s2436 = scalar_lea.vmem [#allocation2], 135
        %v2437 = vld [vmem:[%s2436] ss:$8 sm:$0x3]
        %s2438 = scalar_lea.vmem [#allocation2], 167
        %v2439 = vld [vmem:[%s2438] ss:$8 sm:$0x3]
        %s2440 = scalar_lea.vmem [#allocation2], 199
        %v2441 = vld [vmem:[%s2440] ss:$8 sm:$0x3]
        %s2442 = scalar_lea.vmem [#allocation2], 231
        %v2443 = vld [vmem:[%s2442] ss:$8 sm:$0x3]
        %s2444 = scalar_lea.vmem [#allocation11], 1792
        %v2445 = vld [vmem:[%s2444] sm:$0xff]
        %v2446 = vld [vmem:[%s2444 + $0x8] sm:$0xff]
        %v2447 = vld [vmem:[%s2444 + $0x10] sm:$0xff]
        %v2448 = vld [vmem:[%s2444 + $0x18] sm:$0xff]
        %v2449 = vld [vmem:[%s2444 + $0x20] sm:$0xff]
        %v2450 = vld [vmem:[%s2444 + $0x28] sm:$0xff]
        %v2451 = vld [vmem:[%s2444 + $0x30] sm:$0xff]
        %v2452 = vld [vmem:[%s2444 + $0x38] sm:$0xff]
        %v2453 = vld [vmem:[%s2444 + $0x40] sm:$0xff]
        %v2454 = vld [vmem:[%s2444 + $0x48] sm:$0xff]
        %v2455 = vld [vmem:[%s2444 + $0x50] sm:$0xff]
        %v2456 = vld [vmem:[%s2444 + $0x58] sm:$0xff]
        %v2457 = vld [vmem:[%s2444 + $0x60] sm:$0xff]
        %v2458 = vld [vmem:[%s2444 + $0x68] sm:$0xff]
        %v2459 = vld [vmem:[%s2444 + $0x70] sm:$0xff]
        %v2460 = vld [vmem:[%s2444 + $0x78] sm:$0xff]
        %v2461 = vld [vmem:[%s2444 + $0x80] sm:$0xff]
        %v2462 = vld [vmem:[%s2444 + $0x88] sm:$0xff]
        %v2463 = vld [vmem:[%s2444 + $0x90] sm:$0xff]
        %v2464 = vld [vmem:[%s2444 + $0x98] sm:$0xff]
        %v2465 = vld [vmem:[%s2444 + $0xa0] sm:$0xff]
        %v2466 = vld [vmem:[%s2444 + $0xa8] sm:$0xff]
        %v2467 = vld [vmem:[%s2444 + $0xb0] sm:$0xff]
        %v2468 = vld [vmem:[%s2444 + $0xb8] sm:$0xff]
        %v2469 = vld [vmem:[%s2444 + $0xc0] sm:$0xff]
        %v2470 = vld [vmem:[%s2444 + $0xc8] sm:$0xff]
        %v2471 = vld [vmem:[%s2444 + $0xd0] sm:$0xff]
        %v2472 = vld [vmem:[%s2444 + $0xd8] sm:$0xff]
        %v2473 = vld [vmem:[%s2444 + $0xe0] sm:$0xff]
        %v2474 = vld [vmem:[%s2444 + $0xe8] sm:$0xff]
        %v2475 = vld [vmem:[%s2444 + $0xf0] sm:$0xff]
        %v2476 = vld [vmem:[%s2444 + $0xf8] sm:$0xff]
        %v2485 = vcombine.low %v2429, %v2431
        %v2486 = vcombine.low %v2433, %v2435
        %v2487 = vcombine.low %v2437, %v2439
        %v2488 = vcombine.low %v2441, %v2443
        %v2490 = vunpack.c.l.s4 1966171168
        %v2491 = vunpack.c.0.s8 %v2490
        %v2492 = vlaneseq
        %v2493 = vshrl.u32 %v2492, 7
        %v2494 = vsub.s32 %v2491, %v2493
        %v2495 = vrot.slane %v2485, %v2494
        %v2497 = vunpack.c.l.s4 1966171168
        %v2498 = vunpack.c.0.s8 %v2497
        %v2499 = vlaneseq
        %v2500 = vshrl.u32 %v2499, 7
        %v2501 = vsub.s32 %v2498, %v2500
        %v2502 = vrot.slane %v2486, %v2501
        %v2504 = vunpack.c.l.s4 1966171168
        %v2505 = vunpack.c.0.s8 %v2504
        %v2506 = vlaneseq
        %v2507 = vshrl.u32 %v2506, 7
        %v2508 = vsub.s32 %v2505, %v2507
        %v2509 = vrot.slane %v2487, %v2508
        %v2511 = vunpack.c.l.s4 1966171168
        %v2512 = vunpack.c.0.s8 %v2511
        %v2513 = vlaneseq
        %v2514 = vshrl.u32 %v2513, 7
        %v2515 = vsub.s32 %v2512, %v2514
        %v2516 = vrot.slane %v2488, %v2515
        %v2517 = vcombine.low %v2495, %v2502
        %v2518 = vcombine.high %v2495, %v2502
        %v2519 = vcombine.low %v2509, %v2516
        %v2520 = vcombine.high %v2509, %v2516
        %v2522 = vunpack.c.l.s4 1966171168
        %v2523 = vunpack.c.0.s8 %v2522
        %v2524 = vlaneseq
        %v2525 = vshrl.u32 %v2524, 7
        %v2526 = vsub.s32 %v2523, %v2525
        %v2527 = vrot.slane %v2517, %v2526
        %v2529 = vunpack.c.l.s4 1966171168
        %v2530 = vunpack.c.0.s8 %v2529
        %v2531 = vlaneseq
        %v2532 = vshrl.u32 %v2531, 7
        %v2533 = vsub.s32 %v2530, %v2532
        %v2534 = vrot.slane %v2518, %v2533
        %v2536 = vunpack.c.l.s4 1966171168
        %v2537 = vunpack.c.0.s8 %v2536
        %v2538 = vlaneseq
        %v2539 = vshrl.u32 %v2538, 7
        %v2540 = vsub.s32 %v2537, %v2539
        %v2541 = vrot.slane %v2519, %v2540
        %v2543 = vunpack.c.l.s4 1966171168
        %v2544 = vunpack.c.0.s8 %v2543
        %v2545 = vlaneseq
        %v2546 = vshrl.u32 %v2545, 7
        %v2547 = vsub.s32 %v2544, %v2546
        %v2548 = vrot.slane %v2520, %v2547
        %v2549 = vcombine.low %v2527, %v2541
        %v2550 = vcombine.low %v2534, %v2548
        %2553 = vmatprep.subr.mxu0 0.0
        %2554 = vmatpush1.msra.mxu0 %v2445
        %2555 = vmatprep.subr.mxu0 0.0
        %2556 = vmatpush1.msra.mxu0 %v2446
        %2557 = vmatprep.subr.mxu0 0.0
        %2558 = vmatpush1.msra.mxu0 %v2447
        %2559 = vmatprep.subr.mxu0 0.0
        %2560 = vmatpush1.msra.mxu0 %v2448
        %2561 = vmatprep.subr.mxu0 0.0
        %2562 = vmatpush1.msra.mxu0 %v2449
        %2563 = vmatprep.subr.mxu0 0.0
        %2564 = vmatpush1.msra.mxu0 %v2450
        %2565 = vmatprep.subr.mxu0 0.0
        %2566 = vmatpush1.msra.mxu0 %v2451
        %2567 = vmatprep.subr.mxu0 0.0
        %2568 = vmatpush1.msra.mxu0 %v2452
        %2569 = vmatprep.subr.mxu0 0.0
        %2570 = vmatpush1.msra.mxu0 %v2453
        %2571 = vmatprep.subr.mxu0 0.0
        %2572 = vmatpush1.msra.mxu0 %v2454
        %2573 = vmatprep.subr.mxu0 0.0
        %2574 = vmatpush1.msra.mxu0 %v2455
        %2575 = vmatprep.subr.mxu0 0.0
        %2576 = vmatpush1.msra.mxu0 %v2456
        %2577 = vmatprep.subr.mxu0 0.0
        %2578 = vmatpush1.msra.mxu0 %v2457
        %2579 = vmatprep.subr.mxu0 0.0
        %2580 = vmatpush1.msra.mxu0 %v2458
        %2581 = vmatprep.subr.mxu0 0.0
        %2582 = vmatpush1.msra.mxu0 %v2459
        %2583 = vmatprep.subr.mxu0 0.0
        %2584 = vmatpush1.msra.mxu0 %v2460
        %2585 = vmatprep.subr.mxu0 0.0
        %2586 = vmatpush1.msra.mxu0 %v2461
        %2587 = vmatprep.subr.mxu0 0.0
        %2588 = vmatpush1.msra.mxu0 %v2462
        %2589 = vmatprep.subr.mxu0 0.0
        %2590 = vmatpush1.msra.mxu0 %v2463
        %2591 = vmatprep.subr.mxu0 0.0
        %2592 = vmatpush1.msra.mxu0 %v2464
        %2593 = vmatprep.subr.mxu0 0.0
        %2594 = vmatpush1.msra.mxu0 %v2465
        %2595 = vmatprep.subr.mxu0 0.0
        %2596 = vmatpush1.msra.mxu0 %v2466
        %2597 = vmatprep.subr.mxu0 0.0
        %2598 = vmatpush1.msra.mxu0 %v2467
        %2599 = vmatprep.subr.mxu0 0.0
        %2600 = vmatpush1.msra.mxu0 %v2468
        %2601 = vmatprep.subr.mxu0 0.0
        %2602 = vmatpush1.msra.mxu0 %v2469
        %2603 = vmatprep.subr.mxu0 0.0
        %2604 = vmatpush1.msra.mxu0 %v2470
        %2605 = vmatprep.subr.mxu0 0.0
        %2606 = vmatpush1.msra.mxu0 %v2471
        %2607 = vmatprep.subr.mxu0 0.0
        %2608 = vmatpush1.msra.mxu0 %v2472
        %2609 = vmatprep.subr.mxu0 0.0
        %2610 = vmatpush1.msra.mxu0 %v2473
        %2611 = vmatprep.subr.mxu0 0.0
        %2612 = vmatpush1.msra.mxu0 %v2474
        %2613 = vmatprep.subr.mxu0 0.0
        %2614 = vmatpush1.msra.mxu0 %v2475
        %2615 = vmatprep.subr.mxu0 0.0
        %2616 = vmatpush1.msra.mxu0 %v2476
        %2617 = vmatprep.mubr.f32.mxu0 %v2550
        %2618 = vmatmul.mubr.f32.gmra.mrb[0].mxu0 %v2549
        %v2619 = vpop.f32.mrb[0].mxu0
        %v2620 = vadd.f32 0.0, %v2619
        %v2621 = vpop.f32.mrb[0].mxu0
        %2622 = vdwg.mxu0
        %v2623 = vadd.f32 %v2427, %v2620
        %s2624 = scalar_lea.vmem [#allocation2], 16
        %v2625 = vld [vmem:[%s2624] ss:$8 sm:$0x3]
        %s2626 = scalar_lea.vmem [#allocation2], 48
        %v2627 = vld [vmem:[%s2626] ss:$8 sm:$0x3]
        %s2628 = scalar_lea.vmem [#allocation2], 80
        %v2629 = vld [vmem:[%s2628] ss:$8 sm:$0x3]
        %s2630 = scalar_lea.vmem [#allocation2], 112
        %v2631 = vld [vmem:[%s2630] ss:$8 sm:$0x3]
        %s2632 = scalar_lea.vmem [#allocation2], 144
        %v2633 = vld [vmem:[%s2632] ss:$8 sm:$0x3]
        %s2634 = scalar_lea.vmem [#allocation2], 176
        %v2635 = vld [vmem:[%s2634] ss:$8 sm:$0x3]
        %s2636 = scalar_lea.vmem [#allocation2], 208
        %v2637 = vld [vmem:[%s2636] ss:$8 sm:$0x3]
        %s2638 = scalar_lea.vmem [#allocation2], 240
        %v2639 = vld [vmem:[%s2638] ss:$8 sm:$0x3]
        %s2640 = scalar_lea.vmem [#allocation11], 2048
        %v2641 = vld [vmem:[%s2640] sm:$0xff]
        %v2642 = vld [vmem:[%s2640 + $0x8] sm:$0xff]
        %v2643 = vld [vmem:[%s2640 + $0x10] sm:$0xff]
        %v2644 = vld [vmem:[%s2640 + $0x18] sm:$0xff]
        %v2645 = vld [vmem:[%s2640 + $0x20] sm:$0xff]
        %v2646 = vld [vmem:[%s2640 + $0x28] sm:$0xff]
        %v2647 = vld [vmem:[%s2640 + $0x30] sm:$0xff]
        %v2648 = vld [vmem:[%s2640 + $0x38] sm:$0xff]
        %v2649 = vld [vmem:[%s2640 + $0x40] sm:$0xff]
        %v2650 = vld [vmem:[%s2640 + $0x48] sm:$0xff]
        %v2651 = vld [vmem:[%s2640 + $0x50] sm:$0xff]
        %v2652 = vld [vmem:[%s2640 + $0x58] sm:$0xff]
        %v2653 = vld [vmem:[%s2640 + $0x60] sm:$0xff]
        %v2654 = vld [vmem:[%s2640 + $0x68] sm:$0xff]
        %v2655 = vld [vmem:[%s2640 + $0x70] sm:$0xff]
        %v2656 = vld [vmem:[%s2640 + $0x78] sm:$0xff]
        %v2657 = vld [vmem:[%s2640 + $0x80] sm:$0xff]
        %v2658 = vld [vmem:[%s2640 + $0x88] sm:$0xff]
        %v2659 = vld [vmem:[%s2640 + $0x90] sm:$0xff]
        %v2660 = vld [vmem:[%s2640 + $0x98] sm:$0xff]
        %v2661 = vld [vmem:[%s2640 + $0xa0] sm:$0xff]
        %v2662 = vld [vmem:[%s2640 + $0xa8] sm:$0xff]
        %v2663 = vld [vmem:[%s2640 + $0xb0] sm:$0xff]
        %v2664 = vld [vmem:[%s2640 + $0xb8] sm:$0xff]
        %v2665 = vld [vmem:[%s2640 + $0xc0] sm:$0xff]
        %v2666 = vld [vmem:[%s2640 + $0xc8] sm:$0xff]
        %v2667 = vld [vmem:[%s2640 + $0xd0] sm:$0xff]
        %v2668 = vld [vmem:[%s2640 + $0xd8] sm:$0xff]
        %v2669 = vld [vmem:[%s2640 + $0xe0] sm:$0xff]
        %v2670 = vld [vmem:[%s2640 + $0xe8] sm:$0xff]
        %v2671 = vld [vmem:[%s2640 + $0xf0] sm:$0xff]
        %v2672 = vld [vmem:[%s2640 + $0xf8] sm:$0xff]
        %v2681 = vcombine.low %v2625, %v2627
        %v2682 = vcombine.low %v2629, %v2631
        %v2683 = vcombine.low %v2633, %v2635
        %v2684 = vcombine.low %v2637, %v2639
        %v2686 = vunpack.c.l.s4 1966171168
        %v2687 = vunpack.c.0.s8 %v2686
        %v2688 = vlaneseq
        %v2689 = vshrl.u32 %v2688, 7
        %v2690 = vsub.s32 %v2687, %v2689
        %v2691 = vrot.slane %v2681, %v2690
        %v2693 = vunpack.c.l.s4 1966171168
        %v2694 = vunpack.c.0.s8 %v2693
        %v2695 = vlaneseq
        %v2696 = vshrl.u32 %v2695, 7
        %v2697 = vsub.s32 %v2694, %v2696
        %v2698 = vrot.slane %v2682, %v2697
        %v2700 = vunpack.c.l.s4 1966171168
        %v2701 = vunpack.c.0.s8 %v2700
        %v2702 = vlaneseq
        %v2703 = vshrl.u32 %v2702, 7
        %v2704 = vsub.s32 %v2701, %v2703
        %v2705 = vrot.slane %v2683, %v2704
        %v2707 = vunpack.c.l.s4 1966171168
        %v2708 = vunpack.c.0.s8 %v2707
        %v2709 = vlaneseq
        %v2710 = vshrl.u32 %v2709, 7
        %v2711 = vsub.s32 %v2708, %v2710
        %v2712 = vrot.slane %v2684, %v2711
        %v2713 = vcombine.low %v2691, %v2698
        %v2714 = vcombine.high %v2691, %v2698
        %v2715 = vcombine.low %v2705, %v2712
        %v2716 = vcombine.high %v2705, %v2712
        %v2718 = vunpack.c.l.s4 1966171168
        %v2719 = vunpack.c.0.s8 %v2718
        %v2720 = vlaneseq
        %v2721 = vshrl.u32 %v2720, 7
        %v2722 = vsub.s32 %v2719, %v2721
        %v2723 = vrot.slane %v2713, %v2722
        %v2725 = vunpack.c.l.s4 1966171168
        %v2726 = vunpack.c.0.s8 %v2725
        %v2727 = vlaneseq
        %v2728 = vshrl.u32 %v2727, 7
        %v2729 = vsub.s32 %v2726, %v2728
        %v2730 = vrot.slane %v2714, %v2729
        %v2732 = vunpack.c.l.s4 1966171168
        %v2733 = vunpack.c.0.s8 %v2732
        %v2734 = vlaneseq
        %v2735 = vshrl.u32 %v2734, 7
        %v2736 = vsub.s32 %v2733, %v2735
        %v2737 = vrot.slane %v2715, %v2736
        %v2739 = vunpack.c.l.s4 1966171168
        %v2740 = vunpack.c.0.s8 %v2739
        %v2741 = vlaneseq
        %v2742 = vshrl.u32 %v2741, 7
        %v2743 = vsub.s32 %v2740, %v2742
        %v2744 = vrot.slane %v2716, %v2743
        %v2745 = vcombine.low %v2723, %v2737
        %v2746 = vcombine.low %v2730, %v2744
        %2749 = vmatprep.subr.mxu0 0.0
        %2750 = vmatpush1.msra.mxu0 %v2641
        %2751 = vmatprep.subr.mxu0 0.0
        %2752 = vmatpush1.msra.mxu0 %v2642
        %2753 = vmatprep.subr.mxu0 0.0
        %2754 = vmatpush1.msra.mxu0 %v2643
        %2755 = vmatprep.subr.mxu0 0.0
        %2756 = vmatpush1.msra.mxu0 %v2644
        %2757 = vmatprep.subr.mxu0 0.0
        %2758 = vmatpush1.msra.mxu0 %v2645
        %2759 = vmatprep.subr.mxu0 0.0
        %2760 = vmatpush1.msra.mxu0 %v2646
        %2761 = vmatprep.subr.mxu0 0.0
        %2762 = vmatpush1.msra.mxu0 %v2647
        %2763 = vmatprep.subr.mxu0 0.0
        %2764 = vmatpush1.msra.mxu0 %v2648
        %2765 = vmatprep.subr.mxu0 0.0
        %2766 = vmatpush1.msra.mxu0 %v2649
        %2767 = vmatprep.subr.mxu0 0.0
        %2768 = vmatpush1.msra.mxu0 %v2650
        %2769 = vmatprep.subr.mxu0 0.0
        %2770 = vmatpush1.msra.mxu0 %v2651
        %2771 = vmatprep.subr.mxu0 0.0
        %2772 = vmatpush1.msra.mxu0 %v2652
        %2773 = vmatprep.subr.mxu0 0.0
        %2774 = vmatpush1.msra.mxu0 %v2653
        %2775 = vmatprep.subr.mxu0 0.0
        %2776 = vmatpush1.msra.mxu0 %v2654
        %2777 = vmatprep.subr.mxu0 0.0
        %2778 = vmatpush1.msra.mxu0 %v2655
        %2779 = vmatprep.subr.mxu0 0.0
        %2780 = vmatpush1.msra.mxu0 %v2656
        %2781 = vmatprep.subr.mxu0 0.0
        %2782 = vmatpush1.msra.mxu0 %v2657
        %2783 = vmatprep.subr.mxu0 0.0
        %2784 = vmatpush1.msra.mxu0 %v2658
        %2785 = vmatprep.subr.mxu0 0.0
        %2786 = vmatpush1.msra.mxu0 %v2659
        %2787 = vmatprep.subr.mxu0 0.0
        %2788 = vmatpush1.msra.mxu0 %v2660
        %2789 = vmatprep.subr.mxu0 0.0
        %2790 = vmatpush1.msra.mxu0 %v2661
        %2791 = vmatprep.subr.mxu0 0.0
        %2792 = vmatpush1.msra.mxu0 %v2662
        %2793 = vmatprep.subr.mxu0 0.0
        %2794 = vmatpush1.msra.mxu0 %v2663
        %2795 = vmatprep.subr.mxu0 0.0
        %2796 = vmatpush1.msra.mxu0 %v2664
        %2797 = vmatprep.subr.mxu0 0.0
        %2798 = vmatpush1.msra.mxu0 %v2665
        %2799 = vmatprep.subr.mxu0 0.0
        %2800 = vmatpush1.msra.mxu0 %v2666
        %2801 = vmatprep.subr.mxu0 0.0
        %2802 = vmatpush1.msra.mxu0 %v2667
        %2803 = vmatprep.subr.mxu0 0.0
        %2804 = vmatpush1.msra.mxu0 %v2668
        %2805 = vmatprep.subr.mxu0 0.0
        %2806 = vmatpush1.msra.mxu0 %v2669
        %2807 = vmatprep.subr.mxu0 0.0
        %2808 = vmatpush1.msra.mxu0 %v2670
        %2809 = vmatprep.subr.mxu0 0.0
        %2810 = vmatpush1.msra.mxu0 %v2671
        %2811 = vmatprep.subr.mxu0 0.0
        %2812 = vmatpush1.msra.mxu0 %v2672
        %2813 = vmatprep.mubr.f32.mxu0 %v2746
        %2814 = vmatmul.mubr.f32.gmra.mrb[0].mxu0 %v2745
        %v2815 = vpop.f32.mrb[0].mxu0
        %v2816 = vadd.f32 0.0, %v2815
        %v2817 = vpop.f32.mrb[0].mxu0
        %2818 = vdwg.mxu0
        %v2819 = vadd.f32 %v2623, %v2816
        %s2820 = scalar_lea.vmem [#allocation2], 17
        %v2821 = vld [vmem:[%s2820] ss:$8 sm:$0x3]
        %s2822 = scalar_lea.vmem [#allocation2], 49
        %v2823 = vld [vmem:[%s2822] ss:$8 sm:$0x3]
        %s2824 = scalar_lea.vmem [#allocation2], 81
        %v2825 = vld [vmem:[%s2824] ss:$8 sm:$0x3]
        %s2826 = scalar_lea.vmem [#allocation2], 113
        %v2827 = vld [vmem:[%s2826] ss:$8 sm:$0x3]
        %s2828 = scalar_lea.vmem [#allocation2], 145
        %v2829 = vld [vmem:[%s2828] ss:$8 sm:$0x3]
        %s2830 = scalar_lea.vmem [#allocation2], 177
        %v2831 = vld [vmem:[%s2830] ss:$8 sm:$0x3]
        %s2832 = scalar_lea.vmem [#allocation2], 209
        %v2833 = vld [vmem:[%s2832] ss:$8 sm:$0x3]
        %s2834 = scalar_lea.vmem [#allocation2], 241
        %v2835 = vld [vmem:[%s2834] ss:$8 sm:$0x3]
        %s2836 = scalar_lea.vmem [#allocation11], 2304
        %v2837 = vld [vmem:[%s2836] sm:$0xff]
        %v2838 = vld [vmem:[%s2836 + $0x8] sm:$0xff]
        %v2839 = vld [vmem:[%s2836 + $0x10] sm:$0xff]
        %v2840 = vld [vmem:[%s2836 + $0x18] sm:$0xff]
        %v2841 = vld [vmem:[%s2836 + $0x20] sm:$0xff]
        %v2842 = vld [vmem:[%s2836 + $0x28] sm:$0xff]
        %v2843 = vld [vmem:[%s2836 + $0x30] sm:$0xff]
        %v2844 = vld [vmem:[%s2836 + $0x38] sm:$0xff]
        %v2845 = vld [vmem:[%s2836 + $0x40] sm:$0xff]
        %v2846 = vld [vmem:[%s2836 + $0x48] sm:$0xff]
        %v2847 = vld [vmem:[%s2836 + $0x50] sm:$0xff]
        %v2848 = vld [vmem:[%s2836 + $0x58] sm:$0xff]
        %v2849 = vld [vmem:[%s2836 + $0x60] sm:$0xff]
        %v2850 = vld [vmem:[%s2836 + $0x68] sm:$0xff]
        %v2851 = vld [vmem:[%s2836 + $0x70] sm:$0xff]
        %v2852 = vld [vmem:[%s2836 + $0x78] sm:$0xff]
        %v2853 = vld [vmem:[%s2836 + $0x80] sm:$0xff]
        %v2854 = vld [vmem:[%s2836 + $0x88] sm:$0xff]
        %v2855 = vld [vmem:[%s2836 + $0x90] sm:$0xff]
        %v2856 = vld [vmem:[%s2836 + $0x98] sm:$0xff]
        %v2857 = vld [vmem:[%s2836 + $0xa0] sm:$0xff]
        %v2858 = vld [vmem:[%s2836 + $0xa8] sm:$0xff]
        %v2859 = vld [vmem:[%s2836 + $0xb0] sm:$0xff]
        %v2860 = vld [vmem:[%s2836 + $0xb8] sm:$0xff]
        %v2861 = vld [vmem:[%s2836 + $0xc0] sm:$0xff]
        %v2862 = vld [vmem:[%s2836 + $0xc8] sm:$0xff]
        %v2863 = vld [vmem:[%s2836 + $0xd0] sm:$0xff]
        %v2864 = vld [vmem:[%s2836 + $0xd8] sm:$0xff]
        %v2865 = vld [vmem:[%s2836 + $0xe0] sm:$0xff]
        %v2866 = vld [vmem:[%s2836 + $0xe8] sm:$0xff]
        %v2867 = vld [vmem:[%s2836 + $0xf0] sm:$0xff]
        %v2868 = vld [vmem:[%s2836 + $0xf8] sm:$0xff]
        %v2877 = vcombine.low %v2821, %v2823
        %v2878 = vcombine.low %v2825, %v2827
        %v2879 = vcombine.low %v2829, %v2831
        %v2880 = vcombine.low %v2833, %v2835
        %v2882 = vunpack.c.l.s4 1966171168
        %v2883 = vunpack.c.0.s8 %v2882
        %v2884 = vlaneseq
        %v2885 = vshrl.u32 %v2884, 7
        %v2886 = vsub.s32 %v2883, %v2885
        %v2887 = vrot.slane %v2877, %v2886
        %v2889 = vunpack.c.l.s4 1966171168
        %v2890 = vunpack.c.0.s8 %v2889
        %v2891 = vlaneseq
        %v2892 = vshrl.u32 %v2891, 7
        %v2893 = vsub.s32 %v2890, %v2892
        %v2894 = vrot.slane %v2878, %v2893
        %v2896 = vunpack.c.l.s4 1966171168
        %v2897 = vunpack.c.0.s8 %v2896
        %v2898 = vlaneseq
        %v2899 = vshrl.u32 %v2898, 7
        %v2900 = vsub.s32 %v2897, %v2899
        %v2901 = vrot.slane %v2879, %v2900
        %v2903 = vunpack.c.l.s4 1966171168
        %v2904 = vunpack.c.0.s8 %v2903
        %v2905 = vlaneseq
        %v2906 = vshrl.u32 %v2905, 7
        %v2907 = vsub.s32 %v2904, %v2906
        %v2908 = vrot.slane %v2880, %v2907
        %v2909 = vcombine.low %v2887, %v2894
        %v2910 = vcombine.high %v2887, %v2894
        %v2911 = vcombine.low %v2901, %v2908
        %v2912 = vcombine.high %v2901, %v2908
        %v2914 = vunpack.c.l.s4 1966171168
        %v2915 = vunpack.c.0.s8 %v2914
        %v2916 = vlaneseq
        %v2917 = vshrl.u32 %v2916, 7
        %v2918 = vsub.s32 %v2915, %v2917
        %v2919 = vrot.slane %v2909, %v2918
        %v2921 = vunpack.c.l.s4 1966171168
        %v2922 = vunpack.c.0.s8 %v2921
        %v2923 = vlaneseq
        %v2924 = vshrl.u32 %v2923, 7
        %v2925 = vsub.s32 %v2922, %v2924
        %v2926 = vrot.slane %v2910, %v2925
        %v2928 = vunpack.c.l.s4 1966171168
        %v2929 = vunpack.c.0.s8 %v2928
        %v2930 = vlaneseq
        %v2931 = vshrl.u32 %v2930, 7
        %v2932 = vsub.s32 %v2929, %v2931
        %v2933 = vrot.slane %v2911, %v2932
        %v2935 = vunpack.c.l.s4 1966171168
        %v2936 = vunpack.c.0.s8 %v2935
        %v2937 = vlaneseq
        %v2938 = vshrl.u32 %v2937, 7
        %v2939 = vsub.s32 %v2936, %v2938
        %v2940 = vrot.slane %v2912, %v2939
        %v2941 = vcombine.low %v2919, %v2933
        %v2942 = vcombine.low %v2926, %v2940
        %2945 = vmatprep.subr.mxu0 0.0
        %2946 = vmatpush1.msra.mxu0 %v2837
        %2947 = vmatprep.subr.mxu0 0.0
        %2948 = vmatpush1.msra.mxu0 %v2838
        %2949 = vmatprep.subr.mxu0 0.0
        %2950 = vmatpush1.msra.mxu0 %v2839
        %2951 = vmatprep.subr.mxu0 0.0
        %2952 = vmatpush1.msra.mxu0 %v2840
        %2953 = vmatprep.subr.mxu0 0.0
        %2954 = vmatpush1.msra.mxu0 %v2841
        %2955 = vmatprep.subr.mxu0 0.0
        %2956 = vmatpush1.msra.mxu0 %v2842
        %2957 = vmatprep.subr.mxu0 0.0
        %2958 = vmatpush1.msra.mxu0 %v2843
        %2959 = vmatprep.subr.mxu0 0.0
        %2960 = vmatpush1.msra.mxu0 %v2844
        %2961 = vmatprep.subr.mxu0 0.0
        %2962 = vmatpush1.msra.mxu0 %v2845
        %2963 = vmatprep.subr.mxu0 0.0
        %2964 = vmatpush1.msra.mxu0 %v2846
        %2965 = vmatprep.subr.mxu0 0.0
        %2966 = vmatpush1.msra.mxu0 %v2847
        %2967 = vmatprep.subr.mxu0 0.0
        %2968 = vmatpush1.msra.mxu0 %v2848
        %2969 = vmatprep.subr.mxu0 0.0
        %2970 = vmatpush1.msra.mxu0 %v2849
        %2971 = vmatprep.subr.mxu0 0.0
        %2972 = vmatpush1.msra.mxu0 %v2850
        %2973 = vmatprep.subr.mxu0 0.0
        %2974 = vmatpush1.msra.mxu0 %v2851
        %2975 = vmatprep.subr.mxu0 0.0
        %2976 = vmatpush1.msra.mxu0 %v2852
        %2977 = vmatprep.subr.mxu0 0.0
        %2978 = vmatpush1.msra.mxu0 %v2853
        %2979 = vmatprep.subr.mxu0 0.0
        %2980 = vmatpush1.msra.mxu0 %v2854
        %2981 = vmatprep.subr.mxu0 0.0
        %2982 = vmatpush1.msra.mxu0 %v2855
        %2983 = vmatprep.subr.mxu0 0.0
        %2984 = vmatpush1.msra.mxu0 %v2856
        %2985 = vmatprep.subr.mxu0 0.0
        %2986 = vmatpush1.msra.mxu0 %v2857
        %2987 = vmatprep.subr.mxu0 0.0
        %2988 = vmatpush1.msra.mxu0 %v2858
        %2989 = vmatprep.subr.mxu0 0.0
        %2990 = vmatpush1.msra.mxu0 %v2859
        %2991 = vmatprep.subr.mxu0 0.0
        %2992 = vmatpush1.msra.mxu0 %v2860
        %2993 = vmatprep.subr.mxu0 0.0
        %2994 = vmatpush1.msra.mxu0 %v2861
        %2995 = vmatprep.subr.mxu0 0.0
        %2996 = vmatpush1.msra.mxu0 %v2862
        %2997 = vmatprep.subr.mxu0 0.0
        %2998 = vmatpush1.msra.mxu0 %v2863
        %2999 = vmatprep.subr.mxu0 0.0
        %3000 = vmatpush1.msra.mxu0 %v2864
        %3001 = vmatprep.subr.mxu0 0.0
        %3002 = vmatpush1.msra.mxu0 %v2865
        %3003 = vmatprep.subr.mxu0 0.0
        %3004 = vmatpush1.msra.mxu0 %v2866
        %3005 = vmatprep.subr.mxu0 0.0
        %3006 = vmatpush1.msra.mxu0 %v2867
        %3007 = vmatprep.subr.mxu0 0.0
        %3008 = vmatpush1.msra.mxu0 %v2868
        %3009 = vmatprep.mubr.f32.mxu0 %v2942
        %3010 = vmatmul.mubr.f32.gmra.mrb[0].mxu0 %v2941
        %v3011 = vpop.f32.mrb[0].mxu0
        %v3012 = vadd.f32 0.0, %v3011
        %v3013 = vpop.f32.mrb[0].mxu0
        %3014 = vdwg.mxu0
        %v3015 = vadd.f32 %v2819, %v3012
        %s3016 = scalar_lea.vmem [#allocation2], 18
        %v3017 = vld [vmem:[%s3016] ss:$8 sm:$0x3]
        %s3018 = scalar_lea.vmem [#allocation2], 50
        %v3019 = vld [vmem:[%s3018] ss:$8 sm:$0x3]
        %s3020 = scalar_lea.vmem [#allocation2], 82
        %v3021 = vld [vmem:[%s3020] ss:$8 sm:$0x3]
        %s3022 = scalar_lea.vmem [#allocation2], 114
        %v3023 = vld [vmem:[%s3022] ss:$8 sm:$0x3]
        %s3024 = scalar_lea.vmem [#allocation2], 146
        %v3025 = vld [vmem:[%s3024] ss:$8 sm:$0x3]
        %s3026 = scalar_lea.vmem [#allocation2], 178
        %v3027 = vld [vmem:[%s3026] ss:$8 sm:$0x3]
        %s3028 = scalar_lea.vmem [#allocation2], 210
        %v3029 = vld [vmem:[%s3028] ss:$8 sm:$0x3]
        %s3030 = scalar_lea.vmem [#allocation2], 242
        %v3031 = vld [vmem:[%s3030] ss:$8 sm:$0x3]
        %s3032 = scalar_lea.vmem [#allocation11], 2560
        %v3033 = vld [vmem:[%s3032] sm:$0xff]
        %v3034 = vld [vmem:[%s3032 + $0x8] sm:$0xff]
        %v3035 = vld [vmem:[%s3032 + $0x10] sm:$0xff]
        %v3036 = vld [vmem:[%s3032 + $0x18] sm:$0xff]
        %v3037 = vld [vmem:[%s3032 + $0x20] sm:$0xff]
        %v3038 = vld [vmem:[%s3032 + $0x28] sm:$0xff]
        %v3039 = vld [vmem:[%s3032 + $0x30] sm:$0xff]
        %v3040 = vld [vmem:[%s3032 + $0x38] sm:$0xff]
        %v3041 = vld [vmem:[%s3032 + $0x40] sm:$0xff]
        %v3042 = vld [vmem:[%s3032 + $0x48] sm:$0xff]
        %v3043 = vld [vmem:[%s3032 + $0x50] sm:$0xff]
        %v3044 = vld [vmem:[%s3032 + $0x58] sm:$0xff]
        %v3045 = vld [vmem:[%s3032 + $0x60] sm:$0xff]
        %v3046 = vld [vmem:[%s3032 + $0x68] sm:$0xff]
        %v3047 = vld [vmem:[%s3032 + $0x70] sm:$0xff]
        %v3048 = vld [vmem:[%s3032 + $0x78] sm:$0xff]
        %v3049 = vld [vmem:[%s3032 + $0x80] sm:$0xff]
        %v3050 = vld [vmem:[%s3032 + $0x88] sm:$0xff]
        %v3051 = vld [vmem:[%s3032 + $0x90] sm:$0xff]
        %v3052 = vld [vmem:[%s3032 + $0x98] sm:$0xff]
        %v3053 = vld [vmem:[%s3032 + $0xa0] sm:$0xff]
        %v3054 = vld [vmem:[%s3032 + $0xa8] sm:$0xff]
        %v3055 = vld [vmem:[%s3032 + $0xb0] sm:$0xff]
        %v3056 = vld [vmem:[%s3032 + $0xb8] sm:$0xff]
        %v3057 = vld [vmem:[%s3032 + $0xc0] sm:$0xff]
        %v3058 = vld [vmem:[%s3032 + $0xc8] sm:$0xff]
        %v3059 = vld [vmem:[%s3032 + $0xd0] sm:$0xff]
        %v3060 = vld [vmem:[%s3032 + $0xd8] sm:$0xff]
        %v3061 = vld [vmem:[%s3032 + $0xe0] sm:$0xff]
        %v3062 = vld [vmem:[%s3032 + $0xe8] sm:$0xff]
        %v3063 = vld [vmem:[%s3032 + $0xf0] sm:$0xff]
        %v3064 = vld [vmem:[%s3032 + $0xf8] sm:$0xff]
        %v3073 = vcombine.low %v3017, %v3019
        %v3074 = vcombine.low %v3021, %v3023
        %v3075 = vcombine.low %v3025, %v3027
        %v3076 = vcombine.low %v3029, %v3031
        %v3078 = vunpack.c.l.s4 1966171168
        %v3079 = vunpack.c.0.s8 %v3078
        %v3080 = vlaneseq
        %v3081 = vshrl.u32 %v3080, 7
        %v3082 = vsub.s32 %v3079, %v3081
        %v3083 = vrot.slane %v3073, %v3082
        %v3085 = vunpack.c.l.s4 1966171168
        %v3086 = vunpack.c.0.s8 %v3085
        %v3087 = vlaneseq
        %v3088 = vshrl.u32 %v3087, 7
        %v3089 = vsub.s32 %v3086, %v3088
        %v3090 = vrot.slane %v3074, %v3089
        %v3092 = vunpack.c.l.s4 1966171168
        %v3093 = vunpack.c.0.s8 %v3092
        %v3094 = vlaneseq
        %v3095 = vshrl.u32 %v3094, 7
        %v3096 = vsub.s32 %v3093, %v3095
        %v3097 = vrot.slane %v3075, %v3096
        %v3099 = vunpack.c.l.s4 1966171168
        %v3100 = vunpack.c.0.s8 %v3099
        %v3101 = vlaneseq
        %v3102 = vshrl.u32 %v3101, 7
        %v3103 = vsub.s32 %v3100, %v3102
        %v3104 = vrot.slane %v3076, %v3103
        %v3105 = vcombine.low %v3083, %v3090
        %v3106 = vcombine.high %v3083, %v3090
        %v3107 = vcombine.low %v3097, %v3104
        %v3108 = vcombine.high %v3097, %v3104
        %v3110 = vunpack.c.l.s4 1966171168
        %v3111 = vunpack.c.0.s8 %v3110
        %v3112 = vlaneseq
        %v3113 = vshrl.u32 %v3112, 7
        %v3114 = vsub.s32 %v3111, %v3113
        %v3115 = vrot.slane %v3105, %v3114
        %v3117 = vunpack.c.l.s4 1966171168
        %v3118 = vunpack.c.0.s8 %v3117
        %v3119 = vlaneseq
        %v3120 = vshrl.u32 %v3119, 7
        %v3121 = vsub.s32 %v3118, %v3120
        %v3122 = vrot.slane %v3106, %v3121
        %v3124 = vunpack.c.l.s4 1966171168
        %v3125 = vunpack.c.0.s8 %v3124
        %v3126 = vlaneseq
        %v3127 = vshrl.u32 %v3126, 7
        %v3128 = vsub.s32 %v3125, %v3127
        %v3129 = vrot.slane %v3107, %v3128
        %v3131 = vunpack.c.l.s4 1966171168
        %v3132 = vunpack.c.0.s8 %v3131
        %v3133 = vlaneseq
        %v3134 = vshrl.u32 %v3133, 7
        %v3135 = vsub.s32 %v3132, %v3134
        %v3136 = vrot.slane %v3108, %v3135
        %v3137 = vcombine.low %v3115, %v3129
        %v3138 = vcombine.low %v3122, %v3136
        %3141 = vmatprep.subr.mxu0 0.0
        %3142 = vmatpush1.msra.mxu0 %v3033
        %3143 = vmatprep.subr.mxu0 0.0
        %3144 = vmatpush1.msra.mxu0 %v3034
        %3145 = vmatprep.subr.mxu0 0.0
        %3146 = vmatpush1.msra.mxu0 %v3035
        %3147 = vmatprep.subr.mxu0 0.0
        %3148 = vmatpush1.msra.mxu0 %v3036
        %3149 = vmatprep.subr.mxu0 0.0
        %3150 = vmatpush1.msra.mxu0 %v3037
        %3151 = vmatprep.subr.mxu0 0.0
        %3152 = vmatpush1.msra.mxu0 %v3038
        %3153 = vmatprep.subr.mxu0 0.0
        %3154 = vmatpush1.msra.mxu0 %v3039
        %3155 = vmatprep.subr.mxu0 0.0
        %3156 = vmatpush1.msra.mxu0 %v3040
        %3157 = vmatprep.subr.mxu0 0.0
        %3158 = vmatpush1.msra.mxu0 %v3041
        %3159 = vmatprep.subr.mxu0 0.0
        %3160 = vmatpush1.msra.mxu0 %v3042
        %3161 = vmatprep.subr.mxu0 0.0
        %3162 = vmatpush1.msra.mxu0 %v3043
        %3163 = vmatprep.subr.mxu0 0.0
        %3164 = vmatpush1.msra.mxu0 %v3044
        %3165 = vmatprep.subr.mxu0 0.0
        %3166 = vmatpush1.msra.mxu0 %v3045
        %3167 = vmatprep.subr.mxu0 0.0
        %3168 = vmatpush1.msra.mxu0 %v3046
        %3169 = vmatprep.subr.mxu0 0.0
        %3170 = vmatpush1.msra.mxu0 %v3047
        %3171 = vmatprep.subr.mxu0 0.0
        %3172 = vmatpush1.msra.mxu0 %v3048
        %3173 = vmatprep.subr.mxu0 0.0
        %3174 = vmatpush1.msra.mxu0 %v3049
        %3175 = vmatprep.subr.mxu0 0.0
        %3176 = vmatpush1.msra.mxu0 %v3050
        %3177 = vmatprep.subr.mxu0 0.0
        %3178 = vmatpush1.msra.mxu0 %v3051
        %3179 = vmatprep.subr.mxu0 0.0
        %3180 = vmatpush1.msra.mxu0 %v3052
        %3181 = vmatprep.subr.mxu0 0.0
        %3182 = vmatpush1.msra.mxu0 %v3053
        %3183 = vmatprep.subr.mxu0 0.0
        %3184 = vmatpush1.msra.mxu0 %v3054
        %3185 = vmatprep.subr.mxu0 0.0
        %3186 = vmatpush1.msra.mxu0 %v3055
        %3187 = vmatprep.subr.mxu0 0.0
        %3188 = vmatpush1.msra.mxu0 %v3056
        %3189 = vmatprep.subr.mxu0 0.0
        %3190 = vmatpush1.msra.mxu0 %v3057
        %3191 = vmatprep.subr.mxu0 0.0
        %3192 = vmatpush1.msra.mxu0 %v3058
        %3193 = vmatprep.subr.mxu0 0.0
        %3194 = vmatpush1.msra.mxu0 %v3059
        %3195 = vmatprep.subr.mxu0 0.0
        %3196 = vmatpush1.msra.mxu0 %v3060
        %3197 = vmatprep.subr.mxu0 0.0
        %3198 = vmatpush1.msra.mxu0 %v3061
        %3199 = vmatprep.subr.mxu0 0.0
        %3200 = vmatpush1.msra.mxu0 %v3062
        %3201 = vmatprep.subr.mxu0 0.0
        %3202 = vmatpush1.msra.mxu0 %v3063
        %3203 = vmatprep.subr.mxu0 0.0
        %3204 = vmatpush1.msra.mxu0 %v3064
        %3205 = vmatprep.mubr.f32.mxu0 %v3138
        %3206 = vmatmul.mubr.f32.gmra.mrb[0].mxu0 %v3137
        %v3207 = vpop.f32.mrb[0].mxu0
        %v3208 = vadd.f32 0.0, %v3207
        %v3209 = vpop.f32.mrb[0].mxu0
        %3210 = vdwg.mxu0
        %v3211 = vadd.f32 %v3015, %v3208
        %s3212 = scalar_lea.vmem [#allocation2], 19
        %v3213 = vld [vmem:[%s3212] ss:$8 sm:$0x3]
        %s3214 = scalar_lea.vmem [#allocation2], 51
        %v3215 = vld [vmem:[%s3214] ss:$8 sm:$0x3]
        %s3216 = scalar_lea.vmem [#allocation2], 83
        %v3217 = vld [vmem:[%s3216] ss:$8 sm:$0x3]
        %s3218 = scalar_lea.vmem [#allocation2], 115
        %v3219 = vld [vmem:[%s3218] ss:$8 sm:$0x3]
        %s3220 = scalar_lea.vmem [#allocation2], 147
        %v3221 = vld [vmem:[%s3220] ss:$8 sm:$0x3]
        %s3222 = scalar_lea.vmem [#allocation2], 179
        %v3223 = vld [vmem:[%s3222] ss:$8 sm:$0x3]
        %s3224 = scalar_lea.vmem [#allocation2], 211
        %v3225 = vld [vmem:[%s3224] ss:$8 sm:$0x3]
        %s3226 = scalar_lea.vmem [#allocation2], 243
        %v3227 = vld [vmem:[%s3226] ss:$8 sm:$0x3]
        %s3228 = scalar_lea.vmem [#allocation11], 2816
        %v3229 = vld [vmem:[%s3228] sm:$0xff]
        %v3230 = vld [vmem:[%s3228 + $0x8] sm:$0xff]
        %v3231 = vld [vmem:[%s3228 + $0x10] sm:$0xff]
        %v3232 = vld [vmem:[%s3228 + $0x18] sm:$0xff]
        %v3233 = vld [vmem:[%s3228 + $0x20] sm:$0xff]
        %v3234 = vld [vmem:[%s3228 + $0x28] sm:$0xff]
        %v3235 = vld [vmem:[%s3228 + $0x30] sm:$0xff]
        %v3236 = vld [vmem:[%s3228 + $0x38] sm:$0xff]
        %v3237 = vld [vmem:[%s3228 + $0x40] sm:$0xff]
        %v3238 = vld [vmem:[%s3228 + $0x48] sm:$0xff]
        %v3239 = vld [vmem:[%s3228 + $0x50] sm:$0xff]
        %v3240 = vld [vmem:[%s3228 + $0x58] sm:$0xff]
        %v3241 = vld [vmem:[%s3228 + $0x60] sm:$0xff]
        %v3242 = vld [vmem:[%s3228 + $0x68] sm:$0xff]
        %v3243 = vld [vmem:[%s3228 + $0x70] sm:$0xff]
        %v3244 = vld [vmem:[%s3228 + $0x78] sm:$0xff]
        %v3245 = vld [vmem:[%s3228 + $0x80] sm:$0xff]
        %v3246 = vld [vmem:[%s3228 + $0x88] sm:$0xff]
        %v3247 = vld [vmem:[%s3228 + $0x90] sm:$0xff]
        %v3248 = vld [vmem:[%s3228 + $0x98] sm:$0xff]
        %v3249 = vld [vmem:[%s3228 + $0xa0] sm:$0xff]
        %v3250 = vld [vmem:[%s3228 + $0xa8] sm:$0xff]
        %v3251 = vld [vmem:[%s3228 + $0xb0] sm:$0xff]
        %v3252 = vld [vmem:[%s3228 + $0xb8] sm:$0xff]
        %v3253 = vld [vmem:[%s3228 + $0xc0] sm:$0xff]
        %v3254 = vld [vmem:[%s3228 + $0xc8] sm:$0xff]
        %v3255 = vld [vmem:[%s3228 + $0xd0] sm:$0xff]
        %v3256 = vld [vmem:[%s3228 + $0xd8] sm:$0xff]
        %v3257 = vld [vmem:[%s3228 + $0xe0] sm:$0xff]
        %v3258 = vld [vmem:[%s3228 + $0xe8] sm:$0xff]
        %v3259 = vld [vmem:[%s3228 + $0xf0] sm:$0xff]
        %v3260 = vld [vmem:[%s3228 + $0xf8] sm:$0xff]
        %v3269 = vcombine.low %v3213, %v3215
        %v3270 = vcombine.low %v3217, %v3219
        %v3271 = vcombine.low %v3221, %v3223
        %v3272 = vcombine.low %v3225, %v3227
        %v3274 = vunpack.c.l.s4 1966171168
        %v3275 = vunpack.c.0.s8 %v3274
        %v3276 = vlaneseq
        %v3277 = vshrl.u32 %v3276, 7
        %v3278 = vsub.s32 %v3275, %v3277
        %v3279 = vrot.slane %v3269, %v3278
        %v3281 = vunpack.c.l.s4 1966171168
        %v3282 = vunpack.c.0.s8 %v3281
        %v3283 = vlaneseq
        %v3284 = vshrl.u32 %v3283, 7
        %v3285 = vsub.s32 %v3282, %v3284
        %v3286 = vrot.slane %v3270, %v3285
        %v3288 = vunpack.c.l.s4 1966171168
        %v3289 = vunpack.c.0.s8 %v3288
        %v3290 = vlaneseq
        %v3291 = vshrl.u32 %v3290, 7
        %v3292 = vsub.s32 %v3289, %v3291
        %v3293 = vrot.slane %v3271, %v3292
        %v3295 = vunpack.c.l.s4 1966171168
        %v3296 = vunpack.c.0.s8 %v3295
        %v3297 = vlaneseq
        %v3298 = vshrl.u32 %v3297, 7
        %v3299 = vsub.s32 %v3296, %v3298
        %v3300 = vrot.slane %v3272, %v3299
        %v3301 = vcombine.low %v3279, %v3286
        %v3302 = vcombine.high %v3279, %v3286
        %v3303 = vcombine.low %v3293, %v3300
        %v3304 = vcombine.high %v3293, %v3300
        %v3306 = vunpack.c.l.s4 1966171168
        %v3307 = vunpack.c.0.s8 %v3306
        %v3308 = vlaneseq
        %v3309 = vshrl.u32 %v3308, 7
        %v3310 = vsub.s32 %v3307, %v3309
        %v3311 = vrot.slane %v3301, %v3310
        %v3313 = vunpack.c.l.s4 1966171168
        %v3314 = vunpack.c.0.s8 %v3313
        %v3315 = vlaneseq
        %v3316 = vshrl.u32 %v3315, 7
        %v3317 = vsub.s32 %v3314, %v3316
        %v3318 = vrot.slane %v3302, %v3317
        %v3320 = vunpack.c.l.s4 1966171168
        %v3321 = vunpack.c.0.s8 %v3320
        %v3322 = vlaneseq
        %v3323 = vshrl.u32 %v3322, 7
        %v3324 = vsub.s32 %v3321, %v3323
        %v3325 = vrot.slane %v3303, %v3324
        %v3327 = vunpack.c.l.s4 1966171168
        %v3328 = vunpack.c.0.s8 %v3327
        %v3329 = vlaneseq
        %v3330 = vshrl.u32 %v3329, 7
        %v3331 = vsub.s32 %v3328, %v3330
        %v3332 = vrot.slane %v3304, %v3331
        %v3333 = vcombine.low %v3311, %v3325
        %v3334 = vcombine.low %v3318, %v3332
        %3337 = vmatprep.subr.mxu0 0.0
        %3338 = vmatpush1.msra.mxu0 %v3229
        %3339 = vmatprep.subr.mxu0 0.0
        %3340 = vmatpush1.msra.mxu0 %v3230
        %3341 = vmatprep.subr.mxu0 0.0
        %3342 = vmatpush1.msra.mxu0 %v3231
        %3343 = vmatprep.subr.mxu0 0.0
        %3344 = vmatpush1.msra.mxu0 %v3232
        %3345 = vmatprep.subr.mxu0 0.0
        %3346 = vmatpush1.msra.mxu0 %v3233
        %3347 = vmatprep.subr.mxu0 0.0
        %3348 = vmatpush1.msra.mxu0 %v3234
        %3349 = vmatprep.subr.mxu0 0.0
        %3350 = vmatpush1.msra.mxu0 %v3235
        %3351 = vmatprep.subr.mxu0 0.0
        %3352 = vmatpush1.msra.mxu0 %v3236
        %3353 = vmatprep.subr.mxu0 0.0
        %3354 = vmatpush1.msra.mxu0 %v3237
        %3355 = vmatprep.subr.mxu0 0.0
        %3356 = vmatpush1.msra.mxu0 %v3238
        %3357 = vmatprep.subr.mxu0 0.0
        %3358 = vmatpush1.msra.mxu0 %v3239
        %3359 = vmatprep.subr.mxu0 0.0
        %3360 = vmatpush1.msra.mxu0 %v3240
        %3361 = vmatprep.subr.mxu0 0.0
        %3362 = vmatpush1.msra.mxu0 %v3241
        %3363 = vmatprep.subr.mxu0 0.0
        %3364 = vmatpush1.msra.mxu0 %v3242
        %3365 = vmatprep.subr.mxu0 0.0
        %3366 = vmatpush1.msra.mxu0 %v3243
        %3367 = vmatprep.subr.mxu0 0.0
        %3368 = vmatpush1.msra.mxu0 %v3244
        %3369 = vmatprep.subr.mxu0 0.0
        %3370 = vmatpush1.msra.mxu0 %v3245
        %3371 = vmatprep.subr.mxu0 0.0
        %3372 = vmatpush1.msra.mxu0 %v3246
        %3373 = vmatprep.subr.mxu0 0.0
        %3374 = vmatpush1.msra.mxu0 %v3247
        %3375 = vmatprep.subr.mxu0 0.0
        %3376 = vmatpush1.msra.mxu0 %v3248
        %3377 = vmatprep.subr.mxu0 0.0
        %3378 = vmatpush1.msra.mxu0 %v3249
        %3379 = vmatprep.subr.mxu0 0.0
        %3380 = vmatpush1.msra.mxu0 %v3250
        %3381 = vmatprep.subr.mxu0 0.0
        %3382 = vmatpush1.msra.mxu0 %v3251
        %3383 = vmatprep.subr.mxu0 0.0
        %3384 = vmatpush1.msra.mxu0 %v3252
        %3385 = vmatprep.subr.mxu0 0.0
        %3386 = vmatpush1.msra.mxu0 %v3253
        %3387 = vmatprep.subr.mxu0 0.0
        %3388 = vmatpush1.msra.mxu0 %v3254
        %3389 = vmatprep.subr.mxu0 0.0
        %3390 = vmatpush1.msra.mxu0 %v3255
        %3391 = vmatprep.subr.mxu0 0.0
        %3392 = vmatpush1.msra.mxu0 %v3256
        %3393 = vmatprep.subr.mxu0 0.0
        %3394 = vmatpush1.msra.mxu0 %v3257
        %3395 = vmatprep.subr.mxu0 0.0
        %3396 = vmatpush1.msra.mxu0 %v3258
        %3397 = vmatprep.subr.mxu0 0.0
        %3398 = vmatpush1.msra.mxu0 %v3259
        %3399 = vmatprep.subr.mxu0 0.0
        %3400 = vmatpush1.msra.mxu0 %v3260
        %3401 = vmatprep.mubr.f32.mxu0 %v3334
        %3402 = vmatmul.mubr.f32.gmra.mrb[0].mxu0 %v3333
        %v3403 = vpop.f32.mrb[0].mxu0
        %v3404 = vadd.f32 0.0, %v3403
        %v3405 = vpop.f32.mrb[0].mxu0
        %3406 = vdwg.mxu0
        %v3407 = vadd.f32 %v3211, %v3404
        %v3408 = vmax.f32 %v3407, 0.0
        %v3409 = vld [vmem:[#allocation14] sm:$0xff]
        %v3410 = vld [vmem:[#allocation14 + $0x8] sm:$0xff]
        %v3411 = vld [vmem:[#allocation14 + $0x10] sm:$0xff]
        %v3412 = vld [vmem:[#allocation14 + $0x18] sm:$0xff]
        %v3413 = vld [vmem:[#allocation14 + $0x20] sm:$0xff]
        %v3414 = vld [vmem:[#allocation14 + $0x28] sm:$0xff]
        %v3415 = vld [vmem:[#allocation14 + $0x30] sm:$0xff]
        %v3416 = vld [vmem:[#allocation14 + $0x38] sm:$0xff]
        %v3417 = vld [vmem:[#allocation14 + $0x40] sm:$0xff]
        %v3418 = vld [vmem:[#allocation14 + $0x48] sm:$0xff]
        %v3419 = vld [vmem:[#allocation14 + $0x50] sm:$0xff]
        %v3420 = vld [vmem:[#allocation14 + $0x58] sm:$0xff]
        %v3421 = vld [vmem:[#allocation14 + $0x60] sm:$0xff]
        %v3422 = vld [vmem:[#allocation14 + $0x68] sm:$0xff]
        %v3423 = vld [vmem:[#allocation14 + $0x70] sm:$0xff]
        %v3424 = vld [vmem:[#allocation14 + $0x78] sm:$0xff]
        %v3425 = vld [vmem:[#allocation16] sm:$0x1]
        %v3427 = vlaneseq
        %v3428 = vshrl.u32 %v3427, 7
        %v3429 = vsub.s32 0, %v3428
        %v3430 = vrot.slane %v3425, %v3429
        %3432 = vmatprep.subr.mxu0 0.0
        %3433 = vmatpush1.msra.mxu0 %v3409
        %3434 = vmatprep.subr.mxu0 0.0
        %3435 = vmatpush1.msra.mxu0 %v3410
        %3436 = vmatprep.subr.mxu0 0.0
        %3437 = vmatpush1.msra.mxu0 %v3411
        %3438 = vmatprep.subr.mxu0 0.0
        %3439 = vmatpush1.msra.mxu0 %v3412
        %3440 = vmatprep.subr.mxu0 0.0
        %3441 = vmatpush1.msra.mxu0 %v3413
        %3442 = vmatprep.subr.mxu0 0.0
        %3443 = vmatpush1.msra.mxu0 %v3414
        %3444 = vmatprep.subr.mxu0 0.0
        %3445 = vmatpush1.msra.mxu0 %v3415
        %3446 = vmatprep.subr.mxu0 0.0
        %3447 = vmatpush1.msra.mxu0 %v3416
        %3448 = vmatprep.subr.mxu0 0.0
        %3449 = vmatpush1.msra.mxu0 %v3417
        %3450 = vmatprep.subr.mxu0 0.0
        %3451 = vmatpush1.msra.mxu0 %v3418
        %3452 = vmatprep.subr.mxu0 0.0
        %3453 = vmatpush1.msra.mxu0 %v3419
        %3454 = vmatprep.subr.mxu0 0.0
        %3455 = vmatpush1.msra.mxu0 %v3420
        %3456 = vmatprep.subr.mxu0 0.0
        %3457 = vmatpush1.msra.mxu0 %v3421
        %3458 = vmatprep.subr.mxu0 0.0
        %3459 = vmatpush1.msra.mxu0 %v3422
        %3460 = vmatprep.subr.mxu0 0.0
        %3461 = vmatpush1.msra.mxu0 %v3423
        %3462 = vmatprep.subr.mxu0 0.0
        %3463 = vmatpush1.msra.mxu0 %v3424
        %3464 = vmatprep.subr.mxu0 0.0
        %3465 = vmatpush1.msra.mxu0 0.0
        %3466 = vmatprep.subr.mxu0 0.0
        %3467 = vmatpush1.msra.mxu0 0.0
        %3468 = vmatprep.subr.mxu0 0.0
        %3469 = vmatpush1.msra.mxu0 0.0
        %3470 = vmatprep.subr.mxu0 0.0
        %3471 = vmatpush1.msra.mxu0 0.0
        %3472 = vmatprep.subr.mxu0 0.0
        %3473 = vmatpush1.msra.mxu0 0.0
        %3474 = vmatprep.subr.mxu0 0.0
        %3475 = vmatpush1.msra.mxu0 0.0
        %3476 = vmatprep.subr.mxu0 0.0
        %3477 = vmatpush1.msra.mxu0 0.0
        %3478 = vmatprep.subr.mxu0 0.0
        %3479 = vmatpush1.msra.mxu0 0.0
        %3480 = vmatprep.subr.mxu0 0.0
        %3481 = vmatpush1.msra.mxu0 0.0
        %3482 = vmatprep.subr.mxu0 0.0
        %3483 = vmatpush1.msra.mxu0 0.0
        %3484 = vmatprep.subr.mxu0 0.0
        %3485 = vmatpush1.msra.mxu0 0.0
        %3486 = vmatprep.subr.mxu0 0.0
        %3487 = vmatpush1.msra.mxu0 0.0
        %3488 = vmatprep.subr.mxu0 0.0
        %3489 = vmatpush1.msra.mxu0 0.0
        %3490 = vmatprep.subr.mxu0 0.0
        %3491 = vmatpush1.msra.mxu0 0.0
        %3492 = vmatprep.subr.mxu0 0.0
        %3493 = vmatpush1.msra.mxu0 0.0
        %3494 = vmatprep.subr.mxu0 0.0
        %3495 = vmatpush1.msra.mxu0 0.0
        %3496 = vmatprep.mubr.f32.mxu0 0.0
        %3497 = vmatmul.mubr.f32.gmra.mrb[0].mxu0 %v3408
        %v3498 = vpop.f32.mrb[0].mxu0
        %v3499 = vadd.f32 %v3430, %v3498
        %v3500 = vpop.f32.mrb[0].mxu0
        %3501 = vdwg.mxu0
        %v3502 = vmax.f32 %v3499, 0.0
        %v3503 = vld [vmem:[#allocation17] sm:$0xff]
        %v3504 = vld [vmem:[#allocation17 + $0x8] sm:$0xff]
        %v3505 = vld [vmem:[#allocation17 + $0x10] sm:$0xff]
        %v3506 = vld [vmem:[#allocation17 + $0x18] sm:$0xff]
        %v3507 = vld [vmem:[#allocation17 + $0x20] sm:$0xff]
        %v3508 = vld [vmem:[#allocation17 + $0x28] sm:$0xff]
        %v3509 = vld [vmem:[#allocation17 + $0x30] sm:$0xff]
        %v3510 = vld [vmem:[#allocation17 + $0x38] sm:$0xff]
        %v3511 = vld [vmem:[#allocation17 + $0x40] sm:$0xff]
        %v3512 = vld [vmem:[#allocation17 + $0x48] sm:$0xff]
        %v3513 = vld [vmem:[#allocation17 + $0x50] sm:$0xff]
        %v3514 = vld [vmem:[#allocation17 + $0x58] sm:$0xff]
        %v3515 = vld [vmem:[#allocation17 + $0x60] sm:$0xff]
        %v3516 = vld [vmem:[#allocation17 + $0x68] sm:$0xff]
        %v3517 = vld [vmem:[#allocation17 + $0x70] sm:$0xff]
        %v3518 = vld [vmem:[#allocation17 + $0x78] sm:$0xff]
        %v3519 = vld [vmem:[#allocation19] sm:$0x1]
        %v3521 = vlaneseq
        %v3522 = vshrl.u32 %v3521, 7
        %v3523 = vsub.s32 0, %v3522
        %v3524 = vrot.slane %v3519, %v3523
        %3526 = vmatprep.subr.mxu0 0.0
        %3527 = vmatpush1.msra.mxu0 %v3503
        %3528 = vmatprep.subr.mxu0 0.0
        %3529 = vmatpush1.msra.mxu0 %v3504
        %3530 = vmatprep.subr.mxu0 0.0
        %3531 = vmatpush1.msra.mxu0 %v3505
        %3532 = vmatprep.subr.mxu0 0.0
        %3533 = vmatpush1.msra.mxu0 %v3506
        %3534 = vmatprep.subr.mxu0 0.0
        %3535 = vmatpush1.msra.mxu0 %v3507
        %3536 = vmatprep.subr.mxu0 0.0
        %3537 = vmatpush1.msra.mxu0 %v3508
        %3538 = vmatprep.subr.mxu0 0.0
        %3539 = vmatpush1.msra.mxu0 %v3509
        %3540 = vmatprep.subr.mxu0 0.0
        %3541 = vmatpush1.msra.mxu0 %v3510
        %3542 = vmatprep.subr.mxu0 0.0
        %3543 = vmatpush1.msra.mxu0 %v3511
        %3544 = vmatprep.subr.mxu0 0.0
        %3545 = vmatpush1.msra.mxu0 %v3512
        %3546 = vmatprep.subr.mxu0 0.0
        %3547 = vmatpush1.msra.mxu0 %v3513
        %3548 = vmatprep.subr.mxu0 0.0
        %3549 = vmatpush1.msra.mxu0 %v3514
        %3550 = vmatprep.subr.mxu0 0.0
        %3551 = vmatpush1.msra.mxu0 %v3515
        %3552 = vmatprep.subr.mxu0 0.0
        %3553 = vmatpush1.msra.mxu0 %v3516
        %3554 = vmatprep.subr.mxu0 0.0
        %3555 = vmatpush1.msra.mxu0 %v3517
        %3556 = vmatprep.subr.mxu0 0.0
        %3557 = vmatpush1.msra.mxu0 %v3518
        %3558 = vmatprep.subr.mxu0 0.0
        %3559 = vmatpush1.msra.mxu0 0.0
        %3560 = vmatprep.subr.mxu0 0.0
        %3561 = vmatpush1.msra.mxu0 0.0
        %3562 = vmatprep.subr.mxu0 0.0
        %3563 = vmatpush1.msra.mxu0 0.0
        %3564 = vmatprep.subr.mxu0 0.0
        %3565 = vmatpush1.msra.mxu0 0.0
        %3566 = vmatprep.subr.mxu0 0.0
        %3567 = vmatpush1.msra.mxu0 0.0
        %3568 = vmatprep.subr.mxu0 0.0
        %3569 = vmatpush1.msra.mxu0 0.0
        %3570 = vmatprep.subr.mxu0 0.0
        %3571 = vmatpush1.msra.mxu0 0.0
        %3572 = vmatprep.subr.mxu0 0.0
        %3573 = vmatpush1.msra.mxu0 0.0
        %3574 = vmatprep.subr.mxu0 0.0
        %3575 = vmatpush1.msra.mxu0 0.0
        %3576 = vmatprep.subr.mxu0 0.0
        %3577 = vmatpush1.msra.mxu0 0.0
        %3578 = vmatprep.subr.mxu0 0.0
        %3579 = vmatpush1.msra.mxu0 0.0
        %3580 = vmatprep.subr.mxu0 0.0
        %3581 = vmatpush1.msra.mxu0 0.0
        %3582 = vmatprep.subr.mxu0 0.0
        %3583 = vmatpush1.msra.mxu0 0.0
        %3584 = vmatprep.subr.mxu0 0.0
        %3585 = vmatpush1.msra.mxu0 0.0
        %3586 = vmatprep.subr.mxu0 0.0
        %3587 = vmatpush1.msra.mxu0 0.0
        %3588 = vmatprep.subr.mxu0 0.0
        %3589 = vmatpush1.msra.mxu0 0.0
        %3590 = vmatprep.mubr.f32.mxu0 0.0
        %3591 = vmatmul.mubr.f32.gmra.mrb[0].mxu0 %v3502
        %v3592 = vpop.f32.mrb[0].mxu0
        %v3593 = vadd.f32 %v3524, %v3592
        %v3594 = vpop.f32.mrb[0].mxu0
        %3595 = vdwg.mxu0
        %v3596 = vmax.f32 %v3593, 0.0
        %v3597 = vld [vmem:[#allocation20] sm:$0xff]
        %v3598 = vld [vmem:[#allocation20 + $0x8] sm:$0xff]
        %v3599 = vld [vmem:[#allocation20 + $0x10] sm:$0xff]
        %v3600 = vld [vmem:[#allocation20 + $0x18] sm:$0xff]
        %v3601 = vld [vmem:[#allocation20 + $0x20] sm:$0xff]
        %v3602 = vld [vmem:[#allocation20 + $0x28] sm:$0xff]
        %v3603 = vld [vmem:[#allocation20 + $0x30] sm:$0xff]
        %v3604 = vld [vmem:[#allocation20 + $0x38] sm:$0xff]
        %v3605 = vld [vmem:[#allocation20 + $0x40] sm:$0xff]
        %v3606 = vld [vmem:[#allocation20 + $0x48] sm:$0xff]
        %v3607 = vld [vmem:[#allocation20 + $0x50] sm:$0xff]
        %v3608 = vld [vmem:[#allocation20 + $0x58] sm:$0xff]
        %v3609 = vld [vmem:[#allocation20 + $0x60] sm:$0xff]
        %v3610 = vld [vmem:[#allocation20 + $0x68] sm:$0xff]
        %v3611 = vld [vmem:[#allocation20 + $0x70] sm:$0xff]
        %v3612 = vld [vmem:[#allocation20 + $0x78] sm:$0xff]
        %v3613 = vld [vmem:[#allocation22] sm:$0x1]
        %v3615 = vlaneseq
        %v3616 = vshrl.u32 %v3615, 7
        %v3617 = vsub.s32 0, %v3616
        %v3618 = vrot.slane %v3613, %v3617
        %3620 = vmatprep.subr.mxu0 0.0
        %3621 = vmatpush1.msra.mxu0 %v3597
        %3622 = vmatprep.subr.mxu0 0.0
        %3623 = vmatpush1.msra.mxu0 %v3598
        %3624 = vmatprep.subr.mxu0 0.0
        %3625 = vmatpush1.msra.mxu0 %v3599
        %3626 = vmatprep.subr.mxu0 0.0
        %3627 = vmatpush1.msra.mxu0 %v3600
        %3628 = vmatprep.subr.mxu0 0.0
        %3629 = vmatpush1.msra.mxu0 %v3601
        %3630 = vmatprep.subr.mxu0 0.0
        %3631 = vmatpush1.msra.mxu0 %v3602
        %3632 = vmatprep.subr.mxu0 0.0
        %3633 = vmatpush1.msra.mxu0 %v3603
        %3634 = vmatprep.subr.mxu0 0.0
        %3635 = vmatpush1.msra.mxu0 %v3604
        %3636 = vmatprep.subr.mxu0 0.0
        %3637 = vmatpush1.msra.mxu0 %v3605
        %3638 = vmatprep.subr.mxu0 0.0
        %3639 = vmatpush1.msra.mxu0 %v3606
        %3640 = vmatprep.subr.mxu0 0.0
        %3641 = vmatpush1.msra.mxu0 %v3607
        %3642 = vmatprep.subr.mxu0 0.0
        %3643 = vmatpush1.msra.mxu0 %v3608
        %3644 = vmatprep.subr.mxu0 0.0
        %3645 = vmatpush1.msra.mxu0 %v3609
        %3646 = vmatprep.subr.mxu0 0.0
        %3647 = vmatpush1.msra.mxu0 %v3610
        %3648 = vmatprep.subr.mxu0 0.0
        %3649 = vmatpush1.msra.mxu0 %v3611
        %3650 = vmatprep.subr.mxu0 0.0
        %3651 = vmatpush1.msra.mxu0 %v3612
        %3652 = vmatprep.subr.mxu0 0.0
        %3653 = vmatpush1.msra.mxu0 0.0
        %3654 = vmatprep.subr.mxu0 0.0
        %3655 = vmatpush1.msra.mxu0 0.0
        %3656 = vmatprep.subr.mxu0 0.0
        %3657 = vmatpush1.msra.mxu0 0.0
        %3658 = vmatprep.subr.mxu0 0.0
        %3659 = vmatpush1.msra.mxu0 0.0
        %3660 = vmatprep.subr.mxu0 0.0
        %3661 = vmatpush1.msra.mxu0 0.0
        %3662 = vmatprep.subr.mxu0 0.0
        %3663 = vmatpush1.msra.mxu0 0.0
        %3664 = vmatprep.subr.mxu0 0.0
        %3665 = vmatpush1.msra.mxu0 0.0
        %3666 = vmatprep.subr.mxu0 0.0
        %3667 = vmatpush1.msra.mxu0 0.0
        %3668 = vmatprep.subr.mxu0 0.0
        %3669 = vmatpush1.msra.mxu0 0.0
        %3670 = vmatprep.subr.mxu0 0.0
        %3671 = vmatpush1.msra.mxu0 0.0
        %3672 = vmatprep.subr.mxu0 0.0
        %3673 = vmatpush1.msra.mxu0 0.0
        %3674 = vmatprep.subr.mxu0 0.0
        %3675 = vmatpush1.msra.mxu0 0.0
        %3676 = vmatprep.subr.mxu0 0.0
        %3677 = vmatpush1.msra.mxu0 0.0
        %3678 = vmatprep.subr.mxu0 0.0
        %3679 = vmatpush1.msra.mxu0 0.0
        %3680 = vmatprep.subr.mxu0 0.0
        %3681 = vmatpush1.msra.mxu0 0.0
        %3682 = vmatprep.subr.mxu0 0.0
        %3683 = vmatpush1.msra.mxu0 0.0
        %3684 = vmatprep.mubr.f32.mxu0 0.0
        %3685 = vmatmul.mubr.f32.gmra.mrb[0].mxu0 %v3596
        %v3686 = vpop.f32.mrb[0].mxu0
        %v3687 = vadd.f32 %v3618, %v3686
        %v3688 = vpop.f32.mrb[0].mxu0
        %3689 = vdwg.mxu0
        %3690 = vst [vmem:[%s622] sm:$0xff] %v3687
        %p3691 = scmp.lt.s32.totalorder %s33, 1
        %s3692 = scalar_select %p3691, %s33, 1
        %s3693 = smul.addr %s3692, 8
        %s3694 = scalar_lea.vmem %s13, %s3693
        // Predicated region
        $region132: #{forward.1} parent=71 // pred_check
          %p3695 = pneg %p329
        $region133: #{forward.1} parent=71 // pred_check_branch
          %3697 = sbr.rel (%p3695) target = $region135
        $region134: #{forward.1} parent=71 // pred_region
          _
        $region135: #{forward.1} parent=71 // pred_fallthru
          _
      $region72: #{forward.1} parent=5 // pred_fallthru
        _
      %p3698 = scmp.le.s32.totalorder 2, %s28
      // Predicated region
      $region136: #{forward.1} parent=5 // pred_check
        %p3699 = pneg %p3698
      $region137: #{forward.1} parent=5 // pred_check_branch
        %3701 = sbr.rel (%p3699) target = $region139
      $region138: #{forward.1} parent=5 // pred_region
        %s3702 = ssub.s32 %s28, 2
        // Predicated region
        $region140: #{forward.1} parent=138 // pred_check
          %p3703 = pneg %p335
        $region141: #{forward.1} parent=138 // pred_check_branch
          %3705 = sbr.rel (%p3703) target = $region143
        $region142: #{forward.1} parent=138 // pred_region
          %p3706 = scmp.lt.s32.totalorder %s34, 1
          %s3707 = scalar_select %p3706, %s34, 1
          %s3708 = smul.addr %s3707, 8
          %s3709 = scalar_lea.vmem %s13, %s3708
        $region143: #{forward.1} parent=138 // pred_fallthru
          _
      $region139: #{forward.1} parent=5 // pred_fallthru
        _
    $region6: #{forward.1} parent=1 // loop_footer
      %s32 = sadd.s32 1, %s28
    $region7: #{forward.1} parent=1 // loop_footer_branch
      %27 = sbr.rel target = $region3
    $region8: #{forward.1} parent=1 // loop_exit
      _
    %3710 = vsyncpa [#allocation4], 1
    %s3711 = scalar_lea.sflag [#allocation4], 1
    %3712 = vsyncpa %s3711, 1
    %3713 = vsyncpa [#allocation6], 1
    %3714 = vsyncpa [#allocation9], 1
    %3715 = vsyncpa [#allocation12], 1
    %3716 = vsyncpa [#allocation15], 1
    %3717 = vsyncpa [#allocation18], 1
    %3718 = vsyncpa [#allocation21], 1

</llo_original>
